<compile_context>
chip_gen: v6e
topology: v6e:2x2x1
jax: 0.10.0
libtpu: 0.0.40
codegen_flags: <defaults>
</compile_context>

<pallas_src>
import functools
import numpy as np
import jax
import jax.numpy as jnp
from jax import lax
from jax.experimental import pallas as pl
from jax.experimental.pallas import tpu as pltpu

# ---- scaled-down hyperparameters (original: dim=128, n_frames=64, n_clusters=512, band=16384) ----
MODEL_DIM = 32
N_FRAMES = 8
N_CLUSTERS = 16
BAND_SIZE = 64
DILATIONS = (1, 3)              # DenoisingLayer `dilations`
CONTEXT_DILATIONS = (1, 3, 9)   # fixed inside StepAndConditioning
N_STEPS = 25
BATCH = 2
NEG_SLOPE = 0.2


def _lrelu(v):
    return jnp.where(v >= 0, v, NEG_SLOPE * v)


def _zero_map(nd):
    return lambda i: (0,) * nd


def _full_spec(a):
    return pl.BlockSpec(a.shape, _zero_map(a.ndim))


# --------------------------------------------------------------------------
# im2col slab builder (shared by every conv in the kernel)
# --------------------------------------------------------------------------
def _fill_conv_slab(slab, x, cin, cols, batch, k, dil, pad):
    """slab[t*cin:(t+1)*cin, b*cols + j] = xpad_b[:, j + t*dil],
    where x is (cin, batch*cols) channels-first with batch segments along lanes and
    xpad_b = [0^pad | x_b | 0^pad].  Only halo columns are zeroed; the read window
    [0:k*cin, 0:batch*cols] is always fully overwritten (no stale VMEM reads)."""
    if cin == 1:
        # single-row strips would be numerous -> zero the small window once instead
        slab[0:k, 0:batch * cols] = jnp.zeros((k, batch * cols), jnp.float32)
    for t in range(k):
        off = t * dil - pad
        lo = min(max(0, -off), cols)
        hi = max(min(cols, cols - off), lo)
        r0 = t * cin
        for b in range(batch):
            base = b * cols
            if cin > 1 and lo > 0:
                slab[r0:r0 + cin, base:base + lo] = jnp.zeros((cin, lo), jnp.float32)
            if cin > 1 and hi < cols:
                slab[r0:r0 + cin, base + hi:base + cols] = jnp.zeros((cin, cols - hi), jnp.float32)
            if hi > lo:
                slab[r0:r0 + cin, base + lo:base + hi] = x[:, base + lo + off:base + hi + off]


# --------------------------------------------------------------------------
# The single fused kernel
# --------------------------------------------------------------------------
def _denoise_kernel(pack_ref, sbias_ref, idx_ref, norms_ref, deg_ref,
                    o_ref, slab, *, offs, batch):
    D, F, L, B = MODEL_DIM, N_FRAMES, BAND_SIZE, batch
    BF, BL = B * F, B * L

    def getp(name):
        c0, r, c = offs[name]
        return pack_ref[0:r, c0:c0 + c]

    def mm(w, v):
        return jnp.dot(w, v, preferred_element_type=jnp.float32)

    # ---- EmbedClusterCenters: embedding gather as one one-hot MXU matmul ----
    onehot = (lax.broadcasted_iota(jnp.int32, (N_CLUSTERS, BF), 0)
              == idx_ref[...]).astype(jnp.float32)
    ind = mm(getp('emb_t'), onehot)                                      # (D, B*F)

    # ---- EmbedAmp: Conv1d(1,16,7,p3)+LReLU, Conv1d(16,32,7,p3)+LReLU, Conv1d(32,D,7,p3) ----
    _fill_conv_slab(slab, norms_ref[...], 1, F, B, 7, 1, 3)
    h = _lrelu(mm(getp('amp_w1'), slab[0:7, 0:BF]) + getp('amp_b1'))
    _fill_conv_slab(slab, h, 16, F, B, 7, 1, 3)
    h = _lrelu(mm(getp('amp_w2'), slab[0:112, 0:BF]) + getp('amp_b2'))
    _fill_conv_slab(slab, h, 32, F, B, 7, 1, 3)
    amp = (mm(getp('amp_w3a'), slab[0:128, 0:BF])                        # 224-deep contraction
           + mm(getp('amp_w3b'), slab[128:224, 0:BF])                    # split at 128 (v5e MXU)
           + getp('amp_b3'))                                             # no final activation

    # ---- EmbedConditioning.reduce on cat([ind, amp]) -- concat folded into split weights ----
    c = _lrelu(mm(getp('cr_w0a'), ind) + mm(getp('cr_w0b'), amp) + getp('cr_b0'))
    c = _lrelu(mm(getp('cr_w1'), c) + getp('cr_b1'))
    cond = mm(getp('cr_w2'), c) + getp('cr_b2')                          # (D, B*F)

    # ---- StepAndConditioning.reduce on cat([pos, cond]) -- pos term pre-folded into sbias ----
    x = _lrelu(mm(getp('sr_w0b'), cond) + sbias_ref[...])
    x = _lrelu(mm(getp('sr_w1'), x) + getp('sr_b1'))
    x = mm(getp('sr_w2'), x) + getp('sr_b2')                             # (D, B*F)

    # ---- context DilatedBlocks (dilated conv + 1x1 conv merged into one (D,3D) weight) ----
    for i, d in enumerate(CONTEXT_DILATIONS):
        _fill_conv_slab(slab, x, D, F, B, 3, d, d)
        x = _lrelu(mm(getp(f'ctx_wm{i}'), slab[0:3 * D, 0:BF]) + getp(f'ctx_bm{i}') + x)

    # ---- F.interpolate(mode='linear'): both batches in one block-diagonal matmul ----
    cond_band = mm(x, getp('w_interp'))                                  # (D, B*band)

    # ---- DenoisingLayer.embed: Conv1d(1, D, 25, p12), 25 taps stacked -> one matmul ----
    _fill_conv_slab(slab, deg_ref[...], 1, L, B, 25, 1, 12)
    emb = mm(getp('embed_w'), slab[0:25, 0:BL]) + getp('embed_b')        # (D, B*band)

    # ---- net[0]: 1x1 conv on cat([cond, emb], channels) via split weights ----
    x = mm(getp('n0_wa'), cond_band) + mm(getp('n0_wb'), emb) + getp('n0_b')

    # ---- net DilatedBlocks over lane-dense (D, B*band) = (32, 128) tiles ----
    for i, d in enumerate(DILATIONS):
        _fill_conv_slab(slab, x, D, L, B, 3, d, d)
        x = _lrelu(mm(getp(f'net_wm{i}'), slab[0:3 * D, 0:BL]) + getp(f'net_bm{i}') + x)

    # ---- store directly in the module's (B, dim, band) layout (no wrapper transpose) ----
    for b in range(B):
        o_ref[b, :, :] = x[:, b * L:(b + 1) * L]


# --------------------------------------------------------------------------
# Parameter construction (torch-structured) + host-side pre-pack / pre-fold
# --------------------------------------------------------------------------
def pos_encoded(batch, n_steps, n_freqs):
    pos = np.linspace(-1.0, 1.0, n_steps)[None, :, None]
    freqs = 2.0 ** np.arange(n_freqs)
    scaled = pos * freqs[None, None, :] * np.pi
    enc = np.concatenate([pos, np.sin(scaled), np.cos(scaled)], axis=-1)
    return np.repeat(enc, batch, axis=0).astype(np.float32)             # (batch, n_steps, 33)


def interp_matrix(f_in, out_size):
    # torch F.interpolate(mode='linear', align_corners=False) as a dense (f_in, out) matrix
    i = np.arange(out_size)
    src = np.clip((i + 0.5) * (f_in / out_size) - 0.5, 0.0, f_in - 1)
    lo = np.floor(src).astype(np.int64)
    hi = np.minimum(lo + 1, f_in - 1)
    frac = (src - lo).astype(np.float32)
    W = np.zeros((f_in, out_size), dtype=np.float32)
    W[lo, i] += 1.0 - frac
    W[hi, i] += frac
    return W


def init_params(key, dim=MODEL_DIM):
    ks = iter(jax.random.split(key, 64))

    def rnd(*shape, scale=0.08):
        return (scale * jax.random.normal(next(ks), shape)).astype(jnp.float32)

    # TODO(synk): LinearOutputStack source unavailable; assumed layers=2 =>
    #   Linear(in->ch)+LReLU(0.2), Linear(ch->ch)+LReLU(0.2), Linear(ch->out) (no final act).
    def lin_stack(in_c, ch, out_c):
        return dict(w0=rnd(ch, in_c), b0=rnd(ch), w1=rnd(ch, ch), b1=rnd(ch),
                    w2=rnd(out_c, ch), b2=rnd(out_c))

    def dblock(ch):
        return dict(wd=rnd(ch, ch, 3), bd=rnd(ch), wp=rnd(ch, ch, 1), bp=rnd(ch))

    return dict(
        cluster_emb=rnd(N_CLUSTERS, dim, scale=0.5),           # nn.Embedding(n_clusters, dim)
        amp_w1=rnd(16, 1, 7), amp_b1=rnd(16),                  # EmbedAmp convs (torch OIK layout)
        amp_w2=rnd(32, 16, 7), amp_b2=rnd(32),
        amp_w3=rnd(dim, 32, 7), amp_b3=rnd(dim),
        cond_reduce=lin_stack(2 * dim, dim, dim),               # EmbedConditioning.reduce
        step_embed=lin_stack(33, dim, dim),                     # StepEmbedding.embed
        sac_reduce=lin_stack(2 * dim, dim, dim),                # StepAndConditioning.reduce
        ctx=[dblock(dim) for _ in CONTEXT_DILATIONS],
        embed_w=rnd(dim, 1, 25), embed_b=rnd(dim),              # DenoisingLayer.embed
        net0_w=rnd(dim, 2 * dim, 1), net0_b=rnd(dim),           # net[0] 1x1 conv
        net=[dblock(dim) for _ in DILATIONS],
        pos=pos_encoded(1, N_STEPS, 16),                        # StepEmbedding buffer (1, 25, 33)
    )


def prepare_params(p, batch=BATCH):
    """Once at init: pre-permute / fold / concatenate every weight into ONE packed
    (dim, P) array (single DMA instead of ~30) plus a per-step (dim, n_steps) bias table."""
    D = MODEL_DIM

    def a(v):
        return np.asarray(v, np.float32)

    def col(v):
        return a(v).reshape(-1, 1)

    def stack_taps(w):                      # torch (out, cin, k) -> (out, k*cin), tap-major
        w = a(w)
        return np.concatenate([w[:, :, t] for t in range(w.shape[2])], axis=1)

    def merge_dblock(blk):                  # fold the 1x1 conv into the dilated conv (both linear)
        wd_s = stack_taps(blk['wd'])        # (C, 3C)
        wp = a(blk['wp'])[:, :, 0]          # (C, C)
        return wp @ wd_s, col(wp @ a(blk['bd']) + a(blk['bp']))

    segs = {}
    segs['emb_t'] = a(p['cluster_emb']).T                                   # (D, n_clusters)
    segs['amp_w1'] = stack_taps(p['amp_w1']); segs['amp_b1'] = col(p['amp_b1'])
    segs['amp_w2'] = stack_taps(p['amp_w2']); segs['amp_b2'] = col(p['amp_b2'])
    w3 = stack_taps(p['amp_w3'])                                            # (D, 224)
    segs['amp_w3a'], segs['amp_w3b'] = w3[:, :128], w3[:, 128:]
    segs['amp_b3'] = col(p['amp_b3'])
    cr = p['cond_reduce']
    segs['cr_w0a'], segs['cr_w0b'] = a(cr['w0'])[:, :D], a(cr['w0'])[:, D:]
    segs['cr_b0'] = col(cr['b0'])
    segs['cr_w1'], segs['cr_b1'] = a(cr['w1']), col(cr['b1'])
    segs['cr_w2'], segs['cr_b2'] = a(cr['w2']), col(cr['b2'])
    sr = p['sac_reduce']
    segs['sr_w0b'] = a(sr['w0'])[:, D:]
    segs['sr_w1'], segs['sr_b1'] = a(sr['w1']), col(sr['b1'])
    segs['sr_w2'], segs['sr_b2'] = a(sr['w2']), col(sr['b2'])
    for i, blk in enumerate(p['ctx']):
        segs[f'ctx_wm{i}'], segs[f'ctx_bm{i}'] = merge_dblock(blk)
    wi = interp_matrix(N_FRAMES, BAND_SIZE)
    wbd = np.zeros((batch * N_FRAMES, batch * BAND_SIZE), np.float32)       # block-diag over batch
    for b in range(batch):
        wbd[b * N_FRAMES:(b + 1) * N_FRAMES, b * BAND_SIZE:(b + 1) * BAND_SIZE] = wi
    segs['w_interp'] = wbd
    segs['embed_w'] = stack_taps(p['embed_w']); segs['embed_b'] = col(p['embed_b'])
    n0 = a(p['net0_w'])[:, :, 0]
    segs['n0_wa'], segs['n0_wb'] = n0[:, :D], n0[:, D:]
    segs['n0_b'] = col(p['net0_b'])
    for i, blk in enumerate(p['net']):
        segs[f'net_wm{i}'], segs[f'net_bm{i}'] = merge_dblock(blk)

    offs, ptr = {}, 0
    for name, arr in segs.items():
        offs[name] = (ptr, arr.shape[0], arr.shape[1])
        ptr += arr.shape[1]
    pack = np.zeros((D, ptr), np.float32)
    for name, arr in segs.items():
        c0, r, c = offs[name]
        pack[:r, c0:c0 + c] = arr

    # step-bias table: StepEmbedding stack + sac_reduce layer-0 'pos' half + bias, for all steps
    def np_lrelu(v):
        return np.where(v >= 0, v, NEG_SLOPE * v)
    se = p['step_embed']
    e = a(p['pos'])[0].T                                                    # (33, n_steps)
    e = np_lrelu(a(se['w0']) @ e + col(se['b0']))
    e = np_lrelu(a(se['w1']) @ e + col(se['b1']))
    e = a(se['w2']) @ e + col(se['b2'])                                     # (D, n_steps)
    step_bias = a(sr['w0'])[:, :D] @ e + col(sr['b0'])                      # (D, n_steps)

    return dict(pack=jnp.asarray(pack), step_bias=jnp.asarray(step_bias), offs=offs)


# --------------------------------------------------------------------------
# Forward
# --------------------------------------------------------------------------
def build_forward(offs):
    def forward(pack, step_bias_all, degraded, indices, norms, step):
        B = degraded.shape[0]
        deg_cf = degraded.reshape(1, B * BAND_SIZE).astype(jnp.float32)     # (1, B*band)
        idx_cf = indices.reshape(1, B * N_FRAMES).astype(jnp.int32)         # (1, B*F)
        norms_cf = norms.reshape(1, B * N_FRAMES).astype(jnp.float32)       # (1, B*F)
        sbias = lax.dynamic_slice_in_dim(step_bias_all, step, 1, axis=1)    # (D, 1)
        inputs = [pack, sbias, idx_cf, norms_cf, deg_cf]
        return pl.pallas_call(
            functools.partial(_denoise_kernel, offs=offs, batch=B),
            out_shape=jax.ShapeDtypeStruct((B, MODEL_DIM, BAND_SIZE), jnp.float32),
            grid=(1,),
            in_specs=[_full_spec(x) for x in inputs],
            out_specs=pl.BlockSpec((B, MODEL_DIM, BAND_SIZE), lambda i: (0, 0, 0)),
            scratch_shapes=[
                # shared im2col slab: max rows 7*32 (amp layer 3), max cols B*band
                pltpu.VMEM((7 * MODEL_DIM, B * BAND_SIZE), jnp.float32),
            ],
        )(*inputs)
    return forward


# --------------------------------------------------------------------------
if __name__ == "__main__":
    key = jax.random.PRNGKey(0)
    pkey, dkey, ikey, nkey = jax.random.split(key, 4)

    params = init_params(pkey)
    prep = prepare_params(params)

    degraded = jax.random.normal(dkey, (BATCH, 1, BAND_SIZE), dtype=jnp.float32)
    indices = jax.random.randint(ikey, (BATCH, N_FRAMES), 0, N_CLUSTERS)
    norms = jax.random.uniform(nkey, (BATCH, N_FRAMES), dtype=jnp.float32)
    step = 3

    fwd = jax.jit(build_forward(prep['offs']))
    out = jax.block_until_ready(
        fwd(prep['pack'], prep['step_bias'], degraded, indices, norms, step))

    assert out.shape == (BATCH, MODEL_DIM, BAND_SIZE), out.shape
    assert bool(jnp.all(jnp.isfinite(out)))
    print("KERNEL_OK")
</pallas_src>

<mosaic_0001>
module attributes {stable_mosaic.version = 11 : i64} {
  func.func @_denoise_kernel(%arg0: i32, %arg1: memref<32x1295xf32, #tpu.memory_space<vmem>>, %arg2: memref<32x1xf32, #tpu.memory_space<vmem>>, %arg3: memref<1x16xi32, #tpu.memory_space<vmem>>, %arg4: memref<1x16xf32, #tpu.memory_space<vmem>>, %arg5: memref<1x128xf32, #tpu.memory_space<vmem>>, %arg6: memref<2x32x64xf32, #tpu.memory_space<vmem>>, %arg7: memref<224x128xf32, #tpu.memory_space<vmem>>) attributes {dimension_semantics = [#tpu.dimension_semantics<arbitrary>], iteration_bounds = array<i64: 1>, scalar_prefetch = 0 : i64, scratch_operands = 1 : i64, tpu.core_type = #tpu.core_type<tc>, window_params = [{pipeline_mode = #tpu.pipeline_mode<synchronous>, transform_indices = @transform_0, window_bounds = array<i64: 32, 1295>}, {pipeline_mode = #tpu.pipeline_mode<synchronous>, transform_indices = @transform_1, window_bounds = array<i64: 32, 1>}, {pipeline_mode = #tpu.pipeline_mode<synchronous>, transform_indices = @transform_2, window_bounds = array<i64: 1, 16>}, {pipeline_mode = #tpu.pipeline_mode<synchronous>, transform_indices = @transform_3, window_bounds = array<i64: 1, 16>}, {pipeline_mode = #tpu.pipeline_mode<synchronous>, transform_indices = @transform_4, window_bounds = array<i64: 1, 128>}, {pipeline_mode = #tpu.pipeline_mode<synchronous>, transform_indices = @transform_5, window_bounds = array<i64: 2, 32, 64>}]} {
    %0 = tpu.iota {dimensions = array<i32: 0>} : vector<16x16xi32>
    %c0 = arith.constant 0 : index
    %c0_0 = arith.constant 0 : index
    %1 = vector.load %arg3[%c0, %c0_0] : memref<1x16xi32, #tpu.memory_space<vmem>>, vector<1x16xi32>
    %2 = vector.broadcast %1 : vector<1x16xi32> to vector<16x16xi32>
    %3 = arith.cmpi eq, %0, %2 : vector<16x16xi32>
    %4 = arith.extui %3 : vector<16x16xi1> to vector<16x16xi32>
    %5 = arith.sitofp %4 : vector<16x16xi32> to vector<16x16xf32>
    %c0_1 = arith.constant 0 : index
    %c0_2 = arith.constant 0 : index
    %6 = vector.load %arg1[%c0_1, %c0_2] : memref<32x1295xf32, #tpu.memory_space<vmem>>, vector<32x16xf32>
    %cst = arith.constant dense<0.000000e+00> : vector<32x16xf32>
    %7 = tpu.matmul %6, %5, %cst {dimension_numbers = #tpu.dot_dimension_numbers<[1], [0], [0], [1], [0, 0, 1, 1], [], []>} : vector<32x16xf32>, vector<16x16xf32>, vector<32x16xf32> -> vector<32x16xf32>
    %c0_3 = arith.constant 0 : index
    %c0_4 = arith.constant 0 : index
    %8 = vector.load %arg4[%c0_3, %c0_4] : memref<1x16xf32, #tpu.memory_space<vmem>>, vector<1x16xf32>
    %cst_5 = arith.constant 0.000000e+00 : f32
    %9 = vector.broadcast %cst_5 : f32 to vector<7x16xf32>
    %c0_6 = arith.constant 0 : index
    %c0_7 = arith.constant 0 : index
    %10 = vector.load %arg7[%c0_6, %c0_7] : memref<224x128xf32, #tpu.memory_space<vmem>>, vector<7x16xf32>
    tpu.vector_store %arg7[%c0_6, %c0_7], %9 {strides = array<i32>} : memref<224x128xf32, #tpu.memory_space<vmem>>, vector<7x16xf32>,
    %11 = vector.extract_strided_slice %8 {offsets = [0, 0], sizes = [1, 5], strides = [1, 1]} : vector<1x16xf32> to vector<1x5xf32>
    %c0_8 = arith.constant 0 : index
    %c3 = arith.constant 3 : index
    %12 = vector.load %arg7[%c0_8, %c3] : memref<224x128xf32, #tpu.memory_space<vmem>>, vector<1x5xf32>
    tpu.vector_store %arg7[%c0_8, %c3], %11 {strides = array<i32>} : memref<224x128xf32, #tpu.memory_space<vmem>>, vector<1x5xf32>,
    %13 = vector.extract_strided_slice %8 {offsets = [0, 8], sizes = [1, 5], strides = [1, 1]} : vector<1x16xf32> to vector<1x5xf32>
    %c0_9 = arith.constant 0 : index
    %c11 = arith.constant 11 : index
    %14 = vector.load %arg7[%c0_9, %c11] : memref<224x128xf32, #tpu.memory_space<vmem>>, vector<1x5xf32>
    tpu.vector_store %arg7[%c0_9, %c11], %13 {strides = array<i32>} : memref<224x128xf32, #tpu.memory_space<vmem>>, vector<1x5xf32>,
    %15 = vector.extract_strided_slice %8 {offsets = [0, 0], sizes = [1, 6], strides = [1, 1]} : vector<1x16xf32> to vector<1x6xf32>
    %c1 = arith.constant 1 : index
    %c2 = arith.constant 2 : index
    %16 = vector.load %arg7[%c1, %c2] : memref<224x128xf32, #tpu.memory_space<vmem>>, vector<1x6xf32>
    tpu.vector_store %arg7[%c1, %c2], %15 {strides = array<i32>} : memref<224x128xf32, #tpu.memory_space<vmem>>, vector<1x6xf32>,
    %17 = vector.extract_strided_slice %8 {offsets = [0, 8], sizes = [1, 6], strides = [1, 1]} : vector<1x16xf32> to vector<1x6xf32>
    %c1_10 = arith.constant 1 : index
    %c10 = arith.constant 10 : index
    %18 = vector.load %arg7[%c1_10, %c10] : memref<224x128xf32, #tpu.memory_space<vmem>>, vector<1x6xf32>
    tpu.vector_store %arg7[%c1_10, %c10], %17 {strides = array<i32>} : memref<224x128xf32, #tpu.memory_space<vmem>>, vector<1x6xf32>,
    %19 = vector.extract_strided_slice %8 {offsets = [0, 0], sizes = [1, 7], strides = [1, 1]} : vector<1x16xf32> to vector<1x7xf32>
    %c2_11 = arith.constant 2 : index
    %c1_12 = arith.constant 1 : index
    %20 = vector.load %arg7[%c2_11, %c1_12] : memref<224x128xf32, #tpu.memory_space<vmem>>, vector<1x7xf32>
    tpu.vector_store %arg7[%c2_11, %c1_12], %19 {strides = array<i32>} : memref<224x128xf32, #tpu.memory_space<vmem>>, vector<1x7xf32>,
    %21 = vector.extract_strided_slice %8 {offsets = [0, 8], sizes = [1, 7], strides = [1, 1]} : vector<1x16xf32> to vector<1x7xf32>
    %c2_13 = arith.constant 2 : index
    %c9 = arith.constant 9 : index
    %22 = vector.load %arg7[%c2_13, %c9] : memref<224x128xf32, #tpu.memory_space<vmem>>, vector<1x7xf32>
    tpu.vector_store %arg7[%c2_13, %c9], %21 {strides = array<i32>} : memref<224x128xf32, #tpu.memory_space<vmem>>, vector<1x7xf32>,
    %23 = vector.extract_strided_slice %8 {offsets = [0, 0], sizes = [1, 8], strides = [1, 1]} : vector<1x16xf32> to vector<1x8xf32>
    %c3_14 = arith.constant 3 : index
    %c0_15 = arith.constant 0 : index
    %24 = vector.load %arg7[%c3_14, %c0_15] : memref<224x128xf32, #tpu.memory_space<vmem>>, vector<1x8xf32>
    tpu.vector_store %arg7[%c3_14, %c0_15], %23 {strides = array<i32>} : memref<224x128xf32, #tpu.memory_space<vmem>>, vector<1x8xf32>,
    %25 = vector.extract_strided_slice %8 {offsets = [0, 8], sizes = [1, 8], strides = [1, 1]} : vector<1x16xf32> to vector<1x8xf32>
    %c3_16 = arith.constant 3 : index
    %c8 = arith.constant 8 : index
    %26 = vector.load %arg7[%c3_16, %c8] : memref<224x128xf32, #tpu.memory_space<vmem>>, vector<1x8xf32>
    tpu.vector_store %arg7[%c3_16, %c8], %25 {strides = array<i32>} : memref<224x128xf32, #tpu.memory_space<vmem>>, vector<1x8xf32>,
    %27 = vector.extract_strided_slice %8 {offsets = [0, 1], sizes = [1, 7], strides = [1, 1]} : vector<1x16xf32> to vector<1x7xf32>
    %c4 = arith.constant 4 : index
    %c0_17 = arith.constant 0 : index
    %28 = vector.load %arg7[%c4, %c0_17] : memref<224x128xf32, #tpu.memory_space<vmem>>, vector<1x7xf32>
    tpu.vector_store %arg7[%c4, %c0_17], %27 {strides = array<i32>} : memref<224x128xf32, #tpu.memory_space<vmem>>, vector<1x7xf32>,
    %29 = vector.extract_strided_slice %8 {offsets = [0, 9], sizes = [1, 7], strides = [1, 1]} : vector<1x16xf32> to vector<1x7xf32>
    %c4_18 = arith.constant 4 : index
    %c8_19 = arith.constant 8 : index
    %30 = vector.load %arg7[%c4_18, %c8_19] : memref<224x128xf32, #tpu.memory_space<vmem>>, vector<1x7xf32>
    tpu.vector_store %arg7[%c4_18, %c8_19], %29 {strides = array<i32>} : memref<224x128xf32, #tpu.memory_space<vmem>>, vector<1x7xf32>,
    %31 = vector.extract_strided_slice %8 {offsets = [0, 2], sizes = [1, 6], strides = [1, 1]} : vector<1x16xf32> to vector<1x6xf32>
    %c5 = arith.constant 5 : index
    %c0_20 = arith.constant 0 : index
    %32 = vector.load %arg7[%c5, %c0_20] : memref<224x128xf32, #tpu.memory_space<vmem>>, vector<1x6xf32>
    tpu.vector_store %arg7[%c5, %c0_20], %31 {strides = array<i32>} : memref<224x128xf32, #tpu.memory_space<vmem>>, vector<1x6xf32>,
    %33 = vector.extract_strided_slice %8 {offsets = [0, 10], sizes = [1, 6], strides = [1, 1]} : vector<1x16xf32> to vector<1x6xf32>
    %c5_21 = arith.constant 5 : index
    %c8_22 = arith.constant 8 : index
    %34 = vector.load %arg7[%c5_21, %c8_22] : memref<224x128xf32, #tpu.memory_space<vmem>>, vector<1x6xf32>
    tpu.vector_store %arg7[%c5_21, %c8_22], %33 {strides = array<i32>} : memref<224x128xf32, #tpu.memory_space<vmem>>, vector<1x6xf32>,
    %35 = vector.extract_strided_slice %8 {offsets = [0, 3], sizes = [1, 5], strides = [1, 1]} : vector<1x16xf32> to vector<1x5xf32>
    %c6 = arith.constant 6 : index
    %c0_23 = arith.constant 0 : index
    %36 = vector.load %arg7[%c6, %c0_23] : memref<224x128xf32, #tpu.memory_space<vmem>>, vector<1x5xf32>
    tpu.vector_store %arg7[%c6, %c0_23], %35 {strides = array<i32>} : memref<224x128xf32, #tpu.memory_space<vmem>>, vector<1x5xf32>,
    %37 = vector.extract_strided_slice %8 {offsets = [0, 11], sizes = [1, 5], strides = [1, 1]} : vector<1x16xf32> to vector<1x5xf32>
    %c6_24 = arith.constant 6 : index
    %c8_25 = arith.constant 8 : index
    %38 = vector.load %arg7[%c6_24, %c8_25] : memref<224x128xf32, #tpu.memory_space<vmem>>, vector<1x5xf32>
    tpu.vector_store %arg7[%c6_24, %c8_25], %37 {strides = array<i32>} : memref<224x128xf32, #tpu.memory_space<vmem>>, vector<1x5xf32>,
    %c0_26 = arith.constant 0 : index
    %c16 = arith.constant 16 : index
    %39 = vector.load %arg1[%c0_26, %c16] : memref<32x1295xf32, #tpu.memory_space<vmem>>, vector<16x7xf32>
    %c0_27 = arith.constant 0 : index
    %c0_28 = arith.constant 0 : index
    %40 = vector.load %arg7[%c0_27, %c0_28] : memref<224x128xf32, #tpu.memory_space<vmem>>, vector<7x16xf32>
    %cst_29 = arith.constant dense<0.000000e+00> : vector<16x16xf32>
    %41 = tpu.matmul %39, %40, %cst_29 {dimension_numbers = #tpu.dot_dimension_numbers<[1], [0], [0], [1], [0, 0, 1, 1], [], []>} : vector<16x7xf32>, vector<7x16xf32>, vector<16x16xf32> -> vector<16x16xf32>
    %c0_30 = arith.constant 0 : index
    %c23 = arith.constant 23 : index
    %42 = vector.load %arg1[%c0_30, %c23] : memref<32x1295xf32, #tpu.memory_space<vmem>>, vector<16x1xf32>
    %43 = vector.broadcast %42 : vector<16x1xf32> to vector<16x16xf32>
    %44 = arith.addf %41, %43 : vector<16x16xf32>
    %cst_31 = arith.constant 0.000000e+00 : f32
    %45 = vector.broadcast %cst_31 : f32 to vector<16x16xf32>
    %46 = arith.cmpf oge, %44, %45 : vector<16x16xf32>
    %cst_32 = arith.constant 2.000000e-01 : f32
    %47 = vector.broadcast %cst_32 : f32 to vector<16x16xf32>
    %48 = arith.mulf %47, %44 : vector<16x16xf32>
    %49 = arith.select %46, %44, %48 : vector<16x16xi1>, vector<16x16xf32>
    %cst_33 = arith.constant 0.000000e+00 : f32
    %50 = vector.broadcast %cst_33 : f32 to vector<16x3xf32>
    %c0_34 = arith.constant 0 : index
    %c0_35 = arith.constant 0 : index
    %51 = vector.load %arg7[%c0_34, %c0_35] : memref<224x128xf32, #tpu.memory_space<vmem>>, vector<16x3xf32>
    tpu.vector_store %arg7[%c0_34, %c0_35], %50 {strides = array<i32>} : memref<224x128xf32, #tpu.memory_space<vmem>>, vector<16x3xf32>,
    %52 = vector.extract_strided_slice %49 {offsets = [0, 0], sizes = [16, 5], strides = [1, 1]} : vector<16x16xf32> to vector<16x5xf32>
    %c0_36 = arith.constant 0 : index
    %c3_37 = arith.constant 3 : index
    %53 = vector.load %arg7[%c0_36, %c3_37] : memref<224x128xf32, #tpu.memory_space<vmem>>, vector<16x5xf32>
    tpu.vector_store %arg7[%c0_36, %c3_37], %52 {strides = array<i32>} : memref<224x128xf32, #tpu.memory_space<vmem>>, vector<16x5xf32>,
    %cst_38 = arith.constant 0.000000e+00 : f32
    %54 = vector.broadcast %cst_38 : f32 to vector<16x3xf32>
    %c0_39 = arith.constant 0 : index
    %c8_40 = arith.constant 8 : index
    %55 = vector.load %arg7[%c0_39, %c8_40] : memref<224x128xf32, #tpu.memory_space<vmem>>, vector<16x3xf32>
    tpu.vector_store %arg7[%c0_39, %c8_40], %54 {strides = array<i32>} : memref<224x128xf32, #tpu.memory_space<vmem>>, vector<16x3xf32>,
    %56 = vector.extract_strided_slice %49 {offsets = [0, 8], sizes = [16, 5], strides = [1, 1]} : vector<16x16xf32> to vector<16x5xf32>
    %c0_41 = arith.constant 0 : index
    %c11_42 = arith.constant 11 : index
    %57 = vector.load %arg7[%c0_41, %c11_42] : memref<224x128xf32, #tpu.memory_space<vmem>>, vector<16x5xf32>
    tpu.vector_store %arg7[%c0_41, %c11_42], %56 {strides = array<i32>} : memref<224x128xf32, #tpu.memory_space<vmem>>, vector<16x5xf32>,
    %cst_43 = arith.constant 0.000000e+00 : f32
    %58 = vector.broadcast %cst_43 : f32 to vector<16x2xf32>
    %c16_44 = arith.constant 16 : index
    %c0_45 = arith.constant 0 : index
    %59 = vector.load %arg7[%c16_44, %c0_45] : memref<224x128xf32, #tpu.memory_space<vmem>>, vector<16x2xf32>
    tpu.vector_store %arg7[%c16_44, %c0_45], %58 {strides = array<i32>} : memref<224x128xf32, #tpu.memory_space<vmem>>, vector<16x2xf32>,
    %60 = vector.extract_strided_slice %49 {offsets = [0, 0], sizes = [16, 6], strides = [1, 1]} : vector<16x16xf32> to vector<16x6xf32>
    %c16_46 = arith.constant 16 : index
    %c2_47 = arith.constant 2 : index
    %61 = vector.load %arg7[%c16_46, %c2_47] : memref<224x128xf32, #tpu.memory_space<vmem>>, vector<16x6xf32>
    tpu.vector_store %arg7[%c16_46, %c2_47], %60 {strides = array<i32>} : memref<224x128xf32, #tpu.memory_space<vmem>>, vector<16x6xf32>,
    %cst_48 = arith.constant 0.000000e+00 : f32
    %62 = vector.broadcast %cst_48 : f32 to vector<16x2xf32>
    %c16_49 = arith.constant 16 : index
    %c8_50 = arith.constant 8 : index
    %63 = vector.load %arg7[%c16_49, %c8_50] : memref<224x128xf32, #tpu.memory_space<vmem>>, vector<16x2xf32>
    tpu.vector_store %arg7[%c16_49, %c8_50], %62 {strides = array<i32>} : memref<224x128xf32, #tpu.memory_space<vmem>>, vector<16x2xf32>,
    %64 = vector.extract_strided_slice %49 {offsets = [0, 8], sizes = [16, 6], strides = [1, 1]} : vector<16x16xf32> to vector<16x6xf32>
    %c16_51 = arith.constant 16 : index
    %c10_52 = arith.constant 10 : index
    %65 = vector.load %arg7[%c16_51, %c10_52] : memref<224x128xf32, #tpu.memory_space<vmem>>, vector<16x6xf32>
    tpu.vector_store %arg7[%c16_51, %c10_52], %64 {strides = array<i32>} : memref<224x128xf32, #tpu.memory_space<vmem>>, vector<16x6xf32>,
    %cst_53 = arith.constant 0.000000e+00 : f32
    %66 = vector.broadcast %cst_53 : f32 to vector<16x1xf32>
    %c32 = arith.constant 32 : index
    %c0_54 = arith.constant 0 : index
    %67 = vector.load %arg7[%c32, %c0_54] : memref<224x128xf32, #tpu.memory_space<vmem>>, vector<16x1xf32>
    tpu.vector_store %arg7[%c32, %c0_54], %66 {strides = array<i32>} : memref<224x128xf32, #tpu.memory_space<vmem>>, vector<16x1xf32>,
    %68 = vector.extract_strided_slice %49 {offsets = [0, 0], sizes = [16, 7], strides = [1, 1]} : vector<16x16xf32> to vector<16x7xf32>
    %c32_55 = arith.constant 32 : index
    %c1_56 = arith.constant 1 : index
    %69 = vector.load %arg7[%c32_55, %c1_56] : memref<224x128xf32, #tpu.memory_space<vmem>>, vector<16x7xf32>
    tpu.vector_store %arg7[%c32_55, %c1_56], %68 {strides = array<i32>} : memref<224x128xf32, #tpu.memory_space<vmem>>, vector<16x7xf32>,
    %cst_57 = arith.constant 0.000000e+00 : f32
    %70 = vector.broadcast %cst_57 : f32 to vector<16x1xf32>
    %c32_58 = arith.constant 32 : index
    %c8_59 = arith.constant 8 : index
    %71 = vector.load %arg7[%c32_58, %c8_59] : memref<224x128xf32, #tpu.memory_space<vmem>>, vector<16x1xf32>
    tpu.vector_store %arg7[%c32_58, %c8_59], %70 {strides = array<i32>} : memref<224x128xf32, #tpu.memory_space<vmem>>, vector<16x1xf32>,
    %72 = vector.extract_strided_slice %49 {offsets = [0, 8], sizes = [16, 7], strides = [1, 1]} : vector<16x16xf32> to vector<16x7xf32>
    %c32_60 = arith.constant 32 : index
    %c9_61 = arith.constant 9 : index
    %73 = vector.load %arg7[%c32_60, %c9_61] : memref<224x128xf32, #tpu.memory_space<vmem>>, vector<16x7xf32>
    tpu.vector_store %arg7[%c32_60, %c9_61], %72 {strides = array<i32>} : memref<224x128xf32, #tpu.memory_space<vmem>>, vector<16x7xf32>,
    %74 = vector.extract_strided_slice %49 {offsets = [0, 0], sizes = [16, 8], strides = [1, 1]} : vector<16x16xf32> to vector<16x8xf32>
    %c48 = arith.constant 48 : index
    %c0_62 = arith.constant 0 : index
    %75 = vector.load %arg7[%c48, %c0_62] : memref<224x128xf32, #tpu.memory_space<vmem>>, vector<16x8xf32>
    tpu.vector_store %arg7[%c48, %c0_62], %74 {strides = array<i32>} : memref<224x128xf32, #tpu.memory_space<vmem>>, vector<16x8xf32>,
    %76 = vector.extract_strided_slice %49 {offsets = [0, 8], sizes = [16, 8], strides = [1, 1]} : vector<16x16xf32> to vector<16x8xf32>
    %c48_63 = arith.constant 48 : index
    %c8_64 = arith.constant 8 : index
    %77 = vector.load %arg7[%c48_63, %c8_64] : memref<224x128xf32, #tpu.memory_space<vmem>>, vector<16x8xf32>
    tpu.vector_store %arg7[%c48_63, %c8_64], %76 {strides = array<i32>} : memref<224x128xf32, #tpu.memory_space<vmem>>, vector<16x8xf32>,
    %cst_65 = arith.constant 0.000000e+00 : f32
    %78 = vector.broadcast %cst_65 : f32 to vector<16x1xf32>
    %c64 = arith.constant 64 : index
    %c7 = arith.constant 7 : index
    %79 = vector.load %arg7[%c64, %c7] : memref<224x128xf32, #tpu.memory_space<vmem>>, vector<16x1xf32>
    tpu.vector_store %arg7[%c64, %c7], %78 {strides = array<i32>} : memref<224x128xf32, #tpu.memory_space<vmem>>, vector<16x1xf32>,
    %80 = vector.extract_strided_slice %49 {offsets = [0, 1], sizes = [16, 7], strides = [1, 1]} : vector<16x16xf32> to vector<16x7xf32>
    %c64_66 = arith.constant 64 : index
    %c0_67 = arith.constant 0 : index
    %81 = vector.load %arg7[%c64_66, %c0_67] : memref<224x128xf32, #tpu.memory_space<vmem>>, vector<16x7xf32>
    tpu.vector_store %arg7[%c64_66, %c0_67], %80 {strides = array<i32>} : memref<224x128xf32, #tpu.memory_space<vmem>>, vector<16x7xf32>,
    %cst_68 = arith.constant 0.000000e+00 : f32
    %82 = vector.broadcast %cst_68 : f32 to vector<16x1xf32>
    %c64_69 = arith.constant 64 : index
    %c15 = arith.constant 15 : index
    %83 = vector.load %arg7[%c64_69, %c15] : memref<224x128xf32, #tpu.memory_space<vmem>>, vector<16x1xf32>
    tpu.vector_store %arg7[%c64_69, %c15], %82 {strides = array<i32>} : memref<224x128xf32, #tpu.memory_space<vmem>>, vector<16x1xf32>,
    %84 = vector.extract_strided_slice %49 {offsets = [0, 9], sizes = [16, 7], strides = [1, 1]} : vector<16x16xf32> to vector<16x7xf32>
    %c64_70 = arith.constant 64 : index
    %c8_71 = arith.constant 8 : index
    %85 = vector.load %arg7[%c64_70, %c8_71] : memref<224x128xf32, #tpu.memory_space<vmem>>, vector<16x7xf32>
    tpu.vector_store %arg7[%c64_70, %c8_71], %84 {strides = array<i32>} : memref<224x128xf32, #tpu.memory_space<vmem>>, vector<16x7xf32>,
    %cst_72 = arith.constant 0.000000e+00 : f32
    %86 = vector.broadcast %cst_72 : f32 to vector<16x2xf32>
    %c80 = arith.constant 80 : index
    %c6_73 = arith.constant 6 : index
    %87 = vector.load %arg7[%c80, %c6_73] : memref<224x128xf32, #tpu.memory_space<vmem>>, vector<16x2xf32>
    tpu.vector_store %arg7[%c80, %c6_73], %86 {strides = array<i32>} : memref<224x128xf32, #tpu.memory_space<vmem>>, vector<16x2xf32>,
    %88 = vector.extract_strided_slice %49 {offsets = [0, 2], sizes = [16, 6], strides = [1, 1]} : vector<16x16xf32> to vector<16x6xf32>
    %c80_74 = arith.constant 80 : index
    %c0_75 = arith.constant 0 : index
    %89 = vector.load %arg7[%c80_74, %c0_75] : memref<224x128xf32, #tpu.memory_space<vmem>>, vector<16x6xf32>
    tpu.vector_store %arg7[%c80_74, %c0_75], %88 {strides = array<i32>} : memref<224x128xf32, #tpu.memory_space<vmem>>, vector<16x6xf32>,
    %cst_76 = arith.constant 0.000000e+00 : f32
    %90 = vector.broadcast %cst_76 : f32 to vector<16x2xf32>
    %c80_77 = arith.constant 80 : index
    %c14 = arith.constant 14 : index
    %91 = vector.load %arg7[%c80_77, %c14] : memref<224x128xf32, #tpu.memory_space<vmem>>, vector<16x2xf32>
    tpu.vector_store %arg7[%c80_77, %c14], %90 {strides = array<i32>} : memref<224x128xf32, #tpu.memory_space<vmem>>, vector<16x2xf32>,
    %92 = vector.extract_strided_slice %49 {offsets = [0, 10], sizes = [16, 6], strides = [1, 1]} : vector<16x16xf32> to vector<16x6xf32>
    %c80_78 = arith.constant 80 : index
    %c8_79 = arith.constant 8 : index
    %93 = vector.load %arg7[%c80_78, %c8_79] : memref<224x128xf32, #tpu.memory_space<vmem>>, vector<16x6xf32>
    tpu.vector_store %arg7[%c80_78, %c8_79], %92 {strides = array<i32>} : memref<224x128xf32, #tpu.memory_space<vmem>>, vector<16x6xf32>,
    %cst_80 = arith.constant 0.000000e+00 : f32
    %94 = vector.broadcast %cst_80 : f32 to vector<16x3xf32>
    %c96 = arith.constant 96 : index
    %c5_81 = arith.constant 5 : index
    %95 = vector.load %arg7[%c96, %c5_81] : memref<224x128xf32, #tpu.memory_space<vmem>>, vector<16x3xf32>
    tpu.vector_store %arg7[%c96, %c5_81], %94 {strides = array<i32>} : memref<224x128xf32, #tpu.memory_space<vmem>>, vector<16x3xf32>,
    %96 = vector.extract_strided_slice %49 {offsets = [0, 3], sizes = [16, 5], strides = [1, 1]} : vector<16x16xf32> to vector<16x5xf32>
    %c96_82 = arith.constant 96 : index
    %c0_83 = arith.constant 0 : index
    %97 = vector.load %arg7[%c96_82, %c0_83] : memref<224x128xf32, #tpu.memory_space<vmem>>, vector<16x5xf32>
    tpu.vector_store %arg7[%c96_82, %c0_83], %96 {strides = array<i32>} : memref<224x128xf32, #tpu.memory_space<vmem>>, vector<16x5xf32>,
    %cst_84 = arith.constant 0.000000e+00 : f32
    %98 = vector.broadcast %cst_84 : f32 to vector<16x3xf32>
    %c96_85 = arith.constant 96 : index
    %c13 = arith.constant 13 : index
    %99 = vector.load %arg7[%c96_85, %c13] : memref<224x128xf32, #tpu.memory_space<vmem>>, vector<16x3xf32>
    tpu.vector_store %arg7[%c96_85, %c13], %98 {strides = array<i32>} : memref<224x128xf32, #tpu.memory_space<vmem>>, vector<16x3xf32>,
    %100 = vector.extract_strided_slice %49 {offsets = [0, 11], sizes = [16, 5], strides = [1, 1]} : vector<16x16xf32> to vector<16x5xf32>
    %c96_86 = arith.constant 96 : index
    %c8_87 = arith.constant 8 : index
    %101 = vector.load %arg7[%c96_86, %c8_87] : memref<224x128xf32, #tpu.memory_space<vmem>>, vector<16x5xf32>
    tpu.vector_store %arg7[%c96_86, %c8_87], %100 {strides = array<i32>} : memref<224x128xf32, #tpu.memory_space<vmem>>, vector<16x5xf32>,
    %c0_88 = arith.constant 0 : index
    %c24 = arith.constant 24 : index
    %102 = vector.load %arg1[%c0_88, %c24] : memref<32x1295xf32, #tpu.memory_space<vmem>>, vector<32x112xf32>
    %c0_89 = arith.constant 0 : index
    %c0_90 = arith.constant 0 : index
    %103 = vector.load %arg7[%c0_89, %c0_90] : memref<224x128xf32, #tpu.memory_space<vmem>>, vector<112x16xf32>
    %cst_91 = arith.constant dense<0.000000e+00> : vector<32x16xf32>
    %104 = tpu.matmul %102, %103, %cst_91 {dimension_numbers = #tpu.dot_dimension_numbers<[1], [0], [0], [1], [0, 0, 1, 1], [], []>} : vector<32x112xf32>, vector<112x16xf32>, vector<32x16xf32> -> vector<32x16xf32>
    %c0_92 = arith.constant 0 : index
    %c136 = arith.constant 136 : index
    %105 = vector.load %arg1[%c0_92, %c136] : memref<32x1295xf32, #tpu.memory_space<vmem>>, vector<32x1xf32>
    %106 = vector.broadcast %105 : vector<32x1xf32> to vector<32x16xf32>
    %107 = arith.addf %104, %106 : vector<32x16xf32>
    %cst_93 = arith.constant 0.000000e+00 : f32
    %108 = vector.broadcast %cst_93 : f32 to vector<32x16xf32>
    %109 = arith.cmpf oge, %107, %108 : vector<32x16xf32>
    %cst_94 = arith.constant 2.000000e-01 : f32
    %110 = vector.broadcast %cst_94 : f32 to vector<32x16xf32>
    %111 = arith.mulf %110, %107 : vector<32x16xf32>
    %112 = arith.select %109, %107, %111 : vector<32x16xi1>, vector<32x16xf32>
    %cst_95 = arith.constant 0.000000e+00 : f32
    %113 = vector.broadcast %cst_95 : f32 to vector<32x3xf32>
    %c0_96 = arith.constant 0 : index
    %c0_97 = arith.constant 0 : index
    %114 = vector.load %arg7[%c0_96, %c0_97] : memref<224x128xf32, #tpu.memory_space<vmem>>, vector<32x3xf32>
    tpu.vector_store %arg7[%c0_96, %c0_97], %113 {strides = array<i32>} : memref<224x128xf32, #tpu.memory_space<vmem>>, vector<32x3xf32>,
    %115 = vector.extract_strided_slice %112 {offsets = [0, 0], sizes = [32, 5], strides = [1, 1]} : vector<32x16xf32> to vector<32x5xf32>
    %c0_98 = arith.constant 0 : index
    %c3_99 = arith.constant 3 : index
    %116 = vector.load %arg7[%c0_98, %c3_99] : memref<224x128xf32, #tpu.memory_space<vmem>>, vector<32x5xf32>
    tpu.vector_store %arg7[%c0_98, %c3_99], %115 {strides = array<i32>} : memref<224x128xf32, #tpu.memory_space<vmem>>, vector<32x5xf32>,
    %cst_100 = arith.constant 0.000000e+00 : f32
    %117 = vector.broadcast %cst_100 : f32 to vector<32x3xf32>
    %c0_101 = arith.constant 0 : index
    %c8_102 = arith.constant 8 : index
    %118 = vector.load %arg7[%c0_101, %c8_102] : memref<224x128xf32, #tpu.memory_space<vmem>>, vector<32x3xf32>
    tpu.vector_store %arg7[%c0_101, %c8_102], %117 {strides = array<i32>} : memref<224x128xf32, #tpu.memory_space<vmem>>, vector<32x3xf32>,
    %119 = vector.extract_strided_slice %112 {offsets = [0, 8], sizes = [32, 5], strides = [1, 1]} : vector<32x16xf32> to vector<32x5xf32>
    %c0_103 = arith.constant 0 : index
    %c11_104 = arith.constant 11 : index
    %120 = vector.load %arg7[%c0_103, %c11_104] : memref<224x128xf32, #tpu.memory_space<vmem>>, vector<32x5xf32>
    tpu.vector_store %arg7[%c0_103, %c11_104], %119 {strides = array<i32>} : memref<224x128xf32, #tpu.memory_space<vmem>>, vector<32x5xf32>,
    %cst_105 = arith.constant 0.000000e+00 : f32
    %121 = vector.broadcast %cst_105 : f32 to vector<32x2xf32>
    %c32_106 = arith.constant 32 : index
    %c0_107 = arith.constant 0 : index
    %122 = vector.load %arg7[%c32_106, %c0_107] : memref<224x128xf32, #tpu.memory_space<vmem>>, vector<32x2xf32>
    tpu.vector_store %arg7[%c32_106, %c0_107], %121 {strides = array<i32>} : memref<224x128xf32, #tpu.memory_space<vmem>>, vector<32x2xf32>,
    %123 = vector.extract_strided_slice %112 {offsets = [0, 0], sizes = [32, 6], strides = [1, 1]} : vector<32x16xf32> to vector<32x6xf32>
    %c32_108 = arith.constant 32 : index
    %c2_109 = arith.constant 2 : index
    %124 = vector.load %arg7[%c32_108, %c2_109] : memref<224x128xf32, #tpu.memory_space<vmem>>, vector<32x6xf32>
    tpu.vector_store %arg7[%c32_108, %c2_109], %123 {strides = array<i32>} : memref<224x128xf32, #tpu.memory_space<vmem>>, vector<32x6xf32>,
    %cst_110 = arith.constant 0.000000e+00 : f32
    %125 = vector.broadcast %cst_110 : f32 to vector<32x2xf32>
    %c32_111 = arith.constant 32 : index
    %c8_112 = arith.constant 8 : index
    %126 = vector.load %arg7[%c32_111, %c8_112] : memref<224x128xf32, #tpu.memory_space<vmem>>, vector<32x2xf32>
    tpu.vector_store %arg7[%c32_111, %c8_112], %125 {strides = array<i32>} : memref<224x128xf32, #tpu.memory_space<vmem>>, vector<32x2xf32>,
    %127 = vector.extract_strided_slice %112 {offsets = [0, 8], sizes = [32, 6], strides = [1, 1]} : vector<32x16xf32> to vector<32x6xf32>
    %c32_113 = arith.constant 32 : index
    %c10_114 = arith.constant 10 : index
    %128 = vector.load %arg7[%c32_113, %c10_114] : memref<224x128xf32, #tpu.memory_space<vmem>>, vector<32x6xf32>
    tpu.vector_store %arg7[%c32_113, %c10_114], %127 {strides = array<i32>} : memref<224x128xf32, #tpu.memory_space<vmem>>, vector<32x6xf32>,
    %cst_115 = arith.constant 0.000000e+00 : f32
    %129 = vector.broadcast %cst_115 : f32 to vector<32x1xf32>
    %c64_116 = arith.constant 64 : index
    %c0_117 = arith.constant 0 : index
    %130 = vector.load %arg7[%c64_116, %c0_117] : memref<224x128xf32, #tpu.memory_space<vmem>>, vector<32x1xf32>
    tpu.vector_store %arg7[%c64_116, %c0_117], %129 {strides = array<i32>} : memref<224x128xf32, #tpu.memory_space<vmem>>, vector<32x1xf32>,
    %131 = vector.extract_strided_slice %112 {offsets = [0, 0], sizes = [32, 7], strides = [1, 1]} : vector<32x16xf32> to vector<32x7xf32>
    %c64_118 = arith.constant 64 : index
    %c1_119 = arith.constant 1 : index
    %132 = vector.load %arg7[%c64_118, %c1_119] : memref<224x128xf32, #tpu.memory_space<vmem>>, vector<32x7xf32>
    tpu.vector_store %arg7[%c64_118, %c1_119], %131 {strides = array<i32>} : memref<224x128xf32, #tpu.memory_space<vmem>>, vector<32x7xf32>,
    %cst_120 = arith.constant 0.000000e+00 : f32
    %133 = vector.broadcast %cst_120 : f32 to vector<32x1xf32>
    %c64_121 = arith.constant 64 : index
    %c8_122 = arith.constant 8 : index
    %134 = vector.load %arg7[%c64_121, %c8_122] : memref<224x128xf32, #tpu.memory_space<vmem>>, vector<32x1xf32>
    tpu.vector_store %arg7[%c64_121, %c8_122], %133 {strides = array<i32>} : memref<224x128xf32, #tpu.memory_space<vmem>>, vector<32x1xf32>,
    %135 = vector.extract_strided_slice %112 {offsets = [0, 8], sizes = [32, 7], strides = [1, 1]} : vector<32x16xf32> to vector<32x7xf32>
    %c64_123 = arith.constant 64 : index
    %c9_124 = arith.constant 9 : index
    %136 = vector.load %arg7[%c64_123, %c9_124] : memref<224x128xf32, #tpu.memory_space<vmem>>, vector<32x7xf32>
    tpu.vector_store %arg7[%c64_123, %c9_124], %135 {strides = array<i32>} : memref<224x128xf32, #tpu.memory_space<vmem>>, vector<32x7xf32>,
    %137 = vector.extract_strided_slice %112 {offsets = [0, 0], sizes = [32, 8], strides = [1, 1]} : vector<32x16xf32> to vector<32x8xf32>
    %c96_125 = arith.constant 96 : index
    %c0_126 = arith.constant 0 : index
    %138 = vector.load %arg7[%c96_125, %c0_126] : memref<224x128xf32, #tpu.memory_space<vmem>>, vector<32x8xf32>
    tpu.vector_store %arg7[%c96_125, %c0_126], %137 {strides = array<i32>} : memref<224x128xf32, #tpu.memory_space<vmem>>, vector<32x8xf32>,
    %139 = vector.extract_strided_slice %112 {offsets = [0, 8], sizes = [32, 8], strides = [1, 1]} : vector<32x16xf32> to vector<32x8xf32>
    %c96_127 = arith.constant 96 : index
    %c8_128 = arith.constant 8 : index
    %140 = vector.load %arg7[%c96_127, %c8_128] : memref<224x128xf32, #tpu.memory_space<vmem>>, vector<32x8xf32>
    tpu.vector_store %arg7[%c96_127, %c8_128], %139 {strides = array<i32>} : memref<224x128xf32, #tpu.memory_space<vmem>>, vector<32x8xf32>,
    %cst_129 = arith.constant 0.000000e+00 : f32
    %141 = vector.broadcast %cst_129 : f32 to vector<32x1xf32>
    %c128 = arith.constant 128 : index
    %c7_130 = arith.constant 7 : index
    %142 = vector.load %arg7[%c128, %c7_130] : memref<224x128xf32, #tpu.memory_space<vmem>>, vector<32x1xf32>
    tpu.vector_store %arg7[%c128, %c7_130], %141 {strides = array<i32>} : memref<224x128xf32, #tpu.memory_space<vmem>>, vector<32x1xf32>,
    %143 = vector.extract_strided_slice %112 {offsets = [0, 1], sizes = [32, 7], strides = [1, 1]} : vector<32x16xf32> to vector<32x7xf32>
    %c128_131 = arith.constant 128 : index
    %c0_132 = arith.constant 0 : index
    %144 = vector.load %arg7[%c128_131, %c0_132] : memref<224x128xf32, #tpu.memory_space<vmem>>, vector<32x7xf32>
    tpu.vector_store %arg7[%c128_131, %c0_132], %143 {strides = array<i32>} : memref<224x128xf32, #tpu.memory_space<vmem>>, vector<32x7xf32>,
    %cst_133 = arith.constant 0.000000e+00 : f32
    %145 = vector.broadcast %cst_133 : f32 to vector<32x1xf32>
    %c128_134 = arith.constant 128 : index
    %c15_135 = arith.constant 15 : index
    %146 = vector.load %arg7[%c128_134, %c15_135] : memref<224x128xf32, #tpu.memory_space<vmem>>, vector<32x1xf32>
    tpu.vector_store %arg7[%c128_134, %c15_135], %145 {strides = array<i32>} : memref<224x128xf32, #tpu.memory_space<vmem>>, vector<32x1xf32>,
    %147 = vector.extract_strided_slice %112 {offsets = [0, 9], sizes = [32, 7], strides = [1, 1]} : vector<32x16xf32> to vector<32x7xf32>
    %c128_136 = arith.constant 128 : index
    %c8_137 = arith.constant 8 : index
    %148 = vector.load %arg7[%c128_136, %c8_137] : memref<224x128xf32, #tpu.memory_space<vmem>>, vector<32x7xf32>
    tpu.vector_store %arg7[%c128_136, %c8_137], %147 {strides = array<i32>} : memref<224x128xf32, #tpu.memory_space<vmem>>, vector<32x7xf32>,
    %cst_138 = arith.constant 0.000000e+00 : f32
    %149 = vector.broadcast %cst_138 : f32 to vector<32x2xf32>
    %c160 = arith.constant 160 : index
    %c6_139 = arith.constant 6 : index
    %150 = vector.load %arg7[%c160, %c6_139] : memref<224x128xf32, #tpu.memory_space<vmem>>, vector<32x2xf32>
    tpu.vector_store %arg7[%c160, %c6_139], %149 {strides = array<i32>} : memref<224x128xf32, #tpu.memory_space<vmem>>, vector<32x2xf32>,
    %151 = vector.extract_strided_slice %112 {offsets = [0, 2], sizes = [32, 6], strides = [1, 1]} : vector<32x16xf32> to vector<32x6xf32>
    %c160_140 = arith.constant 160 : index
    %c0_141 = arith.constant 0 : index
    %152 = vector.load %arg7[%c160_140, %c0_141] : memref<224x128xf32, #tpu.memory_space<vmem>>, vector<32x6xf32>
    tpu.vector_store %arg7[%c160_140, %c0_141], %151 {strides = array<i32>} : memref<224x128xf32, #tpu.memory_space<vmem>>, vector<32x6xf32>,
    %cst_142 = arith.constant 0.000000e+00 : f32
    %153 = vector.broadcast %cst_142 : f32 to vector<32x2xf32>
    %c160_143 = arith.constant 160 : index
    %c14_144 = arith.constant 14 : index
    %154 = vector.load %arg7[%c160_143, %c14_144] : memref<224x128xf32, #tpu.memory_space<vmem>>, vector<32x2xf32>
    tpu.vector_store %arg7[%c160_143, %c14_144], %153 {strides = array<i32>} : memref<224x128xf32, #tpu.memory_space<vmem>>, vector<32x2xf32>,
    %155 = vector.extract_strided_slice %112 {offsets = [0, 10], sizes = [32, 6], strides = [1, 1]} : vector<32x16xf32> to vector<32x6xf32>
    %c160_145 = arith.constant 160 : index
    %c8_146 = arith.constant 8 : index
    %156 = vector.load %arg7[%c160_145, %c8_146] : memref<224x128xf32, #tpu.memory_space<vmem>>, vector<32x6xf32>
    tpu.vector_store %arg7[%c160_145, %c8_146], %155 {strides = array<i32>} : memref<224x128xf32, #tpu.memory_space<vmem>>, vector<32x6xf32>,
    %cst_147 = arith.constant 0.000000e+00 : f32
    %157 = vector.broadcast %cst_147 : f32 to vector<32x3xf32>
    %c192 = arith.constant 192 : index
    %c5_148 = arith.constant 5 : index
    %158 = vector.load %arg7[%c192, %c5_148] : memref<224x128xf32, #tpu.memory_space<vmem>>, vector<32x3xf32>
    tpu.vector_store %arg7[%c192, %c5_148], %157 {strides = array<i32>} : memref<224x128xf32, #tpu.memory_space<vmem>>, vector<32x3xf32>,
    %159 = vector.extract_strided_slice %112 {offsets = [0, 3], sizes = [32, 5], strides = [1, 1]} : vector<32x16xf32> to vector<32x5xf32>
    %c192_149 = arith.constant 192 : index
    %c0_150 = arith.constant 0 : index
    %160 = vector.load %arg7[%c192_149, %c0_150] : memref<224x128xf32, #tpu.memory_space<vmem>>, vector<32x5xf32>
    tpu.vector_store %arg7[%c192_149, %c0_150], %159 {strides = array<i32>} : memref<224x128xf32, #tpu.memory_space<vmem>>, vector<32x5xf32>,
    %cst_151 = arith.constant 0.000000e+00 : f32
    %161 = vector.broadcast %cst_151 : f32 to vector<32x3xf32>
    %c192_152 = arith.constant 192 : index
    %c13_153 = arith.constant 13 : index
    %162 = vector.load %arg7[%c192_152, %c13_153] : memref<224x128xf32, #tpu.memory_space<vmem>>, vector<32x3xf32>
    tpu.vector_store %arg7[%c192_152, %c13_153], %161 {strides = array<i32>} : memref<224x128xf32, #tpu.memory_space<vmem>>, vector<32x3xf32>,
    %163 = vector.extract_strided_slice %112 {offsets = [0, 11], sizes = [32, 5], strides = [1, 1]} : vector<32x16xf32> to vector<32x5xf32>
    %c192_154 = arith.constant 192 : index
    %c8_155 = arith.constant 8 : index
    %164 = vector.load %arg7[%c192_154, %c8_155] : memref<224x128xf32, #tpu.memory_space<vmem>>, vector<32x5xf32>
    tpu.vector_store %arg7[%c192_154, %c8_155], %163 {strides = array<i32>} : memref<224x128xf32, #tpu.memory_space<vmem>>, vector<32x5xf32>,
    %c0_156 = arith.constant 0 : index
    %c137 = arith.constant 137 : index
    %165 = vector.load %arg1[%c0_156, %c137] : memref<32x1295xf32, #tpu.memory_space<vmem>>, vector<32x128xf32>
    %c0_157 = arith.constant 0 : index
    %c0_158 = arith.constant 0 : index
    %166 = vector.load %arg7[%c0_157, %c0_158] : memref<224x128xf32, #tpu.memory_space<vmem>>, vector<128x16xf32>
    %cst_159 = arith.constant dense<0.000000e+00> : vector<32x16xf32>
    %167 = tpu.matmul %165, %166, %cst_159 {dimension_numbers = #tpu.dot_dimension_numbers<[1], [0], [0], [1], [0, 0, 1, 1], [], []>} : vector<32x128xf32>, vector<128x16xf32>, vector<32x16xf32> -> vector<32x16xf32>
    %c0_160 = arith.constant 0 : index
    %c265 = arith.constant 265 : index
    %168 = vector.load %arg1[%c0_160, %c265] : memref<32x1295xf32, #tpu.memory_space<vmem>>, vector<32x96xf32>
    %c128_161 = arith.constant 128 : index
    %c0_162 = arith.constant 0 : index
    %169 = vector.load %arg7[%c128_161, %c0_162] : memref<224x128xf32, #tpu.memory_space<vmem>>, vector<96x16xf32>
    %cst_163 = arith.constant dense<0.000000e+00> : vector<32x16xf32>
    %170 = tpu.matmul %168, %169, %cst_163 {dimension_numbers = #tpu.dot_dimension_numbers<[1], [0], [0], [1], [0, 0, 1, 1], [], []>} : vector<32x96xf32>, vector<96x16xf32>, vector<32x16xf32> -> vector<32x16xf32>
    %171 = arith.addf %167, %170 : vector<32x16xf32>
    %c0_164 = arith.constant 0 : index
    %c361 = arith.constant 361 : index
    %172 = vector.load %arg1[%c0_164, %c361] : memref<32x1295xf32, #tpu.memory_space<vmem>>, vector<32x1xf32>
    %173 = vector.broadcast %172 : vector<32x1xf32> to vector<32x16xf32>
    %174 = arith.addf %171, %173 : vector<32x16xf32>
    %c0_165 = arith.constant 0 : index
    %c362 = arith.constant 362 : index
    %175 = vector.load %arg1[%c0_165, %c362] : memref<32x1295xf32, #tpu.memory_space<vmem>>, vector<32x32xf32>
    %cst_166 = arith.constant dense<0.000000e+00> : vector<32x16xf32>
    %176 = tpu.matmul %175, %7, %cst_166 {dimension_numbers = #tpu.dot_dimension_numbers<[1], [0], [0], [1], [0, 0, 1, 1], [], []>} : vector<32x32xf32>, vector<32x16xf32>, vector<32x16xf32> -> vector<32x16xf32>
    %c0_167 = arith.constant 0 : index
    %c394 = arith.constant 394 : index
    %177 = vector.load %arg1[%c0_167, %c394] : memref<32x1295xf32, #tpu.memory_space<vmem>>, vector<32x32xf32>
    %cst_168 = arith.constant dense<0.000000e+00> : vector<32x16xf32>
    %178 = tpu.matmul %177, %174, %cst_168 {dimension_numbers = #tpu.dot_dimension_numbers<[1], [0], [0], [1], [0, 0, 1, 1], [], []>} : vector<32x32xf32>, vector<32x16xf32>, vector<32x16xf32> -> vector<32x16xf32>
    %179 = arith.addf %176, %178 : vector<32x16xf32>
    %c0_169 = arith.constant 0 : index
    %c426 = arith.constant 426 : index
    %180 = vector.load %arg1[%c0_169, %c426] : memref<32x1295xf32, #tpu.memory_space<vmem>>, vector<32x1xf32>
    %181 = vector.broadcast %180 : vector<32x1xf32> to vector<32x16xf32>
    %182 = arith.addf %179, %181 : vector<32x16xf32>
    %cst_170 = arith.constant 0.000000e+00 : f32
    %183 = vector.broadcast %cst_170 : f32 to vector<32x16xf32>
    %184 = arith.cmpf oge, %182, %183 : vector<32x16xf32>
    %cst_171 = arith.constant 2.000000e-01 : f32
    %185 = vector.broadcast %cst_171 : f32 to vector<32x16xf32>
    %186 = arith.mulf %185, %182 : vector<32x16xf32>
    %187 = arith.select %184, %182, %186 : vector<32x16xi1>, vector<32x16xf32>
    %c0_172 = arith.constant 0 : index
    %c427 = arith.constant 427 : index
    %188 = vector.load %arg1[%c0_172, %c427] : memref<32x1295xf32, #tpu.memory_space<vmem>>, vector<32x32xf32>
    %cst_173 = arith.constant dense<0.000000e+00> : vector<32x16xf32>
    %189 = tpu.matmul %188, %187, %cst_173 {dimension_numbers = #tpu.dot_dimension_numbers<[1], [0], [0], [1], [0, 0, 1, 1], [], []>} : vector<32x32xf32>, vector<32x16xf32>, vector<32x16xf32> -> vector<32x16xf32>
    %c0_174 = arith.constant 0 : index
    %c459 = arith.constant 459 : index
    %190 = vector.load %arg1[%c0_174, %c459] : memref<32x1295xf32, #tpu.memory_space<vmem>>, vector<32x1xf32>
    %191 = vector.broadcast %190 : vector<32x1xf32> to vector<32x16xf32>
    %192 = arith.addf %189, %191 : vector<32x16xf32>
    %cst_175 = arith.constant 0.000000e+00 : f32
    %193 = vector.broadcast %cst_175 : f32 to vector<32x16xf32>
    %194 = arith.cmpf oge, %192, %193 : vector<32x16xf32>
    %cst_176 = arith.constant 2.000000e-01 : f32
    %195 = vector.broadcast %cst_176 : f32 to vector<32x16xf32>
    %196 = arith.mulf %195, %192 : vector<32x16xf32>
    %197 = arith.select %194, %192, %196 : vector<32x16xi1>, vector<32x16xf32>
    %c0_177 = arith.constant 0 : index
    %c460 = arith.constant 460 : index
    %198 = vector.load %arg1[%c0_177, %c460] : memref<32x1295xf32, #tpu.memory_space<vmem>>, vector<32x32xf32>
    %cst_178 = arith.constant dense<0.000000e+00> : vector<32x16xf32>
    %199 = tpu.matmul %198, %197, %cst_178 {dimension_numbers = #tpu.dot_dimension_numbers<[1], [0], [0], [1], [0, 0, 1, 1], [], []>} : vector<32x32xf32>, vector<32x16xf32>, vector<32x16xf32> -> vector<32x16xf32>
    %c0_179 = arith.constant 0 : index
    %c492 = arith.constant 492 : index
    %200 = vector.load %arg1[%c0_179, %c492] : memref<32x1295xf32, #tpu.memory_space<vmem>>, vector<32x1xf32>
    %201 = vector.broadcast %200 : vector<32x1xf32> to vector<32x16xf32>
    %202 = arith.addf %199, %201 : vector<32x16xf32>
    %c0_180 = arith.constant 0 : index
    %c493 = arith.constant 493 : index
    %203 = vector.load %arg1[%c0_180, %c493] : memref<32x1295xf32, #tpu.memory_space<vmem>>, vector<32x32xf32>
    %cst_181 = arith.constant dense<0.000000e+00> : vector<32x16xf32>
    %204 = tpu.matmul %203, %202, %cst_181 {dimension_numbers = #tpu.dot_dimension_numbers<[1], [0], [0], [1], [0, 0, 1, 1], [], []>} : vector<32x32xf32>, vector<32x16xf32>, vector<32x16xf32> -> vector<32x16xf32>
    %c0_182 = arith.constant 0 : index
    %c0_183 = arith.constant 0 : index
    %205 = vector.load %arg2[%c0_182, %c0_183] : memref<32x1xf32, #tpu.memory_space<vmem>>, vector<32x1xf32>
    %206 = vector.broadcast %205 : vector<32x1xf32> to vector<32x16xf32>
    %207 = arith.addf %204, %206 : vector<32x16xf32>
    %cst_184 = arith.constant 0.000000e+00 : f32
    %208 = vector.broadcast %cst_184 : f32 to vector<32x16xf32>
    %209 = arith.cmpf oge, %207, %208 : vector<32x16xf32>
    %cst_185 = arith.constant 2.000000e-01 : f32
    %210 = vector.broadcast %cst_185 : f32 to vector<32x16xf32>
    %211 = arith.mulf %210, %207 : vector<32x16xf32>
    %212 = arith.select %209, %207, %211 : vector<32x16xi1>, vector<32x16xf32>
    %c0_186 = arith.constant 0 : index
    %c525 = arith.constant 525 : index
    %213 = vector.load %arg1[%c0_186, %c525] : memref<32x1295xf32, #tpu.memory_space<vmem>>, vector<32x32xf32>
    %cst_187 = arith.constant dense<0.000000e+00> : vector<32x16xf32>
    %214 = tpu.matmul %213, %212, %cst_187 {dimension_numbers = #tpu.dot_dimension_numbers<[1], [0], [0], [1], [0, 0, 1, 1], [], []>} : vector<32x32xf32>, vector<32x16xf32>, vector<32x16xf32> -> vector<32x16xf32>
    %c0_188 = arith.constant 0 : index
    %c557 = arith.constant 557 : index
    %215 = vector.load %arg1[%c0_188, %c557] : memref<32x1295xf32, #tpu.memory_space<vmem>>, vector<32x1xf32>
    %216 = vector.broadcast %215 : vector<32x1xf32> to vector<32x16xf32>
    %217 = arith.addf %214, %216 : vector<32x16xf32>
    %cst_189 = arith.constant 0.000000e+00 : f32
    %218 = vector.broadcast %cst_189 : f32 to vector<32x16xf32>
    %219 = arith.cmpf oge, %217, %218 : vector<32x16xf32>
    %cst_190 = arith.constant 2.000000e-01 : f32
    %220 = vector.broadcast %cst_190 : f32 to vector<32x16xf32>
    %221 = arith.mulf %220, %217 : vector<32x16xf32>
    %222 = arith.select %219, %217, %221 : vector<32x16xi1>, vector<32x16xf32>
    %c0_191 = arith.constant 0 : index
    %c558 = arith.constant 558 : index
    %223 = vector.load %arg1[%c0_191, %c558] : memref<32x1295xf32, #tpu.memory_space<vmem>>, vector<32x32xf32>
    %cst_192 = arith.constant dense<0.000000e+00> : vector<32x16xf32>
    %224 = tpu.matmul %223, %222, %cst_192 {dimension_numbers = #tpu.dot_dimension_numbers<[1], [0], [0], [1], [0, 0, 1, 1], [], []>} : vector<32x32xf32>, vector<32x16xf32>, vector<32x16xf32> -> vector<32x16xf32>
    %c0_193 = arith.constant 0 : index
    %c590 = arith.constant 590 : index
    %225 = vector.load %arg1[%c0_193, %c590] : memref<32x1295xf32, #tpu.memory_space<vmem>>, vector<32x1xf32>
    %226 = vector.broadcast %225 : vector<32x1xf32> to vector<32x16xf32>
    %227 = arith.addf %224, %226 : vector<32x16xf32>
    %cst_194 = arith.constant 0.000000e+00 : f32
    %228 = vector.broadcast %cst_194 : f32 to vector<32x1xf32>
    %c0_195 = arith.constant 0 : index
    %c0_196 = arith.constant 0 : index
    %229 = vector.load %arg7[%c0_195, %c0_196] : memref<224x128xf32, #tpu.memory_space<vmem>>, vector<32x1xf32>
    tpu.vector_store %arg7[%c0_195, %c0_196], %228 {strides = array<i32>} : memref<224x128xf32, #tpu.memory_space<vmem>>, vector<32x1xf32>,
    %230 = vector.extract_strided_slice %227 {offsets = [0, 0], sizes = [32, 7], strides = [1, 1]} : vector<32x16xf32> to vector<32x7xf32>
    %c0_197 = arith.constant 0 : index
    %c1_198 = arith.constant 1 : index
    %231 = vector.load %arg7[%c0_197, %c1_198] : memref<224x128xf32, #tpu.memory_space<vmem>>, vector<32x7xf32>
    tpu.vector_store %arg7[%c0_197, %c1_198], %230 {strides = array<i32>} : memref<224x128xf32, #tpu.memory_space<vmem>>, vector<32x7xf32>,
    %cst_199 = arith.constant 0.000000e+00 : f32
    %232 = vector.broadcast %cst_199 : f32 to vector<32x1xf32>
    %c0_200 = arith.constant 0 : index
    %c8_201 = arith.constant 8 : index
    %233 = vector.load %arg7[%c0_200, %c8_201] : memref<224x128xf32, #tpu.memory_space<vmem>>, vector<32x1xf32>
    tpu.vector_store %arg7[%c0_200, %c8_201], %232 {strides = array<i32>} : memref<224x128xf32, #tpu.memory_space<vmem>>, vector<32x1xf32>,
    %234 = vector.extract_strided_slice %227 {offsets = [0, 8], sizes = [32, 7], strides = [1, 1]} : vector<32x16xf32> to vector<32x7xf32>
    %c0_202 = arith.constant 0 : index
    %c9_203 = arith.constant 9 : index
    %235 = vector.load %arg7[%c0_202, %c9_203] : memref<224x128xf32, #tpu.memory_space<vmem>>, vector<32x7xf32>
    tpu.vector_store %arg7[%c0_202, %c9_203], %234 {strides = array<i32>} : memref<224x128xf32, #tpu.memory_space<vmem>>, vector<32x7xf32>,
    %236 = vector.extract_strided_slice %227 {offsets = [0, 0], sizes = [32, 8], strides = [1, 1]} : vector<32x16xf32> to vector<32x8xf32>
    %c32_204 = arith.constant 32 : index
    %c0_205 = arith.constant 0 : index
    %237 = vector.load %arg7[%c32_204, %c0_205] : memref<224x128xf32, #tpu.memory_space<vmem>>, vector<32x8xf32>
    tpu.vector_store %arg7[%c32_204, %c0_205], %236 {strides = array<i32>} : memref<224x128xf32, #tpu.memory_space<vmem>>, vector<32x8xf32>,
    %238 = vector.extract_strided_slice %227 {offsets = [0, 8], sizes = [32, 8], strides = [1, 1]} : vector<32x16xf32> to vector<32x8xf32>
    %c32_206 = arith.constant 32 : index
    %c8_207 = arith.constant 8 : index
    %239 = vector.load %arg7[%c32_206, %c8_207] : memref<224x128xf32, #tpu.memory_space<vmem>>, vector<32x8xf32>
    tpu.vector_store %arg7[%c32_206, %c8_207], %238 {strides = array<i32>} : memref<224x128xf32, #tpu.memory_space<vmem>>, vector<32x8xf32>,
    %cst_208 = arith.constant 0.000000e+00 : f32
    %240 = vector.broadcast %cst_208 : f32 to vector<32x1xf32>
    %c64_209 = arith.constant 64 : index
    %c7_210 = arith.constant 7 : index
    %241 = vector.load %arg7[%c64_209, %c7_210] : memref<224x128xf32, #tpu.memory_space<vmem>>, vector<32x1xf32>
    tpu.vector_store %arg7[%c64_209, %c7_210], %240 {strides = array<i32>} : memref<224x128xf32, #tpu.memory_space<vmem>>, vector<32x1xf32>,
    %242 = vector.extract_strided_slice %227 {offsets = [0, 1], sizes = [32, 7], strides = [1, 1]} : vector<32x16xf32> to vector<32x7xf32>
    %c64_211 = arith.constant 64 : index
    %c0_212 = arith.constant 0 : index
    %243 = vector.load %arg7[%c64_211, %c0_212] : memref<224x128xf32, #tpu.memory_space<vmem>>, vector<32x7xf32>
    tpu.vector_store %arg7[%c64_211, %c0_212], %242 {strides = array<i32>} : memref<224x128xf32, #tpu.memory_space<vmem>>, vector<32x7xf32>,
    %cst_213 = arith.constant 0.000000e+00 : f32
    %244 = vector.broadcast %cst_213 : f32 to vector<32x1xf32>
    %c64_214 = arith.constant 64 : index
    %c15_215 = arith.constant 15 : index
    %245 = vector.load %arg7[%c64_214, %c15_215] : memref<224x128xf32, #tpu.memory_space<vmem>>, vector<32x1xf32>
    tpu.vector_store %arg7[%c64_214, %c15_215], %244 {strides = array<i32>} : memref<224x128xf32, #tpu.memory_space<vmem>>, vector<32x1xf32>,
    %246 = vector.extract_strided_slice %227 {offsets = [0, 9], sizes = [32, 7], strides = [1, 1]} : vector<32x16xf32> to vector<32x7xf32>
    %c64_216 = arith.constant 64 : index
    %c8_217 = arith.constant 8 : index
    %247 = vector.load %arg7[%c64_216, %c8_217] : memref<224x128xf32, #tpu.memory_space<vmem>>, vector<32x7xf32>
    tpu.vector_store %arg7[%c64_216, %c8_217], %246 {strides = array<i32>} : memref<224x128xf32, #tpu.memory_space<vmem>>, vector<32x7xf32>,
    %c0_218 = arith.constant 0 : index
    %c591 = arith.constant 591 : index
    %248 = vector.load %arg1[%c0_218, %c591] : memref<32x1295xf32, #tpu.memory_space<vmem>>, vector<32x96xf32>
    %c0_219 = arith.constant 0 : index
    %c0_220 = arith.constant 0 : index
    %249 = vector.load %arg7[%c0_219, %c0_220] : memref<224x128xf32, #tpu.memory_space<vmem>>, vector<96x16xf32>
    %cst_221 = arith.constant dense<0.000000e+00> : vector<32x16xf32>
    %250 = tpu.matmul %248, %249, %cst_221 {dimension_numbers = #tpu.dot_dimension_numbers<[1], [0], [0], [1], [0, 0, 1, 1], [], []>} : vector<32x96xf32>, vector<96x16xf32>, vector<32x16xf32> -> vector<32x16xf32>
    %c0_222 = arith.constant 0 : index
    %c687 = arith.constant 687 : index
    %251 = vector.load %arg1[%c0_222, %c687] : memref<32x1295xf32, #tpu.memory_space<vmem>>, vector<32x1xf32>
    %252 = vector.broadcast %251 : vector<32x1xf32> to vector<32x16xf32>
    %253 = arith.addf %250, %252 : vector<32x16xf32>
    %254 = arith.addf %253, %227 : vector<32x16xf32>
    %cst_223 = arith.constant 0.000000e+00 : f32
    %255 = vector.broadcast %cst_223 : f32 to vector<32x16xf32>
    %256 = arith.cmpf oge, %254, %255 : vector<32x16xf32>
    %cst_224 = arith.constant 2.000000e-01 : f32
    %257 = vector.broadcast %cst_224 : f32 to vector<32x16xf32>
    %258 = arith.mulf %257, %254 : vector<32x16xf32>
    %259 = arith.select %256, %254, %258 : vector<32x16xi1>, vector<32x16xf32>
    %cst_225 = arith.constant 0.000000e+00 : f32
    %260 = vector.broadcast %cst_225 : f32 to vector<32x3xf32>
    %c0_226 = arith.constant 0 : index
    %c0_227 = arith.constant 0 : index
    %261 = vector.load %arg7[%c0_226, %c0_227] : memref<224x128xf32, #tpu.memory_space<vmem>>, vector<32x3xf32>
    tpu.vector_store %arg7[%c0_226, %c0_227], %260 {strides = array<i32>} : memref<224x128xf32, #tpu.memory_space<vmem>>, vector<32x3xf32>,
    %262 = vector.extract_strided_slice %259 {offsets = [0, 0], sizes = [32, 5], strides = [1, 1]} : vector<32x16xf32> to vector<32x5xf32>
    %c0_228 = arith.constant 0 : index
    %c3_229 = arith.constant 3 : index
    %263 = vector.load %arg7[%c0_228, %c3_229] : memref<224x128xf32, #tpu.memory_space<vmem>>, vector<32x5xf32>
    tpu.vector_store %arg7[%c0_228, %c3_229], %262 {strides = array<i32>} : memref<224x128xf32, #tpu.memory_space<vmem>>, vector<32x5xf32>,
    %cst_230 = arith.constant 0.000000e+00 : f32
    %264 = vector.broadcast %cst_230 : f32 to vector<32x3xf32>
    %c0_231 = arith.constant 0 : index
    %c8_232 = arith.constant 8 : index
    %265 = vector.load %arg7[%c0_231, %c8_232] : memref<224x128xf32, #tpu.memory_space<vmem>>, vector<32x3xf32>
    tpu.vector_store %arg7[%c0_231, %c8_232], %264 {strides = array<i32>} : memref<224x128xf32, #tpu.memory_space<vmem>>, vector<32x3xf32>,
    %266 = vector.extract_strided_slice %259 {offsets = [0, 8], sizes = [32, 5], strides = [1, 1]} : vector<32x16xf32> to vector<32x5xf32>
    %c0_233 = arith.constant 0 : index
    %c11_234 = arith.constant 11 : index
    %267 = vector.load %arg7[%c0_233, %c11_234] : memref<224x128xf32, #tpu.memory_space<vmem>>, vector<32x5xf32>
    tpu.vector_store %arg7[%c0_233, %c11_234], %266 {strides = array<i32>} : memref<224x128xf32, #tpu.memory_space<vmem>>, vector<32x5xf32>,
    %268 = vector.extract_strided_slice %259 {offsets = [0, 0], sizes = [32, 8], strides = [1, 1]} : vector<32x16xf32> to vector<32x8xf32>
    %c32_235 = arith.constant 32 : index
    %c0_236 = arith.constant 0 : index
    %269 = vector.load %arg7[%c32_235, %c0_236] : memref<224x128xf32, #tpu.memory_space<vmem>>, vector<32x8xf32>
    tpu.vector_store %arg7[%c32_235, %c0_236], %268 {strides = array<i32>} : memref<224x128xf32, #tpu.memory_space<vmem>>, vector<32x8xf32>,
    %270 = vector.extract_strided_slice %259 {offsets = [0, 8], sizes = [32, 8], strides = [1, 1]} : vector<32x16xf32> to vector<32x8xf32>
    %c32_237 = arith.constant 32 : index
    %c8_238 = arith.constant 8 : index
    %271 = vector.load %arg7[%c32_237, %c8_238] : memref<224x128xf32, #tpu.memory_space<vmem>>, vector<32x8xf32>
    tpu.vector_store %arg7[%c32_237, %c8_238], %270 {strides = array<i32>} : memref<224x128xf32, #tpu.memory_space<vmem>>, vector<32x8xf32>,
    %cst_239 = arith.constant 0.000000e+00 : f32
    %272 = vector.broadcast %cst_239 : f32 to vector<32x3xf32>
    %c64_240 = arith.constant 64 : index
    %c5_241 = arith.constant 5 : index
    %273 = vector.load %arg7[%c64_240, %c5_241] : memref<224x128xf32, #tpu.memory_space<vmem>>, vector<32x3xf32>
    tpu.vector_store %arg7[%c64_240, %c5_241], %272 {strides = array<i32>} : memref<224x128xf32, #tpu.memory_space<vmem>>, vector<32x3xf32>,
    %274 = vector.extract_strided_slice %259 {offsets = [0, 3], sizes = [32, 5], strides = [1, 1]} : vector<32x16xf32> to vector<32x5xf32>
    %c64_242 = arith.constant 64 : index
    %c0_243 = arith.constant 0 : index
    %275 = vector.load %arg7[%c64_242, %c0_243] : memref<224x128xf32, #tpu.memory_space<vmem>>, vector<32x5xf32>
    tpu.vector_store %arg7[%c64_242, %c0_243], %274 {strides = array<i32>} : memref<224x128xf32, #tpu.memory_space<vmem>>, vector<32x5xf32>,
    %cst_244 = arith.constant 0.000000e+00 : f32
    %276 = vector.broadcast %cst_244 : f32 to vector<32x3xf32>
    %c64_245 = arith.constant 64 : index
    %c13_246 = arith.constant 13 : index
    %277 = vector.load %arg7[%c64_245, %c13_246] : memref<224x128xf32, #tpu.memory_space<vmem>>, vector<32x3xf32>
    tpu.vector_store %arg7[%c64_245, %c13_246], %276 {strides = array<i32>} : memref<224x128xf32, #tpu.memory_space<vmem>>, vector<32x3xf32>,
    %278 = vector.extract_strided_slice %259 {offsets = [0, 11], sizes = [32, 5], strides = [1, 1]} : vector<32x16xf32> to vector<32x5xf32>
    %c64_247 = arith.constant 64 : index
    %c8_248 = arith.constant 8 : index
    %279 = vector.load %arg7[%c64_247, %c8_248] : memref<224x128xf32, #tpu.memory_space<vmem>>, vector<32x5xf32>
    tpu.vector_store %arg7[%c64_247, %c8_248], %278 {strides = array<i32>} : memref<224x128xf32, #tpu.memory_space<vmem>>, vector<32x5xf32>,
    %c0_249 = arith.constant 0 : index
    %c688 = arith.constant 688 : index
    %280 = vector.load %arg1[%c0_249, %c688] : memref<32x1295xf32, #tpu.memory_space<vmem>>, vector<32x96xf32>
    %c0_250 = arith.constant 0 : index
    %c0_251 = arith.constant 0 : index
    %281 = vector.load %arg7[%c0_250, %c0_251] : memref<224x128xf32, #tpu.memory_space<vmem>>, vector<96x16xf32>
    %cst_252 = arith.constant dense<0.000000e+00> : vector<32x16xf32>
    %282 = tpu.matmul %280, %281, %cst_252 {dimension_numbers = #tpu.dot_dimension_numbers<[1], [0], [0], [1], [0, 0, 1, 1], [], []>} : vector<32x96xf32>, vector<96x16xf32>, vector<32x16xf32> -> vector<32x16xf32>
    %c0_253 = arith.constant 0 : index
    %c784 = arith.constant 784 : index
    %283 = vector.load %arg1[%c0_253, %c784] : memref<32x1295xf32, #tpu.memory_space<vmem>>, vector<32x1xf32>
    %284 = vector.broadcast %283 : vector<32x1xf32> to vector<32x16xf32>
    %285 = arith.addf %282, %284 : vector<32x16xf32>
    %286 = arith.addf %285, %259 : vector<32x16xf32>
    %cst_254 = arith.constant 0.000000e+00 : f32
    %287 = vector.broadcast %cst_254 : f32 to vector<32x16xf32>
    %288 = arith.cmpf oge, %286, %287 : vector<32x16xf32>
    %cst_255 = arith.constant 2.000000e-01 : f32
    %289 = vector.broadcast %cst_255 : f32 to vector<32x16xf32>
    %290 = arith.mulf %289, %286 : vector<32x16xf32>
    %291 = arith.select %288, %286, %290 : vector<32x16xi1>, vector<32x16xf32>
    %cst_256 = arith.constant 0.000000e+00 : f32
    %292 = vector.broadcast %cst_256 : f32 to vector<32x8xf32>
    %c0_257 = arith.constant 0 : index
    %c0_258 = arith.constant 0 : index
    %293 = vector.load %arg7[%c0_257, %c0_258] : memref<224x128xf32, #tpu.memory_space<vmem>>, vector<32x8xf32>
    tpu.vector_store %arg7[%c0_257, %c0_258], %292 {strides = array<i32>} : memref<224x128xf32, #tpu.memory_space<vmem>>, vector<32x8xf32>,
    %cst_259 = arith.constant 0.000000e+00 : f32
    %294 = vector.broadcast %cst_259 : f32 to vector<32x8xf32>
    %c0_260 = arith.constant 0 : index
    %c8_261 = arith.constant 8 : index
    %295 = vector.load %arg7[%c0_260, %c8_261] : memref<224x128xf32, #tpu.memory_space<vmem>>, vector<32x8xf32>
    tpu.vector_store %arg7[%c0_260, %c8_261], %294 {strides = array<i32>} : memref<224x128xf32, #tpu.memory_space<vmem>>, vector<32x8xf32>,
    %296 = vector.extract_strided_slice %291 {offsets = [0, 0], sizes = [32, 8], strides = [1, 1]} : vector<32x16xf32> to vector<32x8xf32>
    %c32_262 = arith.constant 32 : index
    %c0_263 = arith.constant 0 : index
    %297 = vector.load %arg7[%c32_262, %c0_263] : memref<224x128xf32, #tpu.memory_space<vmem>>, vector<32x8xf32>
    tpu.vector_store %arg7[%c32_262, %c0_263], %296 {strides = array<i32>} : memref<224x128xf32, #tpu.memory_space<vmem>>, vector<32x8xf32>,
    %298 = vector.extract_strided_slice %291 {offsets = [0, 8], sizes = [32, 8], strides = [1, 1]} : vector<32x16xf32> to vector<32x8xf32>
    %c32_264 = arith.constant 32 : index
    %c8_265 = arith.constant 8 : index
    %299 = vector.load %arg7[%c32_264, %c8_265] : memref<224x128xf32, #tpu.memory_space<vmem>>, vector<32x8xf32>
    tpu.vector_store %arg7[%c32_264, %c8_265], %298 {strides = array<i32>} : memref<224x128xf32, #tpu.memory_space<vmem>>, vector<32x8xf32>,
    %cst_266 = arith.constant 0.000000e+00 : f32
    %300 = vector.broadcast %cst_266 : f32 to vector<32x8xf32>
    %c64_267 = arith.constant 64 : index
    %c0_268 = arith.constant 0 : index
    %301 = vector.load %arg7[%c64_267, %c0_268] : memref<224x128xf32, #tpu.memory_space<vmem>>, vector<32x8xf32>
    tpu.vector_store %arg7[%c64_267, %c0_268], %300 {strides = array<i32>} : memref<224x128xf32, #tpu.memory_space<vmem>>, vector<32x8xf32>,
    %cst_269 = arith.constant 0.000000e+00 : f32
    %302 = vector.broadcast %cst_269 : f32 to vector<32x8xf32>
    %c64_270 = arith.constant 64 : index
    %c8_271 = arith.constant 8 : index
    %303 = vector.load %arg7[%c64_270, %c8_271] : memref<224x128xf32, #tpu.memory_space<vmem>>, vector<32x8xf32>
    tpu.vector_store %arg7[%c64_270, %c8_271], %302 {strides = array<i32>} : memref<224x128xf32, #tpu.memory_space<vmem>>, vector<32x8xf32>,
    %c0_272 = arith.constant 0 : index
    %c785 = arith.constant 785 : index
    %304 = vector.load %arg1[%c0_272, %c785] : memref<32x1295xf32, #tpu.memory_space<vmem>>, vector<32x96xf32>
    %c0_273 = arith.constant 0 : index
    %c0_274 = arith.constant 0 : index
    %305 = vector.load %arg7[%c0_273, %c0_274] : memref<224x128xf32, #tpu.memory_space<vmem>>, vector<96x16xf32>
    %cst_275 = arith.constant dense<0.000000e+00> : vector<32x16xf32>
    %306 = tpu.matmul %304, %305, %cst_275 {dimension_numbers = #tpu.dot_dimension_numbers<[1], [0], [0], [1], [0, 0, 1, 1], [], []>} : vector<32x96xf32>, vector<96x16xf32>, vector<32x16xf32> -> vector<32x16xf32>
    %c0_276 = arith.constant 0 : index
    %c881 = arith.constant 881 : index
    %307 = vector.load %arg1[%c0_276, %c881] : memref<32x1295xf32, #tpu.memory_space<vmem>>, vector<32x1xf32>
    %308 = vector.broadcast %307 : vector<32x1xf32> to vector<32x16xf32>
    %309 = arith.addf %306, %308 : vector<32x16xf32>
    %310 = arith.addf %309, %291 : vector<32x16xf32>
    %cst_277 = arith.constant 0.000000e+00 : f32
    %311 = vector.broadcast %cst_277 : f32 to vector<32x16xf32>
    %312 = arith.cmpf oge, %310, %311 : vector<32x16xf32>
    %cst_278 = arith.constant 2.000000e-01 : f32
    %313 = vector.broadcast %cst_278 : f32 to vector<32x16xf32>
    %314 = arith.mulf %313, %310 : vector<32x16xf32>
    %315 = arith.select %312, %310, %314 : vector<32x16xi1>, vector<32x16xf32>
    %c0_279 = arith.constant 0 : index
    %c882 = arith.constant 882 : index
    %316 = vector.load %arg1[%c0_279, %c882] : memref<32x1295xf32, #tpu.memory_space<vmem>>, vector<16x128xf32>
    %cst_280 = arith.constant dense<0.000000e+00> : vector<32x128xf32>
    %317 = tpu.matmul %315, %316, %cst_280 {dimension_numbers = #tpu.dot_dimension_numbers<[1], [0], [0], [1], [0, 0, 1, 1], [], []>} : vector<32x16xf32>, vector<16x128xf32>, vector<32x128xf32> -> vector<32x128xf32>
    %c0_281 = arith.constant 0 : index
    %c0_282 = arith.constant 0 : index
    %318 = vector.load %arg5[%c0_281, %c0_282] : memref<1x128xf32, #tpu.memory_space<vmem>>, vector<1x128xf32>
    %cst_283 = arith.constant 0.000000e+00 : f32
    %319 = vector.broadcast %cst_283 : f32 to vector<25x128xf32>
    %c0_284 = arith.constant 0 : index
    %c0_285 = arith.constant 0 : index
    %320 = vector.load %arg7[%c0_284, %c0_285] : memref<224x128xf32, #tpu.memory_space<vmem>>, vector<25x128xf32>
    tpu.vector_store %arg7[%c0_284, %c0_285], %319 {strides = array<i32>} : memref<224x128xf32, #tpu.memory_space<vmem>>, vector<25x128xf32>,
    %321 = vector.extract_strided_slice %318 {offsets = [0, 0], sizes = [1, 52], strides = [1, 1]} : vector<1x128xf32> to vector<1x52xf32>
    %c0_286 = arith.constant 0 : index
    %c12 = arith.constant 12 : index
    %322 = vector.load %arg7[%c0_286, %c12] : memref<224x128xf32, #tpu.memory_space<vmem>>, vector<1x52xf32>
    tpu.vector_store %arg7[%c0_286, %c12], %321 {strides = array<i32>} : memref<224x128xf32, #tpu.memory_space<vmem>>, vector<1x52xf32>,
    %323 = vector.extract_strided_slice %318 {offsets = [0, 64], sizes = [1, 52], strides = [1, 1]} : vector<1x128xf32> to vector<1x52xf32>
    %c0_287 = arith.constant 0 : index
    %c76 = arith.constant 76 : index
    %324 = vector.load %arg7[%c0_287, %c76] : memref<224x128xf32, #tpu.memory_space<vmem>>, vector<1x52xf32>
    tpu.vector_store %arg7[%c0_287, %c76], %323 {strides = array<i32>} : memref<224x128xf32, #tpu.memory_space<vmem>>, vector<1x52xf32>,
    %325 = vector.extract_strided_slice %318 {offsets = [0, 0], sizes = [1, 53], strides = [1, 1]} : vector<1x128xf32> to vector<1x53xf32>
    %c1_288 = arith.constant 1 : index
    %c11_289 = arith.constant 11 : index
    %326 = vector.load %arg7[%c1_288, %c11_289] : memref<224x128xf32, #tpu.memory_space<vmem>>, vector<1x53xf32>
    tpu.vector_store %arg7[%c1_288, %c11_289], %325 {strides = array<i32>} : memref<224x128xf32, #tpu.memory_space<vmem>>, vector<1x53xf32>,
    %327 = vector.extract_strided_slice %318 {offsets = [0, 64], sizes = [1, 53], strides = [1, 1]} : vector<1x128xf32> to vector<1x53xf32>
    %c1_290 = arith.constant 1 : index
    %c75 = arith.constant 75 : index
    %328 = vector.load %arg7[%c1_290, %c75] : memref<224x128xf32, #tpu.memory_space<vmem>>, vector<1x53xf32>
    tpu.vector_store %arg7[%c1_290, %c75], %327 {strides = array<i32>} : memref<224x128xf32, #tpu.memory_space<vmem>>, vector<1x53xf32>,
    %329 = vector.extract_strided_slice %318 {offsets = [0, 0], sizes = [1, 54], strides = [1, 1]} : vector<1x128xf32> to vector<1x54xf32>
    %c2_291 = arith.constant 2 : index
    %c10_292 = arith.constant 10 : index
    %330 = vector.load %arg7[%c2_291, %c10_292] : memref<224x128xf32, #tpu.memory_space<vmem>>, vector<1x54xf32>
    tpu.vector_store %arg7[%c2_291, %c10_292], %329 {strides = array<i32>} : memref<224x128xf32, #tpu.memory_space<vmem>>, vector<1x54xf32>,
    %331 = vector.extract_strided_slice %318 {offsets = [0, 64], sizes = [1, 54], strides = [1, 1]} : vector<1x128xf32> to vector<1x54xf32>
    %c2_293 = arith.constant 2 : index
    %c74 = arith.constant 74 : index
    %332 = vector.load %arg7[%c2_293, %c74] : memref<224x128xf32, #tpu.memory_space<vmem>>, vector<1x54xf32>
    tpu.vector_store %arg7[%c2_293, %c74], %331 {strides = array<i32>} : memref<224x128xf32, #tpu.memory_space<vmem>>, vector<1x54xf32>,
    %333 = vector.extract_strided_slice %318 {offsets = [0, 0], sizes = [1, 55], strides = [1, 1]} : vector<1x128xf32> to vector<1x55xf32>
    %c3_294 = arith.constant 3 : index
    %c9_295 = arith.constant 9 : index
    %334 = vector.load %arg7[%c3_294, %c9_295] : memref<224x128xf32, #tpu.memory_space<vmem>>, vector<1x55xf32>
    tpu.vector_store %arg7[%c3_294, %c9_295], %333 {strides = array<i32>} : memref<224x128xf32, #tpu.memory_space<vmem>>, vector<1x55xf32>,
    %335 = vector.extract_strided_slice %318 {offsets = [0, 64], sizes = [1, 55], strides = [1, 1]} : vector<1x128xf32> to vector<1x55xf32>
    %c3_296 = arith.constant 3 : index
    %c73 = arith.constant 73 : index
    %336 = vector.load %arg7[%c3_296, %c73] : memref<224x128xf32, #tpu.memory_space<vmem>>, vector<1x55xf32>
    tpu.vector_store %arg7[%c3_296, %c73], %335 {strides = array<i32>} : memref<224x128xf32, #tpu.memory_space<vmem>>, vector<1x55xf32>,
    %337 = vector.extract_strided_slice %318 {offsets = [0, 0], sizes = [1, 56], strides = [1, 1]} : vector<1x128xf32> to vector<1x56xf32>
    %c4_297 = arith.constant 4 : index
    %c8_298 = arith.constant 8 : index
    %338 = vector.load %arg7[%c4_297, %c8_298] : memref<224x128xf32, #tpu.memory_space<vmem>>, vector<1x56xf32>
    tpu.vector_store %arg7[%c4_297, %c8_298], %337 {strides = array<i32>} : memref<224x128xf32, #tpu.memory_space<vmem>>, vector<1x56xf32>,
    %339 = vector.extract_strided_slice %318 {offsets = [0, 64], sizes = [1, 56], strides = [1, 1]} : vector<1x128xf32> to vector<1x56xf32>
    %c4_299 = arith.constant 4 : index
    %c72 = arith.constant 72 : index
    %340 = vector.load %arg7[%c4_299, %c72] : memref<224x128xf32, #tpu.memory_space<vmem>>, vector<1x56xf32>
    tpu.vector_store %arg7[%c4_299, %c72], %339 {strides = array<i32>} : memref<224x128xf32, #tpu.memory_space<vmem>>, vector<1x56xf32>,
    %341 = vector.extract_strided_slice %318 {offsets = [0, 0], sizes = [1, 57], strides = [1, 1]} : vector<1x128xf32> to vector<1x57xf32>
    %c5_300 = arith.constant 5 : index
    %c7_301 = arith.constant 7 : index
    %342 = vector.load %arg7[%c5_300, %c7_301] : memref<224x128xf32, #tpu.memory_space<vmem>>, vector<1x57xf32>
    tpu.vector_store %arg7[%c5_300, %c7_301], %341 {strides = array<i32>} : memref<224x128xf32, #tpu.memory_space<vmem>>, vector<1x57xf32>,
    %343 = vector.extract_strided_slice %318 {offsets = [0, 64], sizes = [1, 57], strides = [1, 1]} : vector<1x128xf32> to vector<1x57xf32>
    %c5_302 = arith.constant 5 : index
    %c71 = arith.constant 71 : index
    %344 = vector.load %arg7[%c5_302, %c71] : memref<224x128xf32, #tpu.memory_space<vmem>>, vector<1x57xf32>
    tpu.vector_store %arg7[%c5_302, %c71], %343 {strides = array<i32>} : memref<224x128xf32, #tpu.memory_space<vmem>>, vector<1x57xf32>,
    %345 = vector.extract_strided_slice %318 {offsets = [0, 0], sizes = [1, 58], strides = [1, 1]} : vector<1x128xf32> to vector<1x58xf32>
    %c6_303 = arith.constant 6 : index
    %c6_304 = arith.constant 6 : index
    %346 = vector.load %arg7[%c6_303, %c6_304] : memref<224x128xf32, #tpu.memory_space<vmem>>, vector<1x58xf32>
    tpu.vector_store %arg7[%c6_303, %c6_304], %345 {strides = array<i32>} : memref<224x128xf32, #tpu.memory_space<vmem>>, vector<1x58xf32>,
    %347 = vector.extract_strided_slice %318 {offsets = [0, 64], sizes = [1, 58], strides = [1, 1]} : vector<1x128xf32> to vector<1x58xf32>
    %c6_305 = arith.constant 6 : index
    %c70 = arith.constant 70 : index
    %348 = vector.load %arg7[%c6_305, %c70] : memref<224x128xf32, #tpu.memory_space<vmem>>, vector<1x58xf32>
    tpu.vector_store %arg7[%c6_305, %c70], %347 {strides = array<i32>} : memref<224x128xf32, #tpu.memory_space<vmem>>, vector<1x58xf32>,
    %349 = vector.extract_strided_slice %318 {offsets = [0, 0], sizes = [1, 59], strides = [1, 1]} : vector<1x128xf32> to vector<1x59xf32>
    %c7_306 = arith.constant 7 : index
    %c5_307 = arith.constant 5 : index
    %350 = vector.load %arg7[%c7_306, %c5_307] : memref<224x128xf32, #tpu.memory_space<vmem>>, vector<1x59xf32>
    tpu.vector_store %arg7[%c7_306, %c5_307], %349 {strides = array<i32>} : memref<224x128xf32, #tpu.memory_space<vmem>>, vector<1x59xf32>,
    %351 = vector.extract_strided_slice %318 {offsets = [0, 64], sizes = [1, 59], strides = [1, 1]} : vector<1x128xf32> to vector<1x59xf32>
    %c7_308 = arith.constant 7 : index
    %c69 = arith.constant 69 : index
    %352 = vector.load %arg7[%c7_308, %c69] : memref<224x128xf32, #tpu.memory_space<vmem>>, vector<1x59xf32>
    tpu.vector_store %arg7[%c7_308, %c69], %351 {strides = array<i32>} : memref<224x128xf32, #tpu.memory_space<vmem>>, vector<1x59xf32>,
    %353 = vector.extract_strided_slice %318 {offsets = [0, 0], sizes = [1, 60], strides = [1, 1]} : vector<1x128xf32> to vector<1x60xf32>
    %c8_309 = arith.constant 8 : index
    %c4_310 = arith.constant 4 : index
    %354 = vector.load %arg7[%c8_309, %c4_310] : memref<224x128xf32, #tpu.memory_space<vmem>>, vector<1x60xf32>
    tpu.vector_store %arg7[%c8_309, %c4_310], %353 {strides = array<i32>} : memref<224x128xf32, #tpu.memory_space<vmem>>, vector<1x60xf32>,
    %355 = vector.extract_strided_slice %318 {offsets = [0, 64], sizes = [1, 60], strides = [1, 1]} : vector<1x128xf32> to vector<1x60xf32>
    %c8_311 = arith.constant 8 : index
    %c68 = arith.constant 68 : index
    %356 = vector.load %arg7[%c8_311, %c68] : memref<224x128xf32, #tpu.memory_space<vmem>>, vector<1x60xf32>
    tpu.vector_store %arg7[%c8_311, %c68], %355 {strides = array<i32>} : memref<224x128xf32, #tpu.memory_space<vmem>>, vector<1x60xf32>,
    %357 = vector.extract_strided_slice %318 {offsets = [0, 0], sizes = [1, 61], strides = [1, 1]} : vector<1x128xf32> to vector<1x61xf32>
    %c9_312 = arith.constant 9 : index
    %c3_313 = arith.constant 3 : index
    %358 = vector.load %arg7[%c9_312, %c3_313] : memref<224x128xf32, #tpu.memory_space<vmem>>, vector<1x61xf32>
    tpu.vector_store %arg7[%c9_312, %c3_313], %357 {strides = array<i32>} : memref<224x128xf32, #tpu.memory_space<vmem>>, vector<1x61xf32>,
    %359 = vector.extract_strided_slice %318 {offsets = [0, 64], sizes = [1, 61], strides = [1, 1]} : vector<1x128xf32> to vector<1x61xf32>
    %c9_314 = arith.constant 9 : index
    %c67 = arith.constant 67 : index
    %360 = vector.load %arg7[%c9_314, %c67] : memref<224x128xf32, #tpu.memory_space<vmem>>, vector<1x61xf32>
    tpu.vector_store %arg7[%c9_314, %c67], %359 {strides = array<i32>} : memref<224x128xf32, #tpu.memory_space<vmem>>, vector<1x61xf32>,
    %361 = vector.extract_strided_slice %318 {offsets = [0, 0], sizes = [1, 62], strides = [1, 1]} : vector<1x128xf32> to vector<1x62xf32>
    %c10_315 = arith.constant 10 : index
    %c2_316 = arith.constant 2 : index
    %362 = vector.load %arg7[%c10_315, %c2_316] : memref<224x128xf32, #tpu.memory_space<vmem>>, vector<1x62xf32>
    tpu.vector_store %arg7[%c10_315, %c2_316], %361 {strides = array<i32>} : memref<224x128xf32, #tpu.memory_space<vmem>>, vector<1x62xf32>,
    %363 = vector.extract_strided_slice %318 {offsets = [0, 64], sizes = [1, 62], strides = [1, 1]} : vector<1x128xf32> to vector<1x62xf32>
    %c10_317 = arith.constant 10 : index
    %c66 = arith.constant 66 : index
    %364 = vector.load %arg7[%c10_317, %c66] : memref<224x128xf32, #tpu.memory_space<vmem>>, vector<1x62xf32>
    tpu.vector_store %arg7[%c10_317, %c66], %363 {strides = array<i32>} : memref<224x128xf32, #tpu.memory_space<vmem>>, vector<1x62xf32>,
    %365 = vector.extract_strided_slice %318 {offsets = [0, 0], sizes = [1, 63], strides = [1, 1]} : vector<1x128xf32> to vector<1x63xf32>
    %c11_318 = arith.constant 11 : index
    %c1_319 = arith.constant 1 : index
    %366 = vector.load %arg7[%c11_318, %c1_319] : memref<224x128xf32, #tpu.memory_space<vmem>>, vector<1x63xf32>
    tpu.vector_store %arg7[%c11_318, %c1_319], %365 {strides = array<i32>} : memref<224x128xf32, #tpu.memory_space<vmem>>, vector<1x63xf32>,
    %367 = vector.extract_strided_slice %318 {offsets = [0, 64], sizes = [1, 63], strides = [1, 1]} : vector<1x128xf32> to vector<1x63xf32>
    %c11_320 = arith.constant 11 : index
    %c65 = arith.constant 65 : index
    %368 = vector.load %arg7[%c11_320, %c65] : memref<224x128xf32, #tpu.memory_space<vmem>>, vector<1x63xf32>
    tpu.vector_store %arg7[%c11_320, %c65], %367 {strides = array<i32>} : memref<224x128xf32, #tpu.memory_space<vmem>>, vector<1x63xf32>,
    %369 = vector.extract_strided_slice %318 {offsets = [0, 0], sizes = [1, 64], strides = [1, 1]} : vector<1x128xf32> to vector<1x64xf32>
    %c12_321 = arith.constant 12 : index
    %c0_322 = arith.constant 0 : index
    %370 = vector.load %arg7[%c12_321, %c0_322] : memref<224x128xf32, #tpu.memory_space<vmem>>, vector<1x64xf32>
    tpu.vector_store %arg7[%c12_321, %c0_322], %369 {strides = array<i32>} : memref<224x128xf32, #tpu.memory_space<vmem>>, vector<1x64xf32>,
    %371 = vector.extract_strided_slice %318 {offsets = [0, 64], sizes = [1, 64], strides = [1, 1]} : vector<1x128xf32> to vector<1x64xf32>
    %c12_323 = arith.constant 12 : index
    %c64_324 = arith.constant 64 : index
    %372 = vector.load %arg7[%c12_323, %c64_324] : memref<224x128xf32, #tpu.memory_space<vmem>>, vector<1x64xf32>
    tpu.vector_store %arg7[%c12_323, %c64_324], %371 {strides = array<i32>} : memref<224x128xf32, #tpu.memory_space<vmem>>, vector<1x64xf32>,
    %373 = vector.extract_strided_slice %318 {offsets = [0, 1], sizes = [1, 63], strides = [1, 1]} : vector<1x128xf32> to vector<1x63xf32>
    %c13_325 = arith.constant 13 : index
    %c0_326 = arith.constant 0 : index
    %374 = vector.load %arg7[%c13_325, %c0_326] : memref<224x128xf32, #tpu.memory_space<vmem>>, vector<1x63xf32>
    tpu.vector_store %arg7[%c13_325, %c0_326], %373 {strides = array<i32>} : memref<224x128xf32, #tpu.memory_space<vmem>>, vector<1x63xf32>,
    %375 = vector.extract_strided_slice %318 {offsets = [0, 65], sizes = [1, 63], strides = [1, 1]} : vector<1x128xf32> to vector<1x63xf32>
    %c13_327 = arith.constant 13 : index
    %c64_328 = arith.constant 64 : index
    %376 = vector.load %arg7[%c13_327, %c64_328] : memref<224x128xf32, #tpu.memory_space<vmem>>, vector<1x63xf32>
    tpu.vector_store %arg7[%c13_327, %c64_328], %375 {strides = array<i32>} : memref<224x128xf32, #tpu.memory_space<vmem>>, vector<1x63xf32>,
    %377 = vector.extract_strided_slice %318 {offsets = [0, 2], sizes = [1, 62], strides = [1, 1]} : vector<1x128xf32> to vector<1x62xf32>
    %c14_329 = arith.constant 14 : index
    %c0_330 = arith.constant 0 : index
    %378 = vector.load %arg7[%c14_329, %c0_330] : memref<224x128xf32, #tpu.memory_space<vmem>>, vector<1x62xf32>
    tpu.vector_store %arg7[%c14_329, %c0_330], %377 {strides = array<i32>} : memref<224x128xf32, #tpu.memory_space<vmem>>, vector<1x62xf32>,
    %379 = vector.extract_strided_slice %318 {offsets = [0, 66], sizes = [1, 62], strides = [1, 1]} : vector<1x128xf32> to vector<1x62xf32>
    %c14_331 = arith.constant 14 : index
    %c64_332 = arith.constant 64 : index
    %380 = vector.load %arg7[%c14_331, %c64_332] : memref<224x128xf32, #tpu.memory_space<vmem>>, vector<1x62xf32>
    tpu.vector_store %arg7[%c14_331, %c64_332], %379 {strides = array<i32>} : memref<224x128xf32, #tpu.memory_space<vmem>>, vector<1x62xf32>,
    %381 = vector.extract_strided_slice %318 {offsets = [0, 3], sizes = [1, 61], strides = [1, 1]} : vector<1x128xf32> to vector<1x61xf32>
    %c15_333 = arith.constant 15 : index
    %c0_334 = arith.constant 0 : index
    %382 = vector.load %arg7[%c15_333, %c0_334] : memref<224x128xf32, #tpu.memory_space<vmem>>, vector<1x61xf32>
    tpu.vector_store %arg7[%c15_333, %c0_334], %381 {strides = array<i32>} : memref<224x128xf32, #tpu.memory_space<vmem>>, vector<1x61xf32>,
    %383 = vector.extract_strided_slice %318 {offsets = [0, 67], sizes = [1, 61], strides = [1, 1]} : vector<1x128xf32> to vector<1x61xf32>
    %c15_335 = arith.constant 15 : index
    %c64_336 = arith.constant 64 : index
    %384 = vector.load %arg7[%c15_335, %c64_336] : memref<224x128xf32, #tpu.memory_space<vmem>>, vector<1x61xf32>
    tpu.vector_store %arg7[%c15_335, %c64_336], %383 {strides = array<i32>} : memref<224x128xf32, #tpu.memory_space<vmem>>, vector<1x61xf32>,
    %385 = vector.extract_strided_slice %318 {offsets = [0, 4], sizes = [1, 60], strides = [1, 1]} : vector<1x128xf32> to vector<1x60xf32>
    %c16_337 = arith.constant 16 : index
    %c0_338 = arith.constant 0 : index
    %386 = vector.load %arg7[%c16_337, %c0_338] : memref<224x128xf32, #tpu.memory_space<vmem>>, vector<1x60xf32>
    tpu.vector_store %arg7[%c16_337, %c0_338], %385 {strides = array<i32>} : memref<224x128xf32, #tpu.memory_space<vmem>>, vector<1x60xf32>,
    %387 = vector.extract_strided_slice %318 {offsets = [0, 68], sizes = [1, 60], strides = [1, 1]} : vector<1x128xf32> to vector<1x60xf32>
    %c16_339 = arith.constant 16 : index
    %c64_340 = arith.constant 64 : index
    %388 = vector.load %arg7[%c16_339, %c64_340] : memref<224x128xf32, #tpu.memory_space<vmem>>, vector<1x60xf32>
    tpu.vector_store %arg7[%c16_339, %c64_340], %387 {strides = array<i32>} : memref<224x128xf32, #tpu.memory_space<vmem>>, vector<1x60xf32>,
    %389 = vector.extract_strided_slice %318 {offsets = [0, 5], sizes = [1, 59], strides = [1, 1]} : vector<1x128xf32> to vector<1x59xf32>
    %c17 = arith.constant 17 : index
    %c0_341 = arith.constant 0 : index
    %390 = vector.load %arg7[%c17, %c0_341] : memref<224x128xf32, #tpu.memory_space<vmem>>, vector<1x59xf32>
    tpu.vector_store %arg7[%c17, %c0_341], %389 {strides = array<i32>} : memref<224x128xf32, #tpu.memory_space<vmem>>, vector<1x59xf32>,
    %391 = vector.extract_strided_slice %318 {offsets = [0, 69], sizes = [1, 59], strides = [1, 1]} : vector<1x128xf32> to vector<1x59xf32>
    %c17_342 = arith.constant 17 : index
    %c64_343 = arith.constant 64 : index
    %392 = vector.load %arg7[%c17_342, %c64_343] : memref<224x128xf32, #tpu.memory_space<vmem>>, vector<1x59xf32>
    tpu.vector_store %arg7[%c17_342, %c64_343], %391 {strides = array<i32>} : memref<224x128xf32, #tpu.memory_space<vmem>>, vector<1x59xf32>,
    %393 = vector.extract_strided_slice %318 {offsets = [0, 6], sizes = [1, 58], strides = [1, 1]} : vector<1x128xf32> to vector<1x58xf32>
    %c18 = arith.constant 18 : index
    %c0_344 = arith.constant 0 : index
    %394 = vector.load %arg7[%c18, %c0_344] : memref<224x128xf32, #tpu.memory_space<vmem>>, vector<1x58xf32>
    tpu.vector_store %arg7[%c18, %c0_344], %393 {strides = array<i32>} : memref<224x128xf32, #tpu.memory_space<vmem>>, vector<1x58xf32>,
    %395 = vector.extract_strided_slice %318 {offsets = [0, 70], sizes = [1, 58], strides = [1, 1]} : vector<1x128xf32> to vector<1x58xf32>
    %c18_345 = arith.constant 18 : index
    %c64_346 = arith.constant 64 : index
    %396 = vector.load %arg7[%c18_345, %c64_346] : memref<224x128xf32, #tpu.memory_space<vmem>>, vector<1x58xf32>
    tpu.vector_store %arg7[%c18_345, %c64_346], %395 {strides = array<i32>} : memref<224x128xf32, #tpu.memory_space<vmem>>, vector<1x58xf32>,
    %397 = vector.extract_strided_slice %318 {offsets = [0, 7], sizes = [1, 57], strides = [1, 1]} : vector<1x128xf32> to vector<1x57xf32>
    %c19 = arith.constant 19 : index
    %c0_347 = arith.constant 0 : index
    %398 = vector.load %arg7[%c19, %c0_347] : memref<224x128xf32, #tpu.memory_space<vmem>>, vector<1x57xf32>
    tpu.vector_store %arg7[%c19, %c0_347], %397 {strides = array<i32>} : memref<224x128xf32, #tpu.memory_space<vmem>>, vector<1x57xf32>,
    %399 = vector.extract_strided_slice %318 {offsets = [0, 71], sizes = [1, 57], strides = [1, 1]} : vector<1x128xf32> to vector<1x57xf32>
    %c19_348 = arith.constant 19 : index
    %c64_349 = arith.constant 64 : index
    %400 = vector.load %arg7[%c19_348, %c64_349] : memref<224x128xf32, #tpu.memory_space<vmem>>, vector<1x57xf32>
    tpu.vector_store %arg7[%c19_348, %c64_349], %399 {strides = array<i32>} : memref<224x128xf32, #tpu.memory_space<vmem>>, vector<1x57xf32>,
    %401 = vector.extract_strided_slice %318 {offsets = [0, 8], sizes = [1, 56], strides = [1, 1]} : vector<1x128xf32> to vector<1x56xf32>
    %c20 = arith.constant 20 : index
    %c0_350 = arith.constant 0 : index
    %402 = vector.load %arg7[%c20, %c0_350] : memref<224x128xf32, #tpu.memory_space<vmem>>, vector<1x56xf32>
    tpu.vector_store %arg7[%c20, %c0_350], %401 {strides = array<i32>} : memref<224x128xf32, #tpu.memory_space<vmem>>, vector<1x56xf32>,
    %403 = vector.extract_strided_slice %318 {offsets = [0, 72], sizes = [1, 56], strides = [1, 1]} : vector<1x128xf32> to vector<1x56xf32>
    %c20_351 = arith.constant 20 : index
    %c64_352 = arith.constant 64 : index
    %404 = vector.load %arg7[%c20_351, %c64_352] : memref<224x128xf32, #tpu.memory_space<vmem>>, vector<1x56xf32>
    tpu.vector_store %arg7[%c20_351, %c64_352], %403 {strides = array<i32>} : memref<224x128xf32, #tpu.memory_space<vmem>>, vector<1x56xf32>,
    %405 = vector.extract_strided_slice %318 {offsets = [0, 9], sizes = [1, 55], strides = [1, 1]} : vector<1x128xf32> to vector<1x55xf32>
    %c21 = arith.constant 21 : index
    %c0_353 = arith.constant 0 : index
    %406 = vector.load %arg7[%c21, %c0_353] : memref<224x128xf32, #tpu.memory_space<vmem>>, vector<1x55xf32>
    tpu.vector_store %arg7[%c21, %c0_353], %405 {strides = array<i32>} : memref<224x128xf32, #tpu.memory_space<vmem>>, vector<1x55xf32>,
    %407 = vector.extract_strided_slice %318 {offsets = [0, 73], sizes = [1, 55], strides = [1, 1]} : vector<1x128xf32> to vector<1x55xf32>
    %c21_354 = arith.constant 21 : index
    %c64_355 = arith.constant 64 : index
    %408 = vector.load %arg7[%c21_354, %c64_355] : memref<224x128xf32, #tpu.memory_space<vmem>>, vector<1x55xf32>
    tpu.vector_store %arg7[%c21_354, %c64_355], %407 {strides = array<i32>} : memref<224x128xf32, #tpu.memory_space<vmem>>, vector<1x55xf32>,
    %409 = vector.extract_strided_slice %318 {offsets = [0, 10], sizes = [1, 54], strides = [1, 1]} : vector<1x128xf32> to vector<1x54xf32>
    %c22 = arith.constant 22 : index
    %c0_356 = arith.constant 0 : index
    %410 = vector.load %arg7[%c22, %c0_356] : memref<224x128xf32, #tpu.memory_space<vmem>>, vector<1x54xf32>
    tpu.vector_store %arg7[%c22, %c0_356], %409 {strides = array<i32>} : memref<224x128xf32, #tpu.memory_space<vmem>>, vector<1x54xf32>,
    %411 = vector.extract_strided_slice %318 {offsets = [0, 74], sizes = [1, 54], strides = [1, 1]} : vector<1x128xf32> to vector<1x54xf32>
    %c22_357 = arith.constant 22 : index
    %c64_358 = arith.constant 64 : index
    %412 = vector.load %arg7[%c22_357, %c64_358] : memref<224x128xf32, #tpu.memory_space<vmem>>, vector<1x54xf32>
    tpu.vector_store %arg7[%c22_357, %c64_358], %411 {strides = array<i32>} : memref<224x128xf32, #tpu.memory_space<vmem>>, vector<1x54xf32>,
    %413 = vector.extract_strided_slice %318 {offsets = [0, 11], sizes = [1, 53], strides = [1, 1]} : vector<1x128xf32> to vector<1x53xf32>
    %c23_359 = arith.constant 23 : index
    %c0_360 = arith.constant 0 : index
    %414 = vector.load %arg7[%c23_359, %c0_360] : memref<224x128xf32, #tpu.memory_space<vmem>>, vector<1x53xf32>
    tpu.vector_store %arg7[%c23_359, %c0_360], %413 {strides = array<i32>} : memref<224x128xf32, #tpu.memory_space<vmem>>, vector<1x53xf32>,
    %415 = vector.extract_strided_slice %318 {offsets = [0, 75], sizes = [1, 53], strides = [1, 1]} : vector<1x128xf32> to vector<1x53xf32>
    %c23_361 = arith.constant 23 : index
    %c64_362 = arith.constant 64 : index
    %416 = vector.load %arg7[%c23_361, %c64_362] : memref<224x128xf32, #tpu.memory_space<vmem>>, vector<1x53xf32>
    tpu.vector_store %arg7[%c23_361, %c64_362], %415 {strides = array<i32>} : memref<224x128xf32, #tpu.memory_space<vmem>>, vector<1x53xf32>,
    %417 = vector.extract_strided_slice %318 {offsets = [0, 12], sizes = [1, 52], strides = [1, 1]} : vector<1x128xf32> to vector<1x52xf32>
    %c24_363 = arith.constant 24 : index
    %c0_364 = arith.constant 0 : index
    %418 = vector.load %arg7[%c24_363, %c0_364] : memref<224x128xf32, #tpu.memory_space<vmem>>, vector<1x52xf32>
    tpu.vector_store %arg7[%c24_363, %c0_364], %417 {strides = array<i32>} : memref<224x128xf32, #tpu.memory_space<vmem>>, vector<1x52xf32>,
    %419 = vector.extract_strided_slice %318 {offsets = [0, 76], sizes = [1, 52], strides = [1, 1]} : vector<1x128xf32> to vector<1x52xf32>
    %c24_365 = arith.constant 24 : index
    %c64_366 = arith.constant 64 : index
    %420 = vector.load %arg7[%c24_365, %c64_366] : memref<224x128xf32, #tpu.memory_space<vmem>>, vector<1x52xf32>
    tpu.vector_store %arg7[%c24_365, %c64_366], %419 {strides = array<i32>} : memref<224x128xf32, #tpu.memory_space<vmem>>, vector<1x52xf32>,
    %c0_367 = arith.constant 0 : index
    %c1010 = arith.constant 1010 : index
    %421 = vector.load %arg1[%c0_367, %c1010] : memref<32x1295xf32, #tpu.memory_space<vmem>>, vector<32x25xf32>
    %c0_368 = arith.constant 0 : index
    %c0_369 = arith.constant 0 : index
    %422 = vector.load %arg7[%c0_368, %c0_369] : memref<224x128xf32, #tpu.memory_space<vmem>>, vector<25x128xf32>
    %cst_370 = arith.constant dense<0.000000e+00> : vector<32x128xf32>
    %423 = tpu.matmul %421, %422, %cst_370 {dimension_numbers = #tpu.dot_dimension_numbers<[1], [0], [0], [1], [0, 0, 1, 1], [], []>} : vector<32x25xf32>, vector<25x128xf32>, vector<32x128xf32> -> vector<32x128xf32>
    %c0_371 = arith.constant 0 : index
    %c1035 = arith.constant 1035 : index
    %424 = vector.load %arg1[%c0_371, %c1035] : memref<32x1295xf32, #tpu.memory_space<vmem>>, vector<32x1xf32>
    %425 = vector.broadcast %424 : vector<32x1xf32> to vector<32x128xf32>
    %426 = arith.addf %423, %425 : vector<32x128xf32>
    %c0_372 = arith.constant 0 : index
    %c1036 = arith.constant 1036 : index
    %427 = vector.load %arg1[%c0_372, %c1036] : memref<32x1295xf32, #tpu.memory_space<vmem>>, vector<32x32xf32>
    %cst_373 = arith.constant dense<0.000000e+00> : vector<32x128xf32>
    %428 = tpu.matmul %427, %317, %cst_373 {dimension_numbers = #tpu.dot_dimension_numbers<[1], [0], [0], [1], [0, 0, 1, 1], [], []>} : vector<32x32xf32>, vector<32x128xf32>, vector<32x128xf32> -> vector<32x128xf32>
    %c0_374 = arith.constant 0 : index
    %c1068 = arith.constant 1068 : index
    %429 = vector.load %arg1[%c0_374, %c1068] : memref<32x1295xf32, #tpu.memory_space<vmem>>, vector<32x32xf32>
    %cst_375 = arith.constant dense<0.000000e+00> : vector<32x128xf32>
    %430 = tpu.matmul %429, %426, %cst_375 {dimension_numbers = #tpu.dot_dimension_numbers<[1], [0], [0], [1], [0, 0, 1, 1], [], []>} : vector<32x32xf32>, vector<32x128xf32>, vector<32x128xf32> -> vector<32x128xf32>
    %431 = arith.addf %428, %430 : vector<32x128xf32>
    %c0_376 = arith.constant 0 : index
    %c1100 = arith.constant 1100 : index
    %432 = vector.load %arg1[%c0_376, %c1100] : memref<32x1295xf32, #tpu.memory_space<vmem>>, vector<32x1xf32>
    %433 = vector.broadcast %432 : vector<32x1xf32> to vector<32x128xf32>
    %434 = arith.addf %431, %433 : vector<32x128xf32>
    %cst_377 = arith.constant 0.000000e+00 : f32
    %435 = vector.broadcast %cst_377 : f32 to vector<32x1xf32>
    %c0_378 = arith.constant 0 : index
    %c0_379 = arith.constant 0 : index
    %436 = vector.load %arg7[%c0_378, %c0_379] : memref<224x128xf32, #tpu.memory_space<vmem>>, vector<32x1xf32>
    tpu.vector_store %arg7[%c0_378, %c0_379], %435 {strides = array<i32>} : memref<224x128xf32, #tpu.memory_space<vmem>>, vector<32x1xf32>,
    %437 = vector.extract_strided_slice %434 {offsets = [0, 0], sizes = [32, 63], strides = [1, 1]} : vector<32x128xf32> to vector<32x63xf32>
    %c0_380 = arith.constant 0 : index
    %c1_381 = arith.constant 1 : index
    %438 = vector.load %arg7[%c0_380, %c1_381] : memref<224x128xf32, #tpu.memory_space<vmem>>, vector<32x63xf32>
    tpu.vector_store %arg7[%c0_380, %c1_381], %437 {strides = array<i32>} : memref<224x128xf32, #tpu.memory_space<vmem>>, vector<32x63xf32>,
    %cst_382 = arith.constant 0.000000e+00 : f32
    %439 = vector.broadcast %cst_382 : f32 to vector<32x1xf32>
    %c0_383 = arith.constant 0 : index
    %c64_384 = arith.constant 64 : index
    %440 = vector.load %arg7[%c0_383, %c64_384] : memref<224x128xf32, #tpu.memory_space<vmem>>, vector<32x1xf32>
    tpu.vector_store %arg7[%c0_383, %c64_384], %439 {strides = array<i32>} : memref<224x128xf32, #tpu.memory_space<vmem>>, vector<32x1xf32>,
    %441 = vector.extract_strided_slice %434 {offsets = [0, 64], sizes = [32, 63], strides = [1, 1]} : vector<32x128xf32> to vector<32x63xf32>
    %c0_385 = arith.constant 0 : index
    %c65_386 = arith.constant 65 : index
    %442 = vector.load %arg7[%c0_385, %c65_386] : memref<224x128xf32, #tpu.memory_space<vmem>>, vector<32x63xf32>
    tpu.vector_store %arg7[%c0_385, %c65_386], %441 {strides = array<i32>} : memref<224x128xf32, #tpu.memory_space<vmem>>, vector<32x63xf32>,
    %443 = vector.extract_strided_slice %434 {offsets = [0, 0], sizes = [32, 64], strides = [1, 1]} : vector<32x128xf32> to vector<32x64xf32>
    %c32_387 = arith.constant 32 : index
    %c0_388 = arith.constant 0 : index
    %444 = vector.load %arg7[%c32_387, %c0_388] : memref<224x128xf32, #tpu.memory_space<vmem>>, vector<32x64xf32>
    tpu.vector_store %arg7[%c32_387, %c0_388], %443 {strides = array<i32>} : memref<224x128xf32, #tpu.memory_space<vmem>>, vector<32x64xf32>,
    %445 = vector.extract_strided_slice %434 {offsets = [0, 64], sizes = [32, 64], strides = [1, 1]} : vector<32x128xf32> to vector<32x64xf32>
    %c32_389 = arith.constant 32 : index
    %c64_390 = arith.constant 64 : index
    %446 = vector.load %arg7[%c32_389, %c64_390] : memref<224x128xf32, #tpu.memory_space<vmem>>, vector<32x64xf32>
    tpu.vector_store %arg7[%c32_389, %c64_390], %445 {strides = array<i32>} : memref<224x128xf32, #tpu.memory_space<vmem>>, vector<32x64xf32>,
    %cst_391 = arith.constant 0.000000e+00 : f32
    %447 = vector.broadcast %cst_391 : f32 to vector<32x1xf32>
    %c64_392 = arith.constant 64 : index
    %c63 = arith.constant 63 : index
    %448 = vector.load %arg7[%c64_392, %c63] : memref<224x128xf32, #tpu.memory_space<vmem>>, vector<32x1xf32>
    tpu.vector_store %arg7[%c64_392, %c63], %447 {strides = array<i32>} : memref<224x128xf32, #tpu.memory_space<vmem>>, vector<32x1xf32>,
    %449 = vector.extract_strided_slice %434 {offsets = [0, 1], sizes = [32, 63], strides = [1, 1]} : vector<32x128xf32> to vector<32x63xf32>
    %c64_393 = arith.constant 64 : index
    %c0_394 = arith.constant 0 : index
    %450 = vector.load %arg7[%c64_393, %c0_394] : memref<224x128xf32, #tpu.memory_space<vmem>>, vector<32x63xf32>
    tpu.vector_store %arg7[%c64_393, %c0_394], %449 {strides = array<i32>} : memref<224x128xf32, #tpu.memory_space<vmem>>, vector<32x63xf32>,
    %cst_395 = arith.constant 0.000000e+00 : f32
    %451 = vector.broadcast %cst_395 : f32 to vector<32x1xf32>
    %c64_396 = arith.constant 64 : index
    %c127 = arith.constant 127 : index
    %452 = vector.load %arg7[%c64_396, %c127] : memref<224x128xf32, #tpu.memory_space<vmem>>, vector<32x1xf32>
    tpu.vector_store %arg7[%c64_396, %c127], %451 {strides = array<i32>} : memref<224x128xf32, #tpu.memory_space<vmem>>, vector<32x1xf32>,
    %453 = vector.extract_strided_slice %434 {offsets = [0, 65], sizes = [32, 63], strides = [1, 1]} : vector<32x128xf32> to vector<32x63xf32>
    %c64_397 = arith.constant 64 : index
    %c64_398 = arith.constant 64 : index
    %454 = vector.load %arg7[%c64_397, %c64_398] : memref<224x128xf32, #tpu.memory_space<vmem>>, vector<32x63xf32>
    tpu.vector_store %arg7[%c64_397, %c64_398], %453 {strides = array<i32>} : memref<224x128xf32, #tpu.memory_space<vmem>>, vector<32x63xf32>,
    %c0_399 = arith.constant 0 : index
    %c1101 = arith.constant 1101 : index
    %455 = vector.load %arg1[%c0_399, %c1101] : memref<32x1295xf32, #tpu.memory_space<vmem>>, vector<32x96xf32>
    %c0_400 = arith.constant 0 : index
    %c0_401 = arith.constant 0 : index
    %456 = vector.load %arg7[%c0_400, %c0_401] : memref<224x128xf32, #tpu.memory_space<vmem>>, vector<96x128xf32>
    %cst_402 = arith.constant dense<0.000000e+00> : vector<32x128xf32>
    %457 = tpu.matmul %455, %456, %cst_402 {dimension_numbers = #tpu.dot_dimension_numbers<[1], [0], [0], [1], [0, 0, 1, 1], [], []>} : vector<32x96xf32>, vector<96x128xf32>, vector<32x128xf32> -> vector<32x128xf32>
    %c0_403 = arith.constant 0 : index
    %c1197 = arith.constant 1197 : index
    %458 = vector.load %arg1[%c0_403, %c1197] : memref<32x1295xf32, #tpu.memory_space<vmem>>, vector<32x1xf32>
    %459 = vector.broadcast %458 : vector<32x1xf32> to vector<32x128xf32>
    %460 = arith.addf %457, %459 : vector<32x128xf32>
    %461 = arith.addf %460, %434 : vector<32x128xf32>
    %cst_404 = arith.constant 0.000000e+00 : f32
    %462 = vector.broadcast %cst_404 : f32 to vector<32x128xf32>
    %463 = arith.cmpf oge, %461, %462 : vector<32x128xf32>
    %cst_405 = arith.constant 2.000000e-01 : f32
    %464 = vector.broadcast %cst_405 : f32 to vector<32x128xf32>
    %465 = arith.mulf %464, %461 : vector<32x128xf32>
    %466 = arith.select %463, %461, %465 : vector<32x128xi1>, vector<32x128xf32>
    %cst_406 = arith.constant 0.000000e+00 : f32
    %467 = vector.broadcast %cst_406 : f32 to vector<32x3xf32>
    %c0_407 = arith.constant 0 : index
    %c0_408 = arith.constant 0 : index
    %468 = vector.load %arg7[%c0_407, %c0_408] : memref<224x128xf32, #tpu.memory_space<vmem>>, vector<32x3xf32>
    tpu.vector_store %arg7[%c0_407, %c0_408], %467 {strides = array<i32>} : memref<224x128xf32, #tpu.memory_space<vmem>>, vector<32x3xf32>,
    %469 = vector.extract_strided_slice %466 {offsets = [0, 0], sizes = [32, 61], strides = [1, 1]} : vector<32x128xf32> to vector<32x61xf32>
    %c0_409 = arith.constant 0 : index
    %c3_410 = arith.constant 3 : index
    %470 = vector.load %arg7[%c0_409, %c3_410] : memref<224x128xf32, #tpu.memory_space<vmem>>, vector<32x61xf32>
    tpu.vector_store %arg7[%c0_409, %c3_410], %469 {strides = array<i32>} : memref<224x128xf32, #tpu.memory_space<vmem>>, vector<32x61xf32>,
    %cst_411 = arith.constant 0.000000e+00 : f32
    %471 = vector.broadcast %cst_411 : f32 to vector<32x3xf32>
    %c0_412 = arith.constant 0 : index
    %c64_413 = arith.constant 64 : index
    %472 = vector.load %arg7[%c0_412, %c64_413] : memref<224x128xf32, #tpu.memory_space<vmem>>, vector<32x3xf32>
    tpu.vector_store %arg7[%c0_412, %c64_413], %471 {strides = array<i32>} : memref<224x128xf32, #tpu.memory_space<vmem>>, vector<32x3xf32>,
    %473 = vector.extract_strided_slice %466 {offsets = [0, 64], sizes = [32, 61], strides = [1, 1]} : vector<32x128xf32> to vector<32x61xf32>
    %c0_414 = arith.constant 0 : index
    %c67_415 = arith.constant 67 : index
    %474 = vector.load %arg7[%c0_414, %c67_415] : memref<224x128xf32, #tpu.memory_space<vmem>>, vector<32x61xf32>
    tpu.vector_store %arg7[%c0_414, %c67_415], %473 {strides = array<i32>} : memref<224x128xf32, #tpu.memory_space<vmem>>, vector<32x61xf32>,
    %475 = vector.extract_strided_slice %466 {offsets = [0, 0], sizes = [32, 64], strides = [1, 1]} : vector<32x128xf32> to vector<32x64xf32>
    %c32_416 = arith.constant 32 : index
    %c0_417 = arith.constant 0 : index
    %476 = vector.load %arg7[%c32_416, %c0_417] : memref<224x128xf32, #tpu.memory_space<vmem>>, vector<32x64xf32>
    tpu.vector_store %arg7[%c32_416, %c0_417], %475 {strides = array<i32>} : memref<224x128xf32, #tpu.memory_space<vmem>>, vector<32x64xf32>,
    %477 = vector.extract_strided_slice %466 {offsets = [0, 64], sizes = [32, 64], strides = [1, 1]} : vector<32x128xf32> to vector<32x64xf32>
    %c32_418 = arith.constant 32 : index
    %c64_419 = arith.constant 64 : index
    %478 = vector.load %arg7[%c32_418, %c64_419] : memref<224x128xf32, #tpu.memory_space<vmem>>, vector<32x64xf32>
    tpu.vector_store %arg7[%c32_418, %c64_419], %477 {strides = array<i32>} : memref<224x128xf32, #tpu.memory_space<vmem>>, vector<32x64xf32>,
    %cst_420 = arith.constant 0.000000e+00 : f32
    %479 = vector.broadcast %cst_420 : f32 to vector<32x3xf32>
    %c64_421 = arith.constant 64 : index
    %c61 = arith.constant 61 : index
    %480 = vector.load %arg7[%c64_421, %c61] : memref<224x128xf32, #tpu.memory_space<vmem>>, vector<32x3xf32>
    tpu.vector_store %arg7[%c64_421, %c61], %479 {strides = array<i32>} : memref<224x128xf32, #tpu.memory_space<vmem>>, vector<32x3xf32>,
    %481 = vector.extract_strided_slice %466 {offsets = [0, 3], sizes = [32, 61], strides = [1, 1]} : vector<32x128xf32> to vector<32x61xf32>
    %c64_422 = arith.constant 64 : index
    %c0_423 = arith.constant 0 : index
    %482 = vector.load %arg7[%c64_422, %c0_423] : memref<224x128xf32, #tpu.memory_space<vmem>>, vector<32x61xf32>
    tpu.vector_store %arg7[%c64_422, %c0_423], %481 {strides = array<i32>} : memref<224x128xf32, #tpu.memory_space<vmem>>, vector<32x61xf32>,
    %cst_424 = arith.constant 0.000000e+00 : f32
    %483 = vector.broadcast %cst_424 : f32 to vector<32x3xf32>
    %c64_425 = arith.constant 64 : index
    %c125 = arith.constant 125 : index
    %484 = vector.load %arg7[%c64_425, %c125] : memref<224x128xf32, #tpu.memory_space<vmem>>, vector<32x3xf32>
    tpu.vector_store %arg7[%c64_425, %c125], %483 {strides = array<i32>} : memref<224x128xf32, #tpu.memory_space<vmem>>, vector<32x3xf32>,
    %485 = vector.extract_strided_slice %466 {offsets = [0, 67], sizes = [32, 61], strides = [1, 1]} : vector<32x128xf32> to vector<32x61xf32>
    %c64_426 = arith.constant 64 : index
    %c64_427 = arith.constant 64 : index
    %486 = vector.load %arg7[%c64_426, %c64_427] : memref<224x128xf32, #tpu.memory_space<vmem>>, vector<32x61xf32>
    tpu.vector_store %arg7[%c64_426, %c64_427], %485 {strides = array<i32>} : memref<224x128xf32, #tpu.memory_space<vmem>>, vector<32x61xf32>,
    %c0_428 = arith.constant 0 : index
    %c1198 = arith.constant 1198 : index
    %487 = vector.load %arg1[%c0_428, %c1198] : memref<32x1295xf32, #tpu.memory_space<vmem>>, vector<32x96xf32>
    %c0_429 = arith.constant 0 : index
    %c0_430 = arith.constant 0 : index
    %488 = vector.load %arg7[%c0_429, %c0_430] : memref<224x128xf32, #tpu.memory_space<vmem>>, vector<96x128xf32>
    %cst_431 = arith.constant dense<0.000000e+00> : vector<32x128xf32>
    %489 = tpu.matmul %487, %488, %cst_431 {dimension_numbers = #tpu.dot_dimension_numbers<[1], [0], [0], [1], [0, 0, 1, 1], [], []>} : vector<32x96xf32>, vector<96x128xf32>, vector<32x128xf32> -> vector<32x128xf32>
    %c0_432 = arith.constant 0 : index
    %c1294 = arith.constant 1294 : index
    %490 = vector.load %arg1[%c0_432, %c1294] : memref<32x1295xf32, #tpu.memory_space<vmem>>, vector<32x1xf32>
    %491 = vector.broadcast %490 : vector<32x1xf32> to vector<32x128xf32>
    %492 = arith.addf %489, %491 : vector<32x128xf32>
    %493 = arith.addf %492, %466 : vector<32x128xf32>
    %cst_433 = arith.constant 0.000000e+00 : f32
    %494 = vector.broadcast %cst_433 : f32 to vector<32x128xf32>
    %495 = arith.cmpf oge, %493, %494 : vector<32x128xf32>
    %cst_434 = arith.constant 2.000000e-01 : f32
    %496 = vector.broadcast %cst_434 : f32 to vector<32x128xf32>
    %497 = arith.mulf %496, %493 : vector<32x128xf32>
    %498 = arith.select %495, %493, %497 : vector<32x128xi1>, vector<32x128xf32>
    %499 = vector.extract_strided_slice %498 {offsets = [0, 0], sizes = [32, 64], strides = [1, 1]} : vector<32x128xf32> to vector<32x64xf32>
    %c0_435 = arith.constant 0 : index
    %c0_436 = arith.constant 0 : index
    %c0_437 = arith.constant 0 : index
    %500 = vector.load %arg6[%c0_435, %c0_436, %c0_437] : memref<2x32x64xf32, #tpu.memory_space<vmem>>, vector<1x32x64xf32>
    %501 = vector.shape_cast %500 : vector<1x32x64xf32> to vector<32x64xf32>
    %502 = vector.shape_cast %499 : vector<32x64xf32> to vector<1x32x64xf32>
    tpu.vector_store %arg6[%c0_435, %c0_436, %c0_437], %502 {strides = array<i32>} : memref<2x32x64xf32, #tpu.memory_space<vmem>>, vector<1x32x64xf32>,
    %503 = vector.extract_strided_slice %498 {offsets = [0, 64], sizes = [32, 64], strides = [1, 1]} : vector<32x128xf32> to vector<32x64xf32>
    %c1_438 = arith.constant 1 : index
    %c0_439 = arith.constant 0 : index
    %c0_440 = arith.constant 0 : index
    %504 = vector.load %arg6[%c1_438, %c0_439, %c0_440] : memref<2x32x64xf32, #tpu.memory_space<vmem>>, vector<1x32x64xf32>
    %505 = vector.shape_cast %504 : vector<1x32x64xf32> to vector<32x64xf32>
    %506 = vector.shape_cast %503 : vector<32x64xf32> to vector<1x32x64xf32>
    tpu.vector_store %arg6[%c1_438, %c0_439, %c0_440], %506 {strides = array<i32>} : memref<2x32x64xf32, #tpu.memory_space<vmem>>, vector<1x32x64xf32>,
    return
  }
  func.func @transform_0(%arg0: i32) -> (i32, i32) {
    %c0_i32 = arith.constant 0 : i32
    %c0_i32_0 = arith.constant 0 : i32
    %c0_i32_1 = arith.constant 0 : i32
    return %c0_i32, %c0_i32_0 : i32, i32
  }
  func.func @transform_1(%arg0: i32) -> (i32, i32) {
    %c0_i32 = arith.constant 0 : i32
    %c0_i32_0 = arith.constant 0 : i32
    %c0_i32_1 = arith.constant 0 : i32
    return %c0_i32, %c0_i32_0 : i32, i32
  }
  func.func @transform_2(%arg0: i32) -> (i32, i32) {
    %c0_i32 = arith.constant 0 : i32
    %c0_i32_0 = arith.constant 0 : i32
    %c0_i32_1 = arith.constant 0 : i32
    return %c0_i32, %c0_i32_0 : i32, i32
  }
  func.func @transform_3(%arg0: i32) -> (i32, i32) {
    %c0_i32 = arith.constant 0 : i32
    %c0_i32_0 = arith.constant 0 : i32
    %c0_i32_1 = arith.constant 0 : i32
    return %c0_i32, %c0_i32_0 : i32, i32
  }
  func.func @transform_4(%arg0: i32) -> (i32, i32) {
    %c0_i32 = arith.constant 0 : i32
    %c0_i32_0 = arith.constant 0 : i32
    %c0_i32_1 = arith.constant 0 : i32
    return %c0_i32, %c0_i32_0 : i32, i32
  }
  func.func @transform_5(%arg0: i32) -> (i32, i32, i32) {
    %c0_i32 = arith.constant 0 : i32
    %c0_i32_0 = arith.constant 0 : i32
    %c0_i32_1 = arith.constant 0 : i32
    %c0_i32_2 = arith.constant 0 : i32
    return %c0_i32, %c0_i32_0, %c0_i32_1 : i32, i32, i32
  }
}

</mosaic_0001>

<llo_original>
// kernel: forward.1
$region0: #{forward.1}
  #allocation0 [shape = 'u32[]', space=smem, size = 0x4, offset = 0x4, fixed_abs, tag = 'smem constant byte address 0x4 - core index']
  #allocation1 [shape = 'u32[144,128]{1,0:T(1,128)}', space=vmem, size = 0x12000, scoped, tag = 'internal scratch']
  #allocation2 [shape = 'f32[224,128]{1,0:T(8,128)}', space=vmem, size = 0x1c000, scoped, tag = 'scratch operand']
  %s0 = inlined_call_operand.hbm [shape: f32[32,1295], index: 0, kind: input, shape index: {}]
  %s1 = inlined_call_operand.vmem [shape: f32[32,1], index: 1, kind: input, shape index: {}]
  %s2 = inlined_call_operand.vmem [shape: s32[1,16], index: 2, kind: input, shape index: {}]
  %s3 = inlined_call_operand.vmem [shape: f32[1,16], index: 3, kind: input, shape index: {}]
  %s4 = inlined_call_operand.vmem [shape: f32[1,128], index: 4, kind: input, shape index: {}]
  %s5 = inlined_call_operand.hbm [shape: f32[2,32,64], index: 5, kind: output, shape index: {}]
  %s6 = sld [smem:[#allocation0]]
  $region34: #{forward.1} parent=0
    _
  %s8 = ssub.s32 1, %s6
  %s9 = scalar_select 0, %s8, %s6
  $region1: #{forward.1} parent=0
    #allocation3 [shape = 'u8[180224]{0}', space=vmem, size = 0x2c000, scoped, tag = 'input window, operand 0, single buffered']
    #allocation4 [shape = 's32[1]{0}', space=sflag, size = 0x4, scoped, tag = 'scoped memory for forward.1']
    #allocation5 [shape = 's32[1]{0}', space=sflag, size = 0x4, scoped, tag = 'scoped memory for forward.1']
    #allocation6 [shape = 'u8[32768]{0}', space=vmem, size = 0x8000, scoped, tag = 'output window, operand 0, single buffered']
    %10 = vsyncpa [#allocation4], 0
    %11 = vsyncpa [#allocation5], 0
    // Predicated region
    $region2: #{forward.1} parent=1 // pred_check
      _
    $region3: #{forward.1} parent=1 // pred_check_branch
      %13 = sbr.rel (0) target = $region5
    $region4: #{forward.1} parent=1 // pred_region
      %s15 = ssub.s32 5632, 5632
      %16 = vsyncadd [#allocation4], %s15
      %s17 = sshll.u32 [#allocation3], 4
      %s18 = int_to_ptr.vmem [resolvable:$true] %s17
      %23 = dma.hbm_to_vmem [thread:$0]  %s0, 5632, %s18, [#allocation4], 1408, 1408, 88
    $region5: #{forward.1} parent=1 // pred_fallthru
      _
    // Predicated region
    $region6: #{forward.1} parent=1 // pred_check
      _
    $region7: #{forward.1} parent=1 // pred_check_branch
      %25 = sbr.rel (0) target = $region9
    $region8: #{forward.1} parent=1 // pred_region
      _
    $region9: #{forward.1} parent=1 // pred_fallthru
      _
    // Predicated region
    $region10: #{forward.1} parent=1 // pred_check
      _
    $region11: #{forward.1} parent=1 // pred_check_branch
      %27 = sbr.rel (0) target = $region13
    $region12: #{forward.1} parent=1 // pred_region
      _
    $region13: #{forward.1} parent=1 // pred_fallthru
      _
    // Predicated region
    $region14: #{forward.1} parent=1 // pred_check
      _
    $region15: #{forward.1} parent=1 // pred_check_branch
      %29 = sbr.rel (0) target = $region17
    $region16: #{forward.1} parent=1 // pred_region
      _
    $region17: #{forward.1} parent=1 // pred_fallthru
      _
    // Predicated region
    $region18: #{forward.1} parent=1 // pred_check
      _
    $region19: #{forward.1} parent=1 // pred_check_branch
      %31 = sbr.rel (0) target = $region21
    $region20: #{forward.1} parent=1 // pred_region
      _
    $region21: #{forward.1} parent=1 // pred_fallthru
      _
    // Predicated region
    $region22: #{forward.1} parent=1 // pred_check
      _
    $region23: #{forward.1} parent=1 // pred_check_branch
      %33 = sbr.rel (0) target = $region25
    $region24: #{forward.1} parent=1 // pred_region
      %34 = dma.done [#allocation4], 5632
    $region25: #{forward.1} parent=1 // pred_fallthru
      _
    %v35 = vlaneseq
    %v36 = vshrl.u32 %v35, 7
    %v37 = vadd.s32 %v36, 8
    %v38 = vld [vmem:[%s2] sm:$0x1]
    %v39 = vlaneseq
    %v40 = vshrl.u32 %v39, 7
    %v41 = vsub.s32 0, %v40
    %v42 = vrot.slane %v38, %v41
    %vm43 = vcmp.eq.s32.totalorder %v36, %v42
    %vm44 = vcmp.eq.s32.totalorder %v37, %v42
    %v45 = vsel %vm43, 1, 0
    %v46 = vsel %vm44, 1, 0
    %v47 = vcvt.s32.f32 %v45
    %v48 = vcvt.s32.f32 %v46
    %v49 = vld [vmem:[#allocation3] sm:$0xff]
    %v50 = vld [vmem:[#allocation3 + $0x58] sm:$0xff]
    %v51 = vld [vmem:[#allocation3 + $0xb0] sm:$0xff]
    %v52 = vld [vmem:[#allocation3 + $0x108] sm:$0xff]
    %vm53 = vcmask 130048
    %v55 = vsel %vm53, %v49, 0
    %v58 = vsel %vm53, %v50, 0
    %v61 = vsel %vm53, %v51, 0
    %v64 = vsel %vm53, %v52, 0
    %66 = vmatprep.subr.mxu0 0.0
    %67 = vmatpush1.msra.mxu0 0.0
    %68 = vmatprep.subr.mxu0 0.0
    %69 = vmatpush1.msra.mxu0 0.0
    %70 = vmatprep.subr.mxu0 0.0
    %71 = vmatpush1.msra.mxu0 0.0
    %72 = vmatprep.subr.mxu0 0.0
    %73 = vmatpush1.msra.mxu0 0.0
    %74 = vmatprep.subr.mxu0 0.0
    %75 = vmatpush1.msra.mxu0 0.0
    %76 = vmatprep.subr.mxu0 0.0
    %77 = vmatpush1.msra.mxu0 0.0
    %78 = vmatprep.subr.mxu0 0.0
    %79 = vmatpush1.msra.mxu0 0.0
    %80 = vmatprep.subr.mxu0 0.0
    %81 = vmatpush1.msra.mxu0 0.0
    %82 = vmatprep.subr.mxu0 0.0
    %83 = vmatpush1.msra.mxu0 0.0
    %84 = vmatprep.subr.mxu0 0.0
    %85 = vmatpush1.msra.mxu0 0.0
    %86 = vmatprep.subr.mxu0 0.0
    %87 = vmatpush1.msra.mxu0 0.0
    %88 = vmatprep.subr.mxu0 0.0
    %89 = vmatpush1.msra.mxu0 0.0
    %90 = vmatprep.subr.mxu0 0.0
    %91 = vmatpush1.msra.mxu0 0.0
    %92 = vmatprep.subr.mxu0 0.0
    %93 = vmatpush1.msra.mxu0 0.0
    %94 = vmatprep.subr.mxu0 0.0
    %95 = vmatpush1.msra.mxu0 %v48
    %96 = vmatprep.subr.mxu0 0.0
    %97 = vmatpush1.msra.mxu0 %v47
    %98 = vmatprep.subr.mxu0 0.0
    %99 = vmatpush2.msra.mxu0 0.0
    %100 = vmatprep.subr.mxu0 0.0
    %101 = vmatpush2.msra.mxu0 0.0
    %102 = vmatprep.subr.mxu0 0.0
    %103 = vmatpush2.msra.mxu0 0.0
    %104 = vmatprep.subr.mxu0 0.0
    %105 = vmatpush2.msra.mxu0 0.0
    %106 = vmatprep.subr.mxu0 0.0
    %107 = vmatpush2.msra.mxu0 0.0
    %108 = vmatprep.subr.mxu0 0.0
    %109 = vmatpush2.msra.mxu0 0.0
    %110 = vmatprep.subr.mxu0 0.0
    %111 = vmatpush2.msra.mxu0 0.0
    %112 = vmatprep.subr.mxu0 0.0
    %113 = vmatpush2.msra.mxu0 0.0
    %114 = vmatprep.subr.mxu0 0.0
    %115 = vmatpush2.msra.mxu0 0.0
    %116 = vmatprep.subr.mxu0 0.0
    %117 = vmatpush2.msra.mxu0 0.0
    %118 = vmatprep.subr.mxu0 0.0
    %119 = vmatpush2.msra.mxu0 0.0
    %120 = vmatprep.subr.mxu0 0.0
    %121 = vmatpush2.msra.mxu0 0.0
    %122 = vmatprep.subr.mxu0 0.0
    %123 = vmatpush2.msra.mxu0 0.0
    %124 = vmatprep.subr.mxu0 0.0
    %125 = vmatpush2.msra.mxu0 0.0
    %126 = vmatprep.subr.mxu0 0.0
    %127 = vmatpush2.msra.mxu0 0.0
    %128 = vmatprep.subr.mxu0 0.0
    %129 = vmatpush2.msra.mxu0 0.0
    %130 = vmatprep.mubr.f32.mxu0 0.0
    %131 = vmatmul.mubr.f32.gmra.mxu0 %v55
    %v132 = vpop.f32.mrf.mxu0
    %v133 = vadd.f32 0.0, %v132
    %v134 = vpop.f32.mrf.mxu0
    %135 = vmatprep.mubr.f32.mxu0 0.0
    %136 = vmatmul.mubr.f32.gmra.mxu0 %v58
    %v137 = vpop.f32.mrf.mxu0
    %v138 = vadd.f32 0.0, %v137
    %v139 = vpop.f32.mrf.mxu0
    %140 = vmatprep.mubr.f32.mxu0 0.0
    %141 = vmatmul.mubr.f32.gmra.mxu0 %v61
    %v142 = vpop.f32.mrf.mxu0
    %v143 = vadd.f32 0.0, %v142
    %v144 = vpop.f32.mrf.mxu0
    %145 = vmatprep.mubr.f32.mxu0 0.0
    %146 = vmatmul.mubr.f32.gmra.mxu0 %v64
    %v147 = vpop.f32.mrf.mxu0
    %v148 = vadd.f32 0.0, %v147
    %v149 = vpop.f32.mrf.mxu0
    %150 = vdwg.mxu0
    %v151 = vld [vmem:[%s3] sm:$0x1]
    %vm152 = vcmask 129024
    %153 = vst.msk [vmem:[#allocation2] sm:$0x7f] %vm152, 0.0
    %v155 = vlaneseq
    %v156 = vshrl.u32 %v155, 7
    %v157 = vsub.s32 0, %v156
    %v158 = vrot.slane %v151, %v157
    %159 = vrot.lane.b32.xlu0 %v158, 3
    %v160 = vpop.permute.xlu0 %159
    %vm162 = vcmask 57368
    %163 = vst.msk [vmem:[#allocation2] sm:$0x1] %vm162, %v160
    %vm164 = vcmask 122968
    %165 = vst.msk [vmem:[#allocation2] sm:$0x1] %vm164, %v160
    %166 = vrot.lane.b32.xlu0 %v158, 2
    %v167 = vpop.permute.xlu0 %166
    %vm169 = vcmask 57360
    %170 = vst.msk [vmem:[#allocation2 + $0x1] sm:$0x1] %vm169, %v167
    %vm171 = vcmask 122960
    %172 = vst.msk [vmem:[#allocation2 + $0x1] sm:$0x1] %vm171, %v167
    %173 = vrot.lane.b32.xlu0 %v158, 1
    %v174 = vpop.permute.xlu0 %173
    %vm176 = vcmask 57352
    %177 = vst.msk [vmem:[#allocation2 + $0x2] sm:$0x1] %vm176, %v174
    %vm178 = vcmask 122952
    %179 = vst.msk [vmem:[#allocation2 + $0x2] sm:$0x1] %vm178, %v174
    %vm180 = vcmask 57344
    %181 = vst.msk [vmem:[#allocation2 + $0x3] sm:$0x1] %vm180, %v151
    %vm182 = vcmask 122944
    %183 = vst.msk [vmem:[#allocation2 + $0x3] sm:$0x1] %vm182, %v151
    %184 = vrot.lane.b32.xlu0 %v158, 127
    %v185 = vpop.permute.xlu0 %184
    %vm187 = vcmask 49152
    %188 = vst.msk [vmem:[#allocation2 + $0x4] sm:$0x1] %vm187, %v185
    %vm189 = vcmask 114752
    %190 = vst.msk [vmem:[#allocation2 + $0x4] sm:$0x1] %vm189, %v185
    %191 = vrot.lane.b32.xlu0 %v158, 126
    %v192 = vpop.permute.xlu0 %191
    %vm194 = vcmask 40960
    %195 = vst.msk [vmem:[#allocation2 + $0x5] sm:$0x1] %vm194, %v192
    %vm196 = vcmask 106560
    %197 = vst.msk [vmem:[#allocation2 + $0x5] sm:$0x1] %vm196, %v192
    %198 = vrot.lane.b32.xlu0 %v158, 125
    %v199 = vpop.permute.xlu0 %198
    %vm201 = vcmask 32768
    %202 = vst.msk [vmem:[#allocation2 + $0x6] sm:$0x1] %vm201, %v199
    %vm203 = vcmask 98368
    %204 = vst.msk [vmem:[#allocation2 + $0x6] sm:$0x1] %vm203, %v199
    %v205 = vld [vmem:[#allocation3] sm:$0xff]
    %v206 = vld [vmem:[#allocation3 + $0x58] sm:$0xff]
    %v207 = vld [vmem:[#allocation2] sm:$0x7f]
    %209 = vset.pattern.permute.xlu0 23
    %210 = vperm.xlu0 %209, %v205
    %v211 = vpop.permute.xlu0 %210
    %214 = vset.pattern.permute.xlu0 23
    %215 = vperm.xlu0 %214, %v206
    %v216 = vpop.permute.xlu0 %215
    %218 = vrot.lane.b32.xlu0 %v205, 112
    %v219 = vpop.permute.xlu0 %218
    %220 = vrot.lane.b32.xlu0 %v206, 112
    %v221 = vpop.permute.xlu0 %220
    %vm222 = vcmask 56320
    %v223 = vsel %vm222, %v219, 0
    %v225 = vsel %vm222, %v221, 0
    %vm227 = vcmask 1046528
    %v229 = vsel %vm227, %v207, 0
    %231 = vmatprep.subr.mxu0 0.0
    %232 = vmatpush1.msra.mxu0 0.0
    %233 = vmatprep.subr.mxu0 0.0
    %234 = vmatpush1.msra.mxu0 0.0
    %235 = vmatprep.subr.mxu0 0.0
    %236 = vmatpush1.msra.mxu0 0.0
    %237 = vmatprep.subr.mxu0 0.0
    %238 = vmatpush1.msra.mxu0 0.0
    %239 = vmatprep.subr.mxu0 0.0
    %240 = vmatpush1.msra.mxu0 0.0
    %241 = vmatprep.subr.mxu0 0.0
    %242 = vmatpush1.msra.mxu0 0.0
    %243 = vmatprep.subr.mxu0 0.0
    %244 = vmatpush1.msra.mxu0 0.0
    %245 = vmatprep.subr.mxu0 0.0
    %246 = vmatpush1.msra.mxu0 0.0
    %247 = vmatprep.subr.mxu0 0.0
    %248 = vmatpush1.msra.mxu0 0.0
    %249 = vmatprep.subr.mxu0 0.0
    %250 = vmatpush1.msra.mxu0 0.0
    %251 = vmatprep.subr.mxu0 0.0
    %252 = vmatpush1.msra.mxu0 0.0
    %253 = vmatprep.subr.mxu0 0.0
    %254 = vmatpush1.msra.mxu0 0.0
    %255 = vmatprep.subr.mxu0 0.0
    %256 = vmatpush1.msra.mxu0 0.0
    %257 = vmatprep.subr.mxu0 0.0
    %258 = vmatpush1.msra.mxu0 0.0
    %259 = vmatprep.subr.mxu0 0.0
    %260 = vmatpush1.msra.mxu0 0.0
    %261 = vmatprep.subr.mxu0 0.0
    %262 = vmatpush1.msra.mxu0 %v229
    %263 = vmatprep.subr.mxu0 0.0
    %264 = vmatpush2.msra.mxu0 0.0
    %265 = vmatprep.subr.mxu0 0.0
    %266 = vmatpush2.msra.mxu0 0.0
    %267 = vmatprep.subr.mxu0 0.0
    %268 = vmatpush2.msra.mxu0 0.0
    %269 = vmatprep.subr.mxu0 0.0
    %270 = vmatpush2.msra.mxu0 0.0
    %271 = vmatprep.subr.mxu0 0.0
    %272 = vmatpush2.msra.mxu0 0.0
    %273 = vmatprep.subr.mxu0 0.0
    %274 = vmatpush2.msra.mxu0 0.0
    %275 = vmatprep.subr.mxu0 0.0
    %276 = vmatpush2.msra.mxu0 0.0
    %277 = vmatprep.subr.mxu0 0.0
    %278 = vmatpush2.msra.mxu0 0.0
    %279 = vmatprep.subr.mxu0 0.0
    %280 = vmatpush2.msra.mxu0 0.0
    %281 = vmatprep.subr.mxu0 0.0
    %282 = vmatpush2.msra.mxu0 0.0
    %283 = vmatprep.subr.mxu0 0.0
    %284 = vmatpush2.msra.mxu0 0.0
    %285 = vmatprep.subr.mxu0 0.0
    %286 = vmatpush2.msra.mxu0 0.0
    %287 = vmatprep.subr.mxu0 0.0
    %288 = vmatpush2.msra.mxu0 0.0
    %289 = vmatprep.subr.mxu0 0.0
    %290 = vmatpush2.msra.mxu0 0.0
    %291 = vmatprep.subr.mxu0 0.0
    %292 = vmatpush2.msra.mxu0 0.0
    %293 = vmatprep.subr.mxu0 0.0
    %294 = vmatpush2.msra.mxu0 0.0
    %295 = vmatprep.mubr.f32.mxu0 0.0
    %296 = vmatmul.mubr.f32.gmra.mxu0 %v223
    %v297 = vpop.f32.mrf.mxu0
    %v298 = vadd.f32 %v211, %v297
    %v299 = vpop.f32.mrf.mxu0
    %300 = vmatprep.mubr.f32.mxu0 0.0
    %301 = vmatmul.mubr.f32.gmra.mxu0 %v225
    %v302 = vpop.f32.mrf.mxu0
    %v303 = vadd.f32 %v216, %v302
    %v304 = vpop.f32.mrf.mxu0
    %305 = vdwg.mxu0
    %vm306 = vcmp.ge.f32.partialorder %v298, 0.0
    %vm307 = vcmp.ge.f32.partialorder %v303, 0.0
    %v308 = vmul.f32 %v298, 0.2
    %v309 = vmul.f32 %v303, 0.2
    %v310 = vsel %vm306, %v298, %v308
    %v311 = vsel %vm307, %v303, %v309
    %vm312 = vcmask 23552
    %313 = vst.msk [vmem:[#allocation2] sm:$0xff] %vm312, 0.0
    %314 = vst.msk [vmem:[#allocation2 + $0x8] sm:$0xff] %vm312, 0.0
    %317 = vrot.lane.b32.xlu0 %v310, 3
    %v318 = vpop.permute.xlu0 %317
    %319 = vrot.lane.b32.xlu0 %v311, 3
    %v320 = vpop.permute.xlu0 %319
    %vm323 = vcmask 64536
    %324 = vst.msk [vmem:[#allocation2] sm:$0xff] %vm323, %v318
    %325 = vst.msk [vmem:[#allocation2 + $0x8] sm:$0xff] %vm323, %v320
    %vm326 = vcmask 89152
    %327 = vst.msk [vmem:[#allocation2] sm:$0xff] %vm326, 0.0
    %328 = vst.msk [vmem:[#allocation2 + $0x8] sm:$0xff] %vm326, 0.0
    %vm329 = vcmask 130136
    %330 = vst.msk [vmem:[#allocation2] sm:$0xff] %vm329, %v318
    %331 = vst.msk [vmem:[#allocation2 + $0x8] sm:$0xff] %vm329, %v320
    %vm332 = vcmask 15360
    %333 = vst.msk [vmem:[#allocation2 + $0x10] sm:$0xff] %vm332, 0.0
    %334 = vst.msk [vmem:[#allocation2 + $0x18] sm:$0xff] %vm332, 0.0
    %335 = vrot.lane.b32.xlu0 %v310, 2
    %v336 = vpop.permute.xlu0 %335
    %337 = vrot.lane.b32.xlu0 %v311, 2
    %v338 = vpop.permute.xlu0 %337
    %vm341 = vcmask 64528
    %342 = vst.msk [vmem:[#allocation2 + $0x10] sm:$0xff] %vm341, %v336
    %343 = vst.msk [vmem:[#allocation2 + $0x18] sm:$0xff] %vm341, %v338
    %vm344 = vcmask 80960
    %345 = vst.msk [vmem:[#allocation2 + $0x10] sm:$0xff] %vm344, 0.0
    %346 = vst.msk [vmem:[#allocation2 + $0x18] sm:$0xff] %vm344, 0.0
    %vm347 = vcmask 130128
    %348 = vst.msk [vmem:[#allocation2 + $0x10] sm:$0xff] %vm347, %v336
    %349 = vst.msk [vmem:[#allocation2 + $0x18] sm:$0xff] %vm347, %v338
    %vm350 = vcmask 7168
    %351 = vst.msk [vmem:[#allocation2 + $0x20] sm:$0xff] %vm350, 0.0
    %352 = vst.msk [vmem:[#allocation2 + $0x28] sm:$0xff] %vm350, 0.0
    %353 = vrot.lane.b32.xlu0 %v310, 1
    %v354 = vpop.permute.xlu0 %353
    %355 = vrot.lane.b32.xlu0 %v311, 1
    %v356 = vpop.permute.xlu0 %355
    %vm359 = vcmask 64520
    %360 = vst.msk [vmem:[#allocation2 + $0x20] sm:$0xff] %vm359, %v354
    %361 = vst.msk [vmem:[#allocation2 + $0x28] sm:$0xff] %vm359, %v356
    %vm362 = vcmask 72768
    %363 = vst.msk [vmem:[#allocation2 + $0x20] sm:$0xff] %vm362, 0.0
    %364 = vst.msk [vmem:[#allocation2 + $0x28] sm:$0xff] %vm362, 0.0
    %vm365 = vcmask 130120
    %366 = vst.msk [vmem:[#allocation2 + $0x20] sm:$0xff] %vm365, %v354
    %367 = vst.msk [vmem:[#allocation2 + $0x28] sm:$0xff] %vm365, %v356
    %vm368 = vcmask 64512
    %369 = vst.msk [vmem:[#allocation2 + $0x30] sm:$0xff] %vm368, %v310
    %370 = vst.msk [vmem:[#allocation2 + $0x38] sm:$0xff] %vm368, %v311
    %vm371 = vcmask 130112
    %372 = vst.msk [vmem:[#allocation2 + $0x30] sm:$0xff] %vm371, %v310
    %373 = vst.msk [vmem:[#allocation2 + $0x38] sm:$0xff] %vm371, %v311
    %vm374 = vcmask 64568
    %375 = vst.msk [vmem:[#allocation2 + $0x40] sm:$0xff] %vm374, 0.0
    %376 = vst.msk [vmem:[#allocation2 + $0x48] sm:$0xff] %vm374, 0.0
    %377 = vrot.lane.b32.xlu0 %v310, 127
    %v378 = vpop.permute.xlu0 %377
    %379 = vrot.lane.b32.xlu0 %v311, 127
    %v380 = vpop.permute.xlu0 %379
    %383 = vst.msk [vmem:[#allocation2 + $0x40] sm:$0xff] %vm222, %v378
    %384 = vst.msk [vmem:[#allocation2 + $0x48] sm:$0xff] %vm222, %v380
    %vm385 = vcmask 130168
    %386 = vst.msk [vmem:[#allocation2 + $0x40] sm:$0xff] %vm385, 0.0
    %387 = vst.msk [vmem:[#allocation2 + $0x48] sm:$0xff] %vm385, 0.0
    %vm388 = vcmask 121920
    %389 = vst.msk [vmem:[#allocation2 + $0x40] sm:$0xff] %vm388, %v378
    %390 = vst.msk [vmem:[#allocation2 + $0x48] sm:$0xff] %vm388, %v380
    %vm391 = vcmask 64560
    %392 = vst.msk [vmem:[#allocation2 + $0x50] sm:$0xff] %vm391, 0.0
    %393 = vst.msk [vmem:[#allocation2 + $0x58] sm:$0xff] %vm391, 0.0
    %394 = vrot.lane.b32.xlu0 %v310, 126
    %v395 = vpop.permute.xlu0 %394
    %396 = vrot.lane.b32.xlu0 %v311, 126
    %v397 = vpop.permute.xlu0 %396
    %vm400 = vcmask 48128
    %401 = vst.msk [vmem:[#allocation2 + $0x50] sm:$0xff] %vm400, %v395
    %402 = vst.msk [vmem:[#allocation2 + $0x58] sm:$0xff] %vm400, %v397
    %vm403 = vcmask 130160
    %404 = vst.msk [vmem:[#allocation2 + $0x50] sm:$0xff] %vm403, 0.0
    %405 = vst.msk [vmem:[#allocation2 + $0x58] sm:$0xff] %vm403, 0.0
    %vm406 = vcmask 113728
    %407 = vst.msk [vmem:[#allocation2 + $0x50] sm:$0xff] %vm406, %v395
    %408 = vst.msk [vmem:[#allocation2 + $0x58] sm:$0xff] %vm406, %v397
    %vm409 = vcmask 64552
    %410 = vst.msk [vmem:[#allocation2 + $0x60] sm:$0xff] %vm409, 0.0
    %411 = vst.msk [vmem:[#allocation2 + $0x68] sm:$0xff] %vm409, 0.0
    %412 = vrot.lane.b32.xlu0 %v310, 125
    %v413 = vpop.permute.xlu0 %412
    %414 = vrot.lane.b32.xlu0 %v311, 125
    %v415 = vpop.permute.xlu0 %414
    %vm418 = vcmask 39936
    %419 = vst.msk [vmem:[#allocation2 + $0x60] sm:$0xff] %vm418, %v413
    %420 = vst.msk [vmem:[#allocation2 + $0x68] sm:$0xff] %vm418, %v415
    %vm421 = vcmask 130152
    %422 = vst.msk [vmem:[#allocation2 + $0x60] sm:$0xff] %vm421, 0.0
    %423 = vst.msk [vmem:[#allocation2 + $0x68] sm:$0xff] %vm421, 0.0
    %vm424 = vcmask 105536
    %425 = vst.msk [vmem:[#allocation2 + $0x60] sm:$0xff] %vm424, %v413
    %426 = vst.msk [vmem:[#allocation2 + $0x68] sm:$0xff] %vm424, %v415
    %v427 = vld [vmem:[#allocation3] sm:$0xff]
    %v428 = vld [vmem:[#allocation3 + $0x8] sm:$0xff]
    %v429 = vld [vmem:[#allocation3 + $0x58] sm:$0xff]
    %v430 = vld [vmem:[#allocation3 + $0x60] sm:$0xff]
    %v431 = vld [vmem:[#allocation3 + $0xb0] sm:$0xff]
    %v432 = vld [vmem:[#allocation3 + $0xb8] sm:$0xff]
    %v433 = vld [vmem:[#allocation3 + $0x108] sm:$0xff]
    %v434 = vld [vmem:[#allocation3 + $0x110] sm:$0xff]
    %v435 = vld [vmem:[#allocation2] sm:$0xff]
    %v436 = vld [vmem:[#allocation2 + $0x8] sm:$0xff]
    %v437 = vld [vmem:[#allocation2 + $0x10] sm:$0xff]
    %v438 = vld [vmem:[#allocation2 + $0x18] sm:$0xff]
    %v439 = vld [vmem:[#allocation2 + $0x20] sm:$0xff]
    %v440 = vld [vmem:[#allocation2 + $0x28] sm:$0xff]
    %v441 = vld [vmem:[#allocation2 + $0x30] sm:$0xff]
    %v442 = vld [vmem:[#allocation2 + $0x38] sm:$0xff]
    %v443 = vld [vmem:[#allocation2 + $0x40] sm:$0xff]
    %v444 = vld [vmem:[#allocation2 + $0x48] sm:$0xff]
    %v445 = vld [vmem:[#allocation2 + $0x50] sm:$0xff]
    %v446 = vld [vmem:[#allocation2 + $0x58] sm:$0xff]
    %v447 = vld [vmem:[#allocation2 + $0x60] sm:$0xff]
    %v448 = vld [vmem:[#allocation2 + $0x68] sm:$0xff]
    %450 = vset.pattern.permute.xlu0 8
    %451 = vperm.xlu0 %450, %v428
    %v452 = vpop.permute.xlu0 %451
    %455 = vset.pattern.permute.xlu0 8
    %456 = vperm.xlu0 %455, %v430
    %v457 = vpop.permute.xlu0 %456
    %460 = vset.pattern.permute.xlu0 8
    %461 = vperm.xlu0 %460, %v432
    %v462 = vpop.permute.xlu0 %461
    %465 = vset.pattern.permute.xlu0 8
    %466 = vperm.xlu0 %465, %v434
    %v467 = vpop.permute.xlu0 %466
    %473 = vrot.lane.b32.xlu0 %v427, 104
    %v474 = vpop.permute.xlu0 %473
    %475 = vrot.lane.b32.xlu0 %v428, 104
    %v476 = vpop.permute.xlu0 %475
    %477 = vrot.lane.b32.xlu0 %v429, 104
    %v478 = vpop.permute.xlu0 %477
    %479 = vrot.lane.b32.xlu0 %v430, 104
    %v480 = vpop.permute.xlu0 %479
    %481 = vrot.lane.b32.xlu0 %v431, 104
    %v482 = vpop.permute.xlu0 %481
    %483 = vrot.lane.b32.xlu0 %v432, 104
    %v484 = vpop.permute.xlu0 %483
    %485 = vrot.lane.b32.xlu0 %v433, 104
    %v486 = vpop.permute.xlu0 %485
    %487 = vrot.lane.b32.xlu0 %v434, 104
    %v488 = vpop.permute.xlu0 %487
    %vm489 = vcmask 850944
    %v490 = vsel %vm489, %v474, %v476
    %v491 = vsel %vm489, %v478, %v480
    %v492 = vsel %vm489, %v482, %v484
    %v493 = vsel %vm489, %v486, %v488
    %vm494 = vcmask 916480
    %v495 = vsel %vm494, %v490, 0
    %v497 = vsel %vm494, %v491, 0
    %v499 = vsel %vm494, %v492, 0
    %v501 = vsel %vm494, %v493, 0
    %503 = vmatprep.subr.mxu0 0.0
    %504 = vmatpush1.msra.mxu0 0.0
    %505 = vmatprep.subr.mxu0 0.0
    %506 = vmatpush1.msra.mxu0 0.0
    %507 = vmatprep.subr.mxu0 0.0
    %508 = vmatpush1.msra.mxu0 %v448
    %509 = vmatprep.subr.mxu0 0.0
    %510 = vmatpush1.msra.mxu0 %v447
    %511 = vmatprep.subr.mxu0 0.0
    %512 = vmatpush1.msra.mxu0 %v446
    %513 = vmatprep.subr.mxu0 0.0
    %514 = vmatpush1.msra.mxu0 %v445
    %515 = vmatprep.subr.mxu0 0.0
    %516 = vmatpush1.msra.mxu0 %v444
    %517 = vmatprep.subr.mxu0 0.0
    %518 = vmatpush1.msra.mxu0 %v443
    %519 = vmatprep.subr.mxu0 0.0
    %520 = vmatpush1.msra.mxu0 %v442
    %521 = vmatprep.subr.mxu0 0.0
    %522 = vmatpush1.msra.mxu0 %v441
    %523 = vmatprep.subr.mxu0 0.0
    %524 = vmatpush1.msra.mxu0 %v440
    %525 = vmatprep.subr.mxu0 0.0
    %526 = vmatpush1.msra.mxu0 %v439
    %527 = vmatprep.subr.mxu0 0.0
    %528 = vmatpush1.msra.mxu0 %v438
    %529 = vmatprep.subr.mxu0 0.0
    %530 = vmatpush1.msra.mxu0 %v437
    %531 = vmatprep.subr.mxu0 0.0
    %532 = vmatpush1.msra.mxu0 %v436
    %533 = vmatprep.subr.mxu0 0.0
    %534 = vmatpush1.msra.mxu0 %v435
    %535 = vmatprep.subr.mxu0 0.0
    %536 = vmatpush2.msra.mxu0 0.0
    %537 = vmatprep.subr.mxu0 0.0
    %538 = vmatpush2.msra.mxu0 0.0
    %539 = vmatprep.subr.mxu0 0.0
    %540 = vmatpush2.msra.mxu0 0.0
    %541 = vmatprep.subr.mxu0 0.0
    %542 = vmatpush2.msra.mxu0 0.0
    %543 = vmatprep.subr.mxu0 0.0
    %544 = vmatpush2.msra.mxu0 0.0
    %545 = vmatprep.subr.mxu0 0.0
    %546 = vmatpush2.msra.mxu0 0.0
    %547 = vmatprep.subr.mxu0 0.0
    %548 = vmatpush2.msra.mxu0 0.0
    %549 = vmatprep.subr.mxu0 0.0
    %550 = vmatpush2.msra.mxu0 0.0
    %551 = vmatprep.subr.mxu0 0.0
    %552 = vmatpush2.msra.mxu0 0.0
    %553 = vmatprep.subr.mxu0 0.0
    %554 = vmatpush2.msra.mxu0 0.0
    %555 = vmatprep.subr.mxu0 0.0
    %556 = vmatpush2.msra.mxu0 0.0
    %557 = vmatprep.subr.mxu0 0.0
    %558 = vmatpush2.msra.mxu0 0.0
    %559 = vmatprep.subr.mxu0 0.0
    %560 = vmatpush2.msra.mxu0 0.0
    %561 = vmatprep.subr.mxu0 0.0
    %562 = vmatpush2.msra.mxu0 0.0
    %563 = vmatprep.subr.mxu0 0.0
    %564 = vmatpush2.msra.mxu0 0.0
    %565 = vmatprep.subr.mxu0 0.0
    %566 = vmatpush2.msra.mxu0 0.0
    %567 = vmatprep.mubr.f32.mxu0 0.0
    %568 = vmatmul.mubr.f32.gmra.mxu0 %v495
    %v569 = vpop.f32.mrf.mxu0
    %v570 = vadd.f32 %v452, %v569
    %v571 = vpop.f32.mrf.mxu0
    %572 = vmatprep.mubr.f32.mxu0 0.0
    %573 = vmatmul.mubr.f32.gmra.mxu0 %v497
    %v574 = vpop.f32.mrf.mxu0
    %v575 = vadd.f32 %v457, %v574
    %v576 = vpop.f32.mrf.mxu0
    %577 = vmatprep.mubr.f32.mxu0 0.0
    %578 = vmatmul.mubr.f32.gmra.mxu0 %v499
    %v579 = vpop.f32.mrf.mxu0
    %v580 = vadd.f32 %v462, %v579
    %v581 = vpop.f32.mrf.mxu0
    %582 = vmatprep.mubr.f32.mxu0 0.0
    %583 = vmatmul.mubr.f32.gmra.mxu0 %v501
    %v584 = vpop.f32.mrf.mxu0
    %v585 = vadd.f32 %v467, %v584
    %v586 = vpop.f32.mrf.mxu0
    %587 = vdwg.mxu0
    %vm588 = vcmp.ge.f32.partialorder %v570, 0.0
    %vm589 = vcmp.ge.f32.partialorder %v575, 0.0
    %vm590 = vcmp.ge.f32.partialorder %v580, 0.0
    %vm591 = vcmp.ge.f32.partialorder %v585, 0.0
    %v592 = vmul.f32 %v570, 0.2
    %v593 = vmul.f32 %v575, 0.2
    %v594 = vmul.f32 %v580, 0.2
    %v595 = vmul.f32 %v585, 0.2
    %v596 = vsel %vm588, %v570, %v592
    %v597 = vsel %vm589, %v575, %v593
    %v598 = vsel %vm590, %v580, %v594
    %v599 = vsel %vm591, %v585, %v595
    %600 = vst.msk [vmem:[#allocation2] sm:$0xff] %vm312, 0.0
    %601 = vst.msk [vmem:[#allocation2 + $0x8] sm:$0xff] %vm312, 0.0
    %602 = vst.msk [vmem:[#allocation2 + $0x10] sm:$0xff] %vm312, 0.0
    %603 = vst.msk [vmem:[#allocation2 + $0x18] sm:$0xff] %vm312, 0.0
    %608 = vrot.lane.b32.xlu0 %v596, 3
    %v609 = vpop.permute.xlu0 %608
    %610 = vrot.lane.b32.xlu0 %v597, 3
    %v611 = vpop.permute.xlu0 %610
    %612 = vrot.lane.b32.xlu0 %v598, 3
    %v613 = vpop.permute.xlu0 %612
    %614 = vrot.lane.b32.xlu0 %v599, 3
    %v615 = vpop.permute.xlu0 %614
    %620 = vst.msk [vmem:[#allocation2] sm:$0xff] %vm323, %v609
    %621 = vst.msk [vmem:[#allocation2 + $0x8] sm:$0xff] %vm323, %v611
    %622 = vst.msk [vmem:[#allocation2 + $0x10] sm:$0xff] %vm323, %v613
    %623 = vst.msk [vmem:[#allocation2 + $0x18] sm:$0xff] %vm323, %v615
    %624 = vst.msk [vmem:[#allocation2] sm:$0xff] %vm326, 0.0
    %625 = vst.msk [vmem:[#allocation2 + $0x8] sm:$0xff] %vm326, 0.0
    %626 = vst.msk [vmem:[#allocation2 + $0x10] sm:$0xff] %vm326, 0.0
    %627 = vst.msk [vmem:[#allocation2 + $0x18] sm:$0xff] %vm326, 0.0
    %628 = vst.msk [vmem:[#allocation2] sm:$0xff] %vm329, %v609
    %629 = vst.msk [vmem:[#allocation2 + $0x8] sm:$0xff] %vm329, %v611
    %630 = vst.msk [vmem:[#allocation2 + $0x10] sm:$0xff] %vm329, %v613
    %631 = vst.msk [vmem:[#allocation2 + $0x18] sm:$0xff] %vm329, %v615
    %632 = vst.msk [vmem:[#allocation2 + $0x20] sm:$0xff] %vm332, 0.0
    %633 = vst.msk [vmem:[#allocation2 + $0x28] sm:$0xff] %vm332, 0.0
    %634 = vst.msk [vmem:[#allocation2 + $0x30] sm:$0xff] %vm332, 0.0
    %635 = vst.msk [vmem:[#allocation2 + $0x38] sm:$0xff] %vm332, 0.0
    %636 = vrot.lane.b32.xlu0 %v596, 2
    %v637 = vpop.permute.xlu0 %636
    %638 = vrot.lane.b32.xlu0 %v597, 2
    %v639 = vpop.permute.xlu0 %638
    %640 = vrot.lane.b32.xlu0 %v598, 2
    %v641 = vpop.permute.xlu0 %640
    %642 = vrot.lane.b32.xlu0 %v599, 2
    %v643 = vpop.permute.xlu0 %642
    %648 = vst.msk [vmem:[#allocation2 + $0x20] sm:$0xff] %vm341, %v637
    %649 = vst.msk [vmem:[#allocation2 + $0x28] sm:$0xff] %vm341, %v639
    %650 = vst.msk [vmem:[#allocation2 + $0x30] sm:$0xff] %vm341, %v641
    %651 = vst.msk [vmem:[#allocation2 + $0x38] sm:$0xff] %vm341, %v643
    %652 = vst.msk [vmem:[#allocation2 + $0x20] sm:$0xff] %vm344, 0.0
    %653 = vst.msk [vmem:[#allocation2 + $0x28] sm:$0xff] %vm344, 0.0
    %654 = vst.msk [vmem:[#allocation2 + $0x30] sm:$0xff] %vm344, 0.0
    %655 = vst.msk [vmem:[#allocation2 + $0x38] sm:$0xff] %vm344, 0.0
    %656 = vst.msk [vmem:[#allocation2 + $0x20] sm:$0xff] %vm347, %v637
    %657 = vst.msk [vmem:[#allocation2 + $0x28] sm:$0xff] %vm347, %v639
    %658 = vst.msk [vmem:[#allocation2 + $0x30] sm:$0xff] %vm347, %v641
    %659 = vst.msk [vmem:[#allocation2 + $0x38] sm:$0xff] %vm347, %v643
    %660 = vst.msk [vmem:[#allocation2 + $0x40] sm:$0xff] %vm350, 0.0
    %661 = vst.msk [vmem:[#allocation2 + $0x48] sm:$0xff] %vm350, 0.0
    %662 = vst.msk [vmem:[#allocation2 + $0x50] sm:$0xff] %vm350, 0.0
    %663 = vst.msk [vmem:[#allocation2 + $0x58] sm:$0xff] %vm350, 0.0
    %664 = vrot.lane.b32.xlu0 %v596, 1
    %v665 = vpop.permute.xlu0 %664
    %666 = vrot.lane.b32.xlu0 %v597, 1
    %v667 = vpop.permute.xlu0 %666
    %668 = vrot.lane.b32.xlu0 %v598, 1
    %v669 = vpop.permute.xlu0 %668
    %670 = vrot.lane.b32.xlu0 %v599, 1
    %v671 = vpop.permute.xlu0 %670
    %676 = vst.msk [vmem:[#allocation2 + $0x40] sm:$0xff] %vm359, %v665
    %677 = vst.msk [vmem:[#allocation2 + $0x48] sm:$0xff] %vm359, %v667
    %678 = vst.msk [vmem:[#allocation2 + $0x50] sm:$0xff] %vm359, %v669
    %679 = vst.msk [vmem:[#allocation2 + $0x58] sm:$0xff] %vm359, %v671
    %680 = vst.msk [vmem:[#allocation2 + $0x40] sm:$0xff] %vm362, 0.0
    %681 = vst.msk [vmem:[#allocation2 + $0x48] sm:$0xff] %vm362, 0.0
    %682 = vst.msk [vmem:[#allocation2 + $0x50] sm:$0xff] %vm362, 0.0
    %683 = vst.msk [vmem:[#allocation2 + $0x58] sm:$0xff] %vm362, 0.0
    %684 = vst.msk [vmem:[#allocation2 + $0x40] sm:$0xff] %vm365, %v665
    %685 = vst.msk [vmem:[#allocation2 + $0x48] sm:$0xff] %vm365, %v667
    %686 = vst.msk [vmem:[#allocation2 + $0x50] sm:$0xff] %vm365, %v669
    %687 = vst.msk [vmem:[#allocation2 + $0x58] sm:$0xff] %vm365, %v671
    %688 = vst.msk [vmem:[#allocation2 + $0x60] sm:$0xff] %vm368, %v596
    %689 = vst.msk [vmem:[#allocation2 + $0x68] sm:$0xff] %vm368, %v597
    %690 = vst.msk [vmem:[#allocation2 + $0x70] sm:$0xff] %vm368, %v598
    %691 = vst.msk [vmem:[#allocation2 + $0x78] sm:$0xff] %vm368, %v599
    %692 = vst.msk [vmem:[#allocation2 + $0x60] sm:$0xff] %vm371, %v596
    %693 = vst.msk [vmem:[#allocation2 + $0x68] sm:$0xff] %vm371, %v597
    %694 = vst.msk [vmem:[#allocation2 + $0x70] sm:$0xff] %vm371, %v598
    %695 = vst.msk [vmem:[#allocation2 + $0x78] sm:$0xff] %vm371, %v599
    %696 = vst.msk [vmem:[#allocation2 + $0x80] sm:$0xff] %vm374, 0.0
    %697 = vst.msk [vmem:[#allocation2 + $0x88] sm:$0xff] %vm374, 0.0
    %698 = vst.msk [vmem:[#allocation2 + $0x90] sm:$0xff] %vm374, 0.0
    %699 = vst.msk [vmem:[#allocation2 + $0x98] sm:$0xff] %vm374, 0.0
    %700 = vrot.lane.b32.xlu0 %v596, 127
    %v701 = vpop.permute.xlu0 %700
    %702 = vrot.lane.b32.xlu0 %v597, 127
    %v703 = vpop.permute.xlu0 %702
    %704 = vrot.lane.b32.xlu0 %v598, 127
    %v705 = vpop.permute.xlu0 %704
    %706 = vrot.lane.b32.xlu0 %v599, 127
    %v707 = vpop.permute.xlu0 %706
    %712 = vst.msk [vmem:[#allocation2 + $0x80] sm:$0xff] %vm222, %v701
    %713 = vst.msk [vmem:[#allocation2 + $0x88] sm:$0xff] %vm222, %v703
    %714 = vst.msk [vmem:[#allocation2 + $0x90] sm:$0xff] %vm222, %v705
    %715 = vst.msk [vmem:[#allocation2 + $0x98] sm:$0xff] %vm222, %v707
    %716 = vst.msk [vmem:[#allocation2 + $0x80] sm:$0xff] %vm385, 0.0
    %717 = vst.msk [vmem:[#allocation2 + $0x88] sm:$0xff] %vm385, 0.0
    %718 = vst.msk [vmem:[#allocation2 + $0x90] sm:$0xff] %vm385, 0.0
    %719 = vst.msk [vmem:[#allocation2 + $0x98] sm:$0xff] %vm385, 0.0
    %720 = vst.msk [vmem:[#allocation2 + $0x80] sm:$0xff] %vm388, %v701
    %721 = vst.msk [vmem:[#allocation2 + $0x88] sm:$0xff] %vm388, %v703
    %722 = vst.msk [vmem:[#allocation2 + $0x90] sm:$0xff] %vm388, %v705
    %723 = vst.msk [vmem:[#allocation2 + $0x98] sm:$0xff] %vm388, %v707
    %724 = vst.msk [vmem:[#allocation2 + $0xa0] sm:$0xff] %vm391, 0.0
    %725 = vst.msk [vmem:[#allocation2 + $0xa8] sm:$0xff] %vm391, 0.0
    %726 = vst.msk [vmem:[#allocation2 + $0xb0] sm:$0xff] %vm391, 0.0
    %727 = vst.msk [vmem:[#allocation2 + $0xb8] sm:$0xff] %vm391, 0.0
    %728 = vrot.lane.b32.xlu0 %v596, 126
    %v729 = vpop.permute.xlu0 %728
    %730 = vrot.lane.b32.xlu0 %v597, 126
    %v731 = vpop.permute.xlu0 %730
    %732 = vrot.lane.b32.xlu0 %v598, 126
    %v733 = vpop.permute.xlu0 %732
    %734 = vrot.lane.b32.xlu0 %v599, 126
    %v735 = vpop.permute.xlu0 %734
    %740 = vst.msk [vmem:[#allocation2 + $0xa0] sm:$0xff] %vm400, %v729
    %741 = vst.msk [vmem:[#allocation2 + $0xa8] sm:$0xff] %vm400, %v731
    %742 = vst.msk [vmem:[#allocation2 + $0xb0] sm:$0xff] %vm400, %v733
    %743 = vst.msk [vmem:[#allocation2 + $0xb8] sm:$0xff] %vm400, %v735
    %744 = vst.msk [vmem:[#allocation2 + $0xa0] sm:$0xff] %vm403, 0.0
    %745 = vst.msk [vmem:[#allocation2 + $0xa8] sm:$0xff] %vm403, 0.0
    %746 = vst.msk [vmem:[#allocation2 + $0xb0] sm:$0xff] %vm403, 0.0
    %747 = vst.msk [vmem:[#allocation2 + $0xb8] sm:$0xff] %vm403, 0.0
    %748 = vst.msk [vmem:[#allocation2 + $0xa0] sm:$0xff] %vm406, %v729
    %749 = vst.msk [vmem:[#allocation2 + $0xa8] sm:$0xff] %vm406, %v731
    %750 = vst.msk [vmem:[#allocation2 + $0xb0] sm:$0xff] %vm406, %v733
    %751 = vst.msk [vmem:[#allocation2 + $0xb8] sm:$0xff] %vm406, %v735
    %752 = vst.msk [vmem:[#allocation2 + $0xc0] sm:$0xff] %vm409, 0.0
    %753 = vst.msk [vmem:[#allocation2 + $0xc8] sm:$0xff] %vm409, 0.0
    %754 = vst.msk [vmem:[#allocation2 + $0xd0] sm:$0xff] %vm409, 0.0
    %755 = vst.msk [vmem:[#allocation2 + $0xd8] sm:$0xff] %vm409, 0.0
    %756 = vrot.lane.b32.xlu0 %v596, 125
    %v757 = vpop.permute.xlu0 %756
    %758 = vrot.lane.b32.xlu0 %v597, 125
    %v759 = vpop.permute.xlu0 %758
    %760 = vrot.lane.b32.xlu0 %v598, 125
    %v761 = vpop.permute.xlu0 %760
    %762 = vrot.lane.b32.xlu0 %v599, 125
    %v763 = vpop.permute.xlu0 %762
    %768 = vst.msk [vmem:[#allocation2 + $0xc0] sm:$0xff] %vm418, %v757
    %769 = vst.msk [vmem:[#allocation2 + $0xc8] sm:$0xff] %vm418, %v759
    %770 = vst.msk [vmem:[#allocation2 + $0xd0] sm:$0xff] %vm418, %v761
    %771 = vst.msk [vmem:[#allocation2 + $0xd8] sm:$0xff] %vm418, %v763
    %772 = vst.msk [vmem:[#allocation2 + $0xc0] sm:$0xff] %vm421, 0.0
    %773 = vst.msk [vmem:[#allocation2 + $0xc8] sm:$0xff] %vm421, 0.0
    %774 = vst.msk [vmem:[#allocation2 + $0xd0] sm:$0xff] %vm421, 0.0
    %775 = vst.msk [vmem:[#allocation2 + $0xd8] sm:$0xff] %vm421, 0.0
    %776 = vst.msk [vmem:[#allocation2 + $0xc0] sm:$0xff] %vm424, %v757
    %777 = vst.msk [vmem:[#allocation2 + $0xc8] sm:$0xff] %vm424, %v759
    %778 = vst.msk [vmem:[#allocation2 + $0xd0] sm:$0xff] %vm424, %v761
    %779 = vst.msk [vmem:[#allocation2 + $0xd8] sm:$0xff] %vm424, %v763
    %v780 = vld [vmem:[#allocation3 + $0x8] sm:$0xff]
    %v781 = vld [vmem:[#allocation3 + $0x10] sm:$0xff]
    %v782 = vld [vmem:[#allocation3 + $0x60] sm:$0xff]
    %v783 = vld [vmem:[#allocation3 + $0x68] sm:$0xff]
    %v784 = vld [vmem:[#allocation3 + $0xb8] sm:$0xff]
    %v785 = vld [vmem:[#allocation3 + $0xc0] sm:$0xff]
    %v786 = vld [vmem:[#allocation3 + $0x110] sm:$0xff]
    %v787 = vld [vmem:[#allocation3 + $0x118] sm:$0xff]
    %v788 = vld [vmem:[#allocation2] sm:$0xff]
    %v789 = vld [vmem:[#allocation2 + $0x8] sm:$0xff]
    %v790 = vld [vmem:[#allocation2 + $0x10] sm:$0xff]
    %v791 = vld [vmem:[#allocation2 + $0x18] sm:$0xff]
    %v792 = vld [vmem:[#allocation2 + $0x20] sm:$0xff]
    %v793 = vld [vmem:[#allocation2 + $0x28] sm:$0xff]
    %v794 = vld [vmem:[#allocation2 + $0x30] sm:$0xff]
    %v795 = vld [vmem:[#allocation2 + $0x38] sm:$0xff]
    %v796 = vld [vmem:[#allocation2 + $0x40] sm:$0xff]
    %v797 = vld [vmem:[#allocation2 + $0x48] sm:$0xff]
    %v798 = vld [vmem:[#allocation2 + $0x50] sm:$0xff]
    %v799 = vld [vmem:[#allocation2 + $0x58] sm:$0xff]
    %v800 = vld [vmem:[#allocation2 + $0x60] sm:$0xff]
    %v801 = vld [vmem:[#allocation2 + $0x68] sm:$0xff]
    %v802 = vld [vmem:[#allocation2 + $0x70] sm:$0xff]
    %v803 = vld [vmem:[#allocation2 + $0x78] sm:$0xff]
    %v804 = vld [vmem:[#allocation2 + $0x80] sm:$0xff]
    %v805 = vld [vmem:[#allocation2 + $0x88] sm:$0xff]
    %v806 = vld [vmem:[#allocation2 + $0x90] sm:$0xff]
    %v807 = vld [vmem:[#allocation2 + $0x98] sm:$0xff]
    %v808 = vld [vmem:[#allocation2 + $0xa0] sm:$0xff]
    %v809 = vld [vmem:[#allocation2 + $0xa8] sm:$0xff]
    %v810 = vld [vmem:[#allocation2 + $0xb0] sm:$0xff]
    %v811 = vld [vmem:[#allocation2 + $0xb8] sm:$0xff]
    %v812 = vld [vmem:[#allocation2 + $0xc0] sm:$0xff]
    %v813 = vld [vmem:[#allocation2 + $0xc8] sm:$0xff]
    %v814 = vld [vmem:[#allocation2 + $0xd0] sm:$0xff]
    %v815 = vld [vmem:[#allocation2 + $0xd8] sm:$0xff]
    %820 = vrot.lane.b32.xlu0 %v781, 119
    %v821 = vpop.permute.xlu0 %820
    %822 = vrot.lane.b32.xlu0 %v783, 119
    %v823 = vpop.permute.xlu0 %822
    %824 = vrot.lane.b32.xlu0 %v785, 119
    %v825 = vpop.permute.xlu0 %824
    %826 = vrot.lane.b32.xlu0 %v787, 119
    %v827 = vpop.permute.xlu0 %826
    %vm828 = vcmask 785408
    %v829 = vsel %vm828, %v821, 0
    %v831 = vsel %vm828, %v823, 0
    %v833 = vsel %vm828, %v825, 0
    %v835 = vsel %vm828, %v827, 0
    %837 = vmatprep.subr.mxu0 0.0
    %838 = vmatpush1.msra.mxu0 0.0
    %839 = vmatprep.subr.mxu0 0.0
    %840 = vmatpush1.msra.mxu0 0.0
    %841 = vmatprep.subr.mxu0 0.0
    %842 = vmatpush1.msra.mxu0 0.0
    %843 = vmatprep.subr.mxu0 0.0
    %844 = vmatpush1.msra.mxu0 0.0
    %845 = vmatprep.subr.mxu0 0.0
    %846 = vmatpush1.msra.mxu0 %v815
    %847 = vmatprep.subr.mxu0 0.0
    %848 = vmatpush1.msra.mxu0 %v814
    %849 = vmatprep.subr.mxu0 0.0
    %850 = vmatpush1.msra.mxu0 %v813
    %851 = vmatprep.subr.mxu0 0.0
    %852 = vmatpush1.msra.mxu0 %v812
    %853 = vmatprep.subr.mxu0 0.0
    %854 = vmatpush1.msra.mxu0 %v811
    %855 = vmatprep.subr.mxu0 0.0
    %856 = vmatpush1.msra.mxu0 %v810
    %857 = vmatprep.subr.mxu0 0.0
    %858 = vmatpush1.msra.mxu0 %v809
    %859 = vmatprep.subr.mxu0 0.0
    %860 = vmatpush1.msra.mxu0 %v808
    %861 = vmatprep.subr.mxu0 0.0
    %862 = vmatpush1.msra.mxu0 %v807
    %863 = vmatprep.subr.mxu0 0.0
    %864 = vmatpush1.msra.mxu0 %v806
    %865 = vmatprep.subr.mxu0 0.0
    %866 = vmatpush1.msra.mxu0 %v805
    %867 = vmatprep.subr.mxu0 0.0
    %868 = vmatpush1.msra.mxu0 %v804
    %869 = vmatprep.subr.mxu0 0.0
    %870 = vmatpush2.msra.mxu0 0.0
    %871 = vmatprep.subr.mxu0 0.0
    %872 = vmatpush2.msra.mxu0 0.0
    %873 = vmatprep.subr.mxu0 0.0
    %874 = vmatpush2.msra.mxu0 0.0
    %875 = vmatprep.subr.mxu0 0.0
    %876 = vmatpush2.msra.mxu0 0.0
    %877 = vmatprep.subr.mxu0 0.0
    %878 = vmatpush2.msra.mxu0 0.0
    %879 = vmatprep.subr.mxu0 0.0
    %880 = vmatpush2.msra.mxu0 0.0
    %881 = vmatprep.subr.mxu0 0.0
    %882 = vmatpush2.msra.mxu0 0.0
    %883 = vmatprep.subr.mxu0 0.0
    %884 = vmatpush2.msra.mxu0 0.0
    %885 = vmatprep.subr.mxu0 0.0
    %886 = vmatpush2.msra.mxu0 0.0
    %887 = vmatprep.subr.mxu0 0.0
    %888 = vmatpush2.msra.mxu0 0.0
    %889 = vmatprep.subr.mxu0 0.0
    %890 = vmatpush2.msra.mxu0 0.0
    %891 = vmatprep.subr.mxu0 0.0
    %892 = vmatpush2.msra.mxu0 0.0
    %893 = vmatprep.subr.mxu0 0.0
    %894 = vmatpush2.msra.mxu0 0.0
    %895 = vmatprep.subr.mxu0 0.0
    %896 = vmatpush2.msra.mxu0 0.0
    %897 = vmatprep.subr.mxu0 0.0
    %898 = vmatpush2.msra.mxu0 0.0
    %899 = vmatprep.subr.mxu0 0.0
    %900 = vmatpush2.msra.mxu0 0.0
    %901 = vmatprep.mubr.f32.mxu0 0.0
    %902 = vmatmul.mubr.f32.gmra.mxu0 %v829
    %v903 = vpop.f32.mrf.mxu0
    %v904 = vadd.f32 0.0, %v903
    %v905 = vpop.f32.mrf.mxu0
    %906 = vmatprep.mubr.f32.mxu0 0.0
    %907 = vmatmul.mubr.f32.gmra.mxu0 %v831
    %v908 = vpop.f32.mrf.mxu0
    %v909 = vadd.f32 0.0, %v908
    %v910 = vpop.f32.mrf.mxu0
    %911 = vmatprep.mubr.f32.mxu0 0.0
    %912 = vmatmul.mubr.f32.gmra.mxu0 %v833
    %v913 = vpop.f32.mrf.mxu0
    %v914 = vadd.f32 0.0, %v913
    %v915 = vpop.f32.mrf.mxu0
    %916 = vmatprep.mubr.f32.mxu0 0.0
    %917 = vmatmul.mubr.f32.gmra.mxu0 %v835
    %v918 = vpop.f32.mrf.mxu0
    %v919 = vadd.f32 0.0, %v918
    %v920 = vpop.f32.mrf.mxu0
    %921 = vdwg.mxu0
    %926 = vrot.lane.b32.xlu0 %v780, 119
    %v927 = vpop.permute.xlu0 %926
    %928 = vrot.lane.b32.xlu0 %v782, 119
    %v929 = vpop.permute.xlu0 %928
    %930 = vrot.lane.b32.xlu0 %v784, 119
    %v931 = vpop.permute.xlu0 %930
    %932 = vrot.lane.b32.xlu0 %v786, 119
    %v933 = vpop.permute.xlu0 %932
    %vm934 = vcmask 973824
    %v935 = vsel %vm934, %v927, %v821
    %v936 = vsel %vm934, %v929, %v823
    %v937 = vsel %vm934, %v931, %v825
    %v938 = vsel %vm934, %v933, %v827
    %943 = vmatprep.subr.mxu0 0.0
    %944 = vmatpush1.msra.mxu0 %v803
    %945 = vmatprep.subr.mxu0 0.0
    %946 = vmatpush1.msra.mxu0 %v802
    %947 = vmatprep.subr.mxu0 0.0
    %948 = vmatpush1.msra.mxu0 %v801
    %949 = vmatprep.subr.mxu0 0.0
    %950 = vmatpush1.msra.mxu0 %v800
    %951 = vmatprep.subr.mxu0 0.0
    %952 = vmatpush1.msra.mxu0 %v799
    %953 = vmatprep.subr.mxu0 0.0
    %954 = vmatpush1.msra.mxu0 %v798
    %955 = vmatprep.subr.mxu0 0.0
    %956 = vmatpush1.msra.mxu0 %v797
    %957 = vmatprep.subr.mxu0 0.0
    %958 = vmatpush1.msra.mxu0 %v796
    %959 = vmatprep.subr.mxu0 0.0
    %960 = vmatpush1.msra.mxu0 %v795
    %961 = vmatprep.subr.mxu0 0.0
    %962 = vmatpush1.msra.mxu0 %v794
    %963 = vmatprep.subr.mxu0 0.0
    %964 = vmatpush1.msra.mxu0 %v793
    %965 = vmatprep.subr.mxu0 0.0
    %966 = vmatpush1.msra.mxu0 %v792
    %967 = vmatprep.subr.mxu0 0.0
    %968 = vmatpush1.msra.mxu0 %v791
    %969 = vmatprep.subr.mxu0 0.0
    %970 = vmatpush1.msra.mxu0 %v790
    %971 = vmatprep.subr.mxu0 0.0
    %972 = vmatpush1.msra.mxu0 %v789
    %973 = vmatprep.subr.mxu0 0.0
    %974 = vmatpush1.msra.mxu0 %v788
    %975 = vmatprep.subr.mxu0 0.0
    %976 = vmatpush2.msra.mxu0 0.0
    %977 = vmatprep.subr.mxu0 0.0
    %978 = vmatpush2.msra.mxu0 0.0
    %979 = vmatprep.subr.mxu0 0.0
    %980 = vmatpush2.msra.mxu0 0.0
    %981 = vmatprep.subr.mxu0 0.0
    %982 = vmatpush2.msra.mxu0 0.0
    %983 = vmatprep.subr.mxu0 0.0
    %984 = vmatpush2.msra.mxu0 0.0
    %985 = vmatprep.subr.mxu0 0.0
    %986 = vmatpush2.msra.mxu0 0.0
    %987 = vmatprep.subr.mxu0 0.0
    %988 = vmatpush2.msra.mxu0 0.0
    %989 = vmatprep.subr.mxu0 0.0
    %990 = vmatpush2.msra.mxu0 0.0
    %991 = vmatprep.subr.mxu0 0.0
    %992 = vmatpush2.msra.mxu0 0.0
    %993 = vmatprep.subr.mxu0 0.0
    %994 = vmatpush2.msra.mxu0 0.0
    %995 = vmatprep.subr.mxu0 0.0
    %996 = vmatpush2.msra.mxu0 0.0
    %997 = vmatprep.subr.mxu0 0.0
    %998 = vmatpush2.msra.mxu0 0.0
    %999 = vmatprep.subr.mxu0 0.0
    %1000 = vmatpush2.msra.mxu0 0.0
    %1001 = vmatprep.subr.mxu0 0.0
    %1002 = vmatpush2.msra.mxu0 0.0
    %1003 = vmatprep.subr.mxu0 0.0
    %1004 = vmatpush2.msra.mxu0 0.0
    %1005 = vmatprep.subr.mxu0 0.0
    %1006 = vmatpush2.msra.mxu0 0.0
    %1007 = vmatprep.mubr.f32.mxu0 0.0
    %1008 = vmatmul.mubr.f32.gmra.mxu0 %v935
    %v1009 = vpop.f32.mrf.mxu0
    %v1010 = vadd.f32 %v904, %v1009
    %v1011 = vpop.f32.mrf.mxu0
    %1012 = vmatprep.mubr.f32.mxu0 0.0
    %1013 = vmatmul.mubr.f32.gmra.mxu0 %v936
    %v1014 = vpop.f32.mrf.mxu0
    %v1015 = vadd.f32 %v909, %v1014
    %v1016 = vpop.f32.mrf.mxu0
    %1017 = vmatprep.mubr.f32.mxu0 0.0
    %1018 = vmatmul.mubr.f32.gmra.mxu0 %v937
    %v1019 = vpop.f32.mrf.mxu0
    %v1020 = vadd.f32 %v914, %v1019
    %v1021 = vpop.f32.mrf.mxu0
    %1022 = vmatprep.mubr.f32.mxu0 0.0
    %1023 = vmatmul.mubr.f32.gmra.mxu0 %v938
    %v1024 = vpop.f32.mrf.mxu0
    %v1025 = vadd.f32 %v919, %v1024
    %v1026 = vpop.f32.mrf.mxu0
    %1027 = vdwg.mxu0
    %1028 = vset.pattern.permute.xlu0 105
    %1029 = vperm.xlu0 %1028, %v781
    %v1030 = vpop.permute.xlu0 %1029
    %1032 = vset.pattern.permute.xlu0 105
    %1033 = vperm.xlu0 %1032, %v783
    %v1034 = vpop.permute.xlu0 %1033
    %1036 = vset.pattern.permute.xlu0 105
    %1037 = vperm.xlu0 %1036, %v785
    %v1038 = vpop.permute.xlu0 %1037
    %1040 = vset.pattern.permute.xlu0 105
    %1041 = vperm.xlu0 %1040, %v787
    %v1042 = vpop.permute.xlu0 %1041
    %v1044 = vadd.f32 %v1010, %v1030
    %v1045 = vadd.f32 %v1015, %v1034
    %v1046 = vadd.f32 %v1020, %v1038
    %v1047 = vadd.f32 %v1025, %v1042
    %v1048 = vld [vmem:[#allocation3 + $0x10] sm:$0xff]
    %v1049 = vld [vmem:[#allocation3 + $0x18] sm:$0xff]
    %v1050 = vld [vmem:[#allocation3 + $0x68] sm:$0xff]
    %v1051 = vld [vmem:[#allocation3 + $0x70] sm:$0xff]
    %v1052 = vld [vmem:[#allocation3 + $0xc0] sm:$0xff]
    %v1053 = vld [vmem:[#allocation3 + $0xc8] sm:$0xff]
    %v1054 = vld [vmem:[#allocation3 + $0x118] sm:$0xff]
    %v1055 = vld [vmem:[#allocation3 + $0x120] sm:$0xff]
    %1060 = vrot.lane.b32.xlu0 %v1049, 118
    %v1061 = vpop.permute.xlu0 %1060
    %1062 = vrot.lane.b32.xlu0 %v1051, 118
    %v1063 = vpop.permute.xlu0 %1062
    %1064 = vrot.lane.b32.xlu0 %v1053, 118
    %v1065 = vpop.permute.xlu0 %1064
    %1066 = vrot.lane.b32.xlu0 %v1055, 118
    %v1067 = vpop.permute.xlu0 %1066
    %vm1068 = vcmask 261120
    %v1069 = vsel %vm1068, %v1061, 0
    %v1071 = vsel %vm1068, %v1063, 0
    %v1073 = vsel %vm1068, %v1065, 0
    %v1075 = vsel %vm1068, %v1067, 0
    %1077 = vmatprep.subr.mxu0 0.0
    %1078 = vmatpush1.msra.mxu0 0.0
    %1079 = vmatprep.subr.mxu0 0.0
    %1080 = vmatpush1.msra.mxu0 0.0
    %1081 = vmatprep.subr.mxu0 0.0
    %1082 = vmatpush1.msra.mxu0 0.0
    %1083 = vmatprep.subr.mxu0 0.0
    %1084 = vmatpush1.msra.mxu0 0.0
    %1085 = vmatprep.subr.mxu0 0.0
    %1086 = vmatpush1.msra.mxu0 0.0
    %1087 = vmatprep.subr.mxu0 0.0
    %1088 = vmatpush1.msra.mxu0 0.0
    %1089 = vmatprep.subr.mxu0 0.0
    %1090 = vmatpush1.msra.mxu0 0.0
    %1091 = vmatprep.subr.mxu0 0.0
    %1092 = vmatpush1.msra.mxu0 0.0
    %1093 = vmatprep.subr.mxu0 0.0
    %1094 = vmatpush1.msra.mxu0 0.0
    %1095 = vmatprep.subr.mxu0 0.0
    %1096 = vmatpush1.msra.mxu0 0.0
    %1097 = vmatprep.subr.mxu0 0.0
    %1098 = vmatpush1.msra.mxu0 0.0
    %1099 = vmatprep.subr.mxu0 0.0
    %1100 = vmatpush1.msra.mxu0 0.0
    %1101 = vmatprep.subr.mxu0 0.0
    %1102 = vmatpush1.msra.mxu0 %v1047
    %1103 = vmatprep.subr.mxu0 0.0
    %1104 = vmatpush1.msra.mxu0 %v1046
    %1105 = vmatprep.subr.mxu0 0.0
    %1106 = vmatpush1.msra.mxu0 %v1045
    %1107 = vmatprep.subr.mxu0 0.0
    %1108 = vmatpush1.msra.mxu0 %v1044
    %1109 = vmatprep.subr.mxu0 0.0
    %1110 = vmatpush2.msra.mxu0 0.0
    %1111 = vmatprep.subr.mxu0 0.0
    %1112 = vmatpush2.msra.mxu0 0.0
    %1113 = vmatprep.subr.mxu0 0.0
    %1114 = vmatpush2.msra.mxu0 0.0
    %1115 = vmatprep.subr.mxu0 0.0
    %1116 = vmatpush2.msra.mxu0 0.0
    %1117 = vmatprep.subr.mxu0 0.0
    %1118 = vmatpush2.msra.mxu0 0.0
    %1119 = vmatprep.subr.mxu0 0.0
    %1120 = vmatpush2.msra.mxu0 0.0
    %1121 = vmatprep.subr.mxu0 0.0
    %1122 = vmatpush2.msra.mxu0 0.0
    %1123 = vmatprep.subr.mxu0 0.0
    %1124 = vmatpush2.msra.mxu0 0.0
    %1125 = vmatprep.subr.mxu0 0.0
    %1126 = vmatpush2.msra.mxu0 0.0
    %1127 = vmatprep.subr.mxu0 0.0
    %1128 = vmatpush2.msra.mxu0 0.0
    %1129 = vmatprep.subr.mxu0 0.0
    %1130 = vmatpush2.msra.mxu0 0.0
    %1131 = vmatprep.subr.mxu0 0.0
    %1132 = vmatpush2.msra.mxu0 0.0
    %1133 = vmatprep.subr.mxu0 0.0
    %1134 = vmatpush2.msra.mxu0 0.0
    %1135 = vmatprep.subr.mxu0 0.0
    %1136 = vmatpush2.msra.mxu0 0.0
    %1137 = vmatprep.subr.mxu0 0.0
    %1138 = vmatpush2.msra.mxu0 0.0
    %1139 = vmatprep.subr.mxu0 0.0
    %1140 = vmatpush2.msra.mxu0 0.0
    %1141 = vmatprep.mubr.f32.mxu0 0.0
    %1142 = vmatmul.mubr.f32.gmra.mxu0 %v1069
    %v1143 = vpop.f32.mrf.mxu0
    %v1144 = vadd.f32 0.0, %v1143
    %v1145 = vpop.f32.mrf.mxu0
    %1146 = vmatprep.mubr.f32.mxu0 0.0
    %1147 = vmatmul.mubr.f32.gmra.mxu0 %v1071
    %v1148 = vpop.f32.mrf.mxu0
    %v1149 = vadd.f32 0.0, %v1148
    %v1150 = vpop.f32.mrf.mxu0
    %1151 = vmatprep.mubr.f32.mxu0 0.0
    %1152 = vmatmul.mubr.f32.gmra.mxu0 %v1073
    %v1153 = vpop.f32.mrf.mxu0
    %v1154 = vadd.f32 0.0, %v1153
    %v1155 = vpop.f32.mrf.mxu0
    %1156 = vmatprep.mubr.f32.mxu0 0.0
    %1157 = vmatmul.mubr.f32.gmra.mxu0 %v1075
    %v1158 = vpop.f32.mrf.mxu0
    %v1159 = vadd.f32 0.0, %v1158
    %v1160 = vpop.f32.mrf.mxu0
    %1161 = vdwg.mxu0
    %1166 = vrot.lane.b32.xlu0 %v1048, 22
    %v1167 = vpop.permute.xlu0 %1166
    %1168 = vrot.lane.b32.xlu0 %v1049, 22
    %v1169 = vpop.permute.xlu0 %1168
    %1170 = vrot.lane.b32.xlu0 %v1050, 22
    %v1171 = vpop.permute.xlu0 %1170
    %1172 = vrot.lane.b32.xlu0 %v1051, 22
    %v1173 = vpop.permute.xlu0 %1172
    %1174 = vrot.lane.b32.xlu0 %v1052, 22
    %v1175 = vpop.permute.xlu0 %1174
    %1176 = vrot.lane.b32.xlu0 %v1053, 22
    %v1177 = vpop.permute.xlu0 %1176
    %1178 = vrot.lane.b32.xlu0 %v1054, 22
    %v1179 = vpop.permute.xlu0 %1178
    %1180 = vrot.lane.b32.xlu0 %v1055, 22
    %v1181 = vpop.permute.xlu0 %1180
    %vm1182 = vcmask 179200
    %v1183 = vsel %vm1182, %v1167, %v1169
    %v1184 = vsel %vm1182, %v1171, %v1173
    %v1185 = vsel %vm1182, %v1175, %v1177
    %v1186 = vsel %vm1182, %v1179, %v1181
    %v1187 = vsel %vm1068, %v1183, 0
    %v1189 = vsel %vm1068, %v1184, 0
    %v1191 = vsel %vm1068, %v1185, 0
    %v1193 = vsel %vm1068, %v1186, 0
    %1195 = vmatprep.subr.mxu0 0.0
    %1196 = vmatpush1.msra.mxu0 0.0
    %1197 = vmatprep.subr.mxu0 0.0
    %1198 = vmatpush1.msra.mxu0 0.0
    %1199 = vmatprep.subr.mxu0 0.0
    %1200 = vmatpush1.msra.mxu0 0.0
    %1201 = vmatprep.subr.mxu0 0.0
    %1202 = vmatpush1.msra.mxu0 0.0
    %1203 = vmatprep.subr.mxu0 0.0
    %1204 = vmatpush1.msra.mxu0 0.0
    %1205 = vmatprep.subr.mxu0 0.0
    %1206 = vmatpush1.msra.mxu0 0.0
    %1207 = vmatprep.subr.mxu0 0.0
    %1208 = vmatpush1.msra.mxu0 0.0
    %1209 = vmatprep.subr.mxu0 0.0
    %1210 = vmatpush1.msra.mxu0 0.0
    %1211 = vmatprep.subr.mxu0 0.0
    %1212 = vmatpush1.msra.mxu0 0.0
    %1213 = vmatprep.subr.mxu0 0.0
    %1214 = vmatpush1.msra.mxu0 0.0
    %1215 = vmatprep.subr.mxu0 0.0
    %1216 = vmatpush1.msra.mxu0 0.0
    %1217 = vmatprep.subr.mxu0 0.0
    %1218 = vmatpush1.msra.mxu0 0.0
    %1219 = vmatprep.subr.mxu0 0.0
    %1220 = vmatpush1.msra.mxu0 %v148
    %1221 = vmatprep.subr.mxu0 0.0
    %1222 = vmatpush1.msra.mxu0 %v143
    %1223 = vmatprep.subr.mxu0 0.0
    %1224 = vmatpush1.msra.mxu0 %v138
    %1225 = vmatprep.subr.mxu0 0.0
    %1226 = vmatpush1.msra.mxu0 %v133
    %1227 = vmatprep.subr.mxu0 0.0
    %1228 = vmatpush2.msra.mxu0 0.0
    %1229 = vmatprep.subr.mxu0 0.0
    %1230 = vmatpush2.msra.mxu0 0.0
    %1231 = vmatprep.subr.mxu0 0.0
    %1232 = vmatpush2.msra.mxu0 0.0
    %1233 = vmatprep.subr.mxu0 0.0
    %1234 = vmatpush2.msra.mxu0 0.0
    %1235 = vmatprep.subr.mxu0 0.0
    %1236 = vmatpush2.msra.mxu0 0.0
    %1237 = vmatprep.subr.mxu0 0.0
    %1238 = vmatpush2.msra.mxu0 0.0
    %1239 = vmatprep.subr.mxu0 0.0
    %1240 = vmatpush2.msra.mxu0 0.0
    %1241 = vmatprep.subr.mxu0 0.0
    %1242 = vmatpush2.msra.mxu0 0.0
    %1243 = vmatprep.subr.mxu0 0.0
    %1244 = vmatpush2.msra.mxu0 0.0
    %1245 = vmatprep.subr.mxu0 0.0
    %1246 = vmatpush2.msra.mxu0 0.0
    %1247 = vmatprep.subr.mxu0 0.0
    %1248 = vmatpush2.msra.mxu0 0.0
    %1249 = vmatprep.subr.mxu0 0.0
    %1250 = vmatpush2.msra.mxu0 0.0
    %1251 = vmatprep.subr.mxu0 0.0
    %1252 = vmatpush2.msra.mxu0 0.0
    %1253 = vmatprep.subr.mxu0 0.0
    %1254 = vmatpush2.msra.mxu0 0.0
    %1255 = vmatprep.subr.mxu0 0.0
    %1256 = vmatpush2.msra.mxu0 0.0
    %1257 = vmatprep.subr.mxu0 0.0
    %1258 = vmatpush2.msra.mxu0 0.0
    %1259 = vmatprep.mubr.f32.mxu0 0.0
    %1260 = vmatmul.mubr.f32.gmra.mxu0 %v1187
    %v1261 = vpop.f32.mrf.mxu0
    %v1262 = vadd.f32 %v1144, %v1261
    %v1263 = vpop.f32.mrf.mxu0
    %1264 = vmatprep.mubr.f32.mxu0 0.0
    %1265 = vmatmul.mubr.f32.gmra.mxu0 %v1189
    %v1266 = vpop.f32.mrf.mxu0
    %v1267 = vadd.f32 %v1149, %v1266
    %v1268 = vpop.f32.mrf.mxu0
    %1269 = vmatprep.mubr.f32.mxu0 0.0
    %1270 = vmatmul.mubr.f32.gmra.mxu0 %v1191
    %v1271 = vpop.f32.mrf.mxu0
    %v1272 = vadd.f32 %v1154, %v1271
    %v1273 = vpop.f32.mrf.mxu0
    %1274 = vmatprep.mubr.f32.mxu0 0.0
    %1275 = vmatmul.mubr.f32.gmra.mxu0 %v1193
    %v1276 = vpop.f32.mrf.mxu0
    %v1277 = vadd.f32 %v1159, %v1276
    %v1278 = vpop.f32.mrf.mxu0
    %1279 = vdwg.mxu0
    %1280 = vset.pattern.permute.xlu0 42
    %1281 = vperm.xlu0 %1280, %v1049
    %v1282 = vpop.permute.xlu0 %1281
    %1284 = vset.pattern.permute.xlu0 42
    %1285 = vperm.xlu0 %1284, %v1051
    %v1286 = vpop.permute.xlu0 %1285
    %1288 = vset.pattern.permute.xlu0 42
    %1289 = vperm.xlu0 %1288, %v1053
    %v1290 = vpop.permute.xlu0 %1289
    %1292 = vset.pattern.permute.xlu0 42
    %1293 = vperm.xlu0 %1292, %v1055
    %v1294 = vpop.permute.xlu0 %1293
    %v1296 = vadd.f32 %v1262, %v1282
    %v1297 = vadd.f32 %v1267, %v1286
    %v1298 = vadd.f32 %v1272, %v1290
    %v1299 = vadd.f32 %v1277, %v1294
    %vm1300 = vcmp.ge.f32.partialorder %v1296, 0.0
    %vm1301 = vcmp.ge.f32.partialorder %v1297, 0.0
    %vm1302 = vcmp.ge.f32.partialorder %v1298, 0.0
    %vm1303 = vcmp.ge.f32.partialorder %v1299, 0.0
    %v1304 = vmul.f32 %v1296, 0.2
    %v1305 = vmul.f32 %v1297, 0.2
    %v1306 = vmul.f32 %v1298, 0.2
    %v1307 = vmul.f32 %v1299, 0.2
    %v1308 = vsel %vm1300, %v1296, %v1304
    %v1309 = vsel %vm1301, %v1297, %v1305
    %v1310 = vsel %vm1302, %v1298, %v1306
    %v1311 = vsel %vm1303, %v1299, %v1307
    %1312 = vset.pattern.permute.xlu0 75
    %1313 = vperm.xlu0 %1312, %v1049
    %v1314 = vpop.permute.xlu0 %1313
    %1316 = vset.pattern.permute.xlu0 75
    %1317 = vperm.xlu0 %1316, %v1051
    %v1318 = vpop.permute.xlu0 %1317
    %1320 = vset.pattern.permute.xlu0 75
    %1321 = vperm.xlu0 %1320, %v1053
    %v1322 = vpop.permute.xlu0 %1321
    %1324 = vset.pattern.permute.xlu0 75
    %1325 = vperm.xlu0 %1324, %v1055
    %v1326 = vpop.permute.xlu0 %1325
    %1328 = vrot.lane.b32.xlu0 %v1049, 85
    %v1329 = vpop.permute.xlu0 %1328
    %1330 = vrot.lane.b32.xlu0 %v1051, 85
    %v1331 = vpop.permute.xlu0 %1330
    %1332 = vrot.lane.b32.xlu0 %v1053, 85
    %v1333 = vpop.permute.xlu0 %1332
    %1334 = vrot.lane.b32.xlu0 %v1055, 85
    %v1335 = vpop.permute.xlu0 %1334
    %v1336 = vsel %vm1068, %v1329, 0
    %v1338 = vsel %vm1068, %v1331, 0
    %v1340 = vsel %vm1068, %v1333, 0
    %v1342 = vsel %vm1068, %v1335, 0
    %1344 = vmatprep.subr.mxu0 0.0
    %1345 = vmatpush1.msra.mxu0 0.0
    %1346 = vmatprep.subr.mxu0 0.0
    %1347 = vmatpush1.msra.mxu0 0.0
    %1348 = vmatprep.subr.mxu0 0.0
    %1349 = vmatpush1.msra.mxu0 0.0
    %1350 = vmatprep.subr.mxu0 0.0
    %1351 = vmatpush1.msra.mxu0 0.0
    %1352 = vmatprep.subr.mxu0 0.0
    %1353 = vmatpush1.msra.mxu0 0.0
    %1354 = vmatprep.subr.mxu0 0.0
    %1355 = vmatpush1.msra.mxu0 0.0
    %1356 = vmatprep.subr.mxu0 0.0
    %1357 = vmatpush1.msra.mxu0 0.0
    %1358 = vmatprep.subr.mxu0 0.0
    %1359 = vmatpush1.msra.mxu0 0.0
    %1360 = vmatprep.subr.mxu0 0.0
    %1361 = vmatpush1.msra.mxu0 0.0
    %1362 = vmatprep.subr.mxu0 0.0
    %1363 = vmatpush1.msra.mxu0 0.0
    %1364 = vmatprep.subr.mxu0 0.0
    %1365 = vmatpush1.msra.mxu0 0.0
    %1366 = vmatprep.subr.mxu0 0.0
    %1367 = vmatpush1.msra.mxu0 0.0
    %1368 = vmatprep.subr.mxu0 0.0
    %1369 = vmatpush1.msra.mxu0 %v1311
    %1370 = vmatprep.subr.mxu0 0.0
    %1371 = vmatpush1.msra.mxu0 %v1310
    %1372 = vmatprep.subr.mxu0 0.0
    %1373 = vmatpush1.msra.mxu0 %v1309
    %1374 = vmatprep.subr.mxu0 0.0
    %1375 = vmatpush1.msra.mxu0 %v1308
    %1376 = vmatprep.subr.mxu0 0.0
    %1377 = vmatpush2.msra.mxu0 0.0
    %1378 = vmatprep.subr.mxu0 0.0
    %1379 = vmatpush2.msra.mxu0 0.0
    %1380 = vmatprep.subr.mxu0 0.0
    %1381 = vmatpush2.msra.mxu0 0.0
    %1382 = vmatprep.subr.mxu0 0.0
    %1383 = vmatpush2.msra.mxu0 0.0
    %1384 = vmatprep.subr.mxu0 0.0
    %1385 = vmatpush2.msra.mxu0 0.0
    %1386 = vmatprep.subr.mxu0 0.0
    %1387 = vmatpush2.msra.mxu0 0.0
    %1388 = vmatprep.subr.mxu0 0.0
    %1389 = vmatpush2.msra.mxu0 0.0
    %1390 = vmatprep.subr.mxu0 0.0
    %1391 = vmatpush2.msra.mxu0 0.0
    %1392 = vmatprep.subr.mxu0 0.0
    %1393 = vmatpush2.msra.mxu0 0.0
    %1394 = vmatprep.subr.mxu0 0.0
    %1395 = vmatpush2.msra.mxu0 0.0
    %1396 = vmatprep.subr.mxu0 0.0
    %1397 = vmatpush2.msra.mxu0 0.0
    %1398 = vmatprep.subr.mxu0 0.0
    %1399 = vmatpush2.msra.mxu0 0.0
    %1400 = vmatprep.subr.mxu0 0.0
    %1401 = vmatpush2.msra.mxu0 0.0
    %1402 = vmatprep.subr.mxu0 0.0
    %1403 = vmatpush2.msra.mxu0 0.0
    %1404 = vmatprep.subr.mxu0 0.0
    %1405 = vmatpush2.msra.mxu0 0.0
    %1406 = vmatprep.subr.mxu0 0.0
    %1407 = vmatpush2.msra.mxu0 0.0
    %1408 = vmatprep.mubr.f32.mxu0 0.0
    %1409 = vmatmul.mubr.f32.gmra.mxu0 %v1336
    %v1410 = vpop.f32.mrf.mxu0
    %v1411 = vadd.f32 %v1314, %v1410
    %v1412 = vpop.f32.mrf.mxu0
    %1413 = vmatprep.mubr.f32.mxu0 0.0
    %1414 = vmatmul.mubr.f32.gmra.mxu0 %v1338
    %v1415 = vpop.f32.mrf.mxu0
    %v1416 = vadd.f32 %v1318, %v1415
    %v1417 = vpop.f32.mrf.mxu0
    %1418 = vmatprep.mubr.f32.mxu0 0.0
    %1419 = vmatmul.mubr.f32.gmra.mxu0 %v1340
    %v1420 = vpop.f32.mrf.mxu0
    %v1421 = vadd.f32 %v1322, %v1420
    %v1422 = vpop.f32.mrf.mxu0
    %1423 = vmatprep.mubr.f32.mxu0 0.0
    %1424 = vmatmul.mubr.f32.gmra.mxu0 %v1342
    %v1425 = vpop.f32.mrf.mxu0
    %v1426 = vadd.f32 %v1326, %v1425
    %v1427 = vpop.f32.mrf.mxu0
    %1428 = vdwg.mxu0
    %vm1429 = vcmp.ge.f32.partialorder %v1411, 0.0
    %vm1430 = vcmp.ge.f32.partialorder %v1416, 0.0
    %vm1431 = vcmp.ge.f32.partialorder %v1421, 0.0
    %vm1432 = vcmp.ge.f32.partialorder %v1426, 0.0
    %v1433 = vmul.f32 %v1411, 0.2
    %v1434 = vmul.f32 %v1416, 0.2
    %v1435 = vmul.f32 %v1421, 0.2
    %v1436 = vmul.f32 %v1426, 0.2
    %v1437 = vsel %vm1429, %v1411, %v1433
    %v1438 = vsel %vm1430, %v1416, %v1434
    %v1439 = vsel %vm1431, %v1421, %v1435
    %v1440 = vsel %vm1432, %v1426, %v1436
    %1441 = vset.pattern.permute.xlu0 108
    %1442 = vperm.xlu0 %1441, %v1049
    %v1443 = vpop.permute.xlu0 %1442
    %1445 = vset.pattern.permute.xlu0 108
    %1446 = vperm.xlu0 %1445, %v1051
    %v1447 = vpop.permute.xlu0 %1446
    %1449 = vset.pattern.permute.xlu0 108
    %1450 = vperm.xlu0 %1449, %v1053
    %v1451 = vpop.permute.xlu0 %1450
    %1453 = vset.pattern.permute.xlu0 108
    %1454 = vperm.xlu0 %1453, %v1055
    %v1455 = vpop.permute.xlu0 %1454
    %1457 = vrot.lane.b32.xlu0 %v1049, 52
    %v1458 = vpop.permute.xlu0 %1457
    %1459 = vrot.lane.b32.xlu0 %v1051, 52
    %v1460 = vpop.permute.xlu0 %1459
    %1461 = vrot.lane.b32.xlu0 %v1053, 52
    %v1462 = vpop.permute.xlu0 %1461
    %1463 = vrot.lane.b32.xlu0 %v1055, 52
    %v1464 = vpop.permute.xlu0 %1463
    %v1465 = vsel %vm1068, %v1458, 0
    %v1467 = vsel %vm1068, %v1460, 0
    %v1469 = vsel %vm1068, %v1462, 0
    %v1471 = vsel %vm1068, %v1464, 0
    %1473 = vmatprep.subr.mxu0 0.0
    %1474 = vmatpush1.msra.mxu0 0.0
    %1475 = vmatprep.subr.mxu0 0.0
    %1476 = vmatpush1.msra.mxu0 0.0
    %1477 = vmatprep.subr.mxu0 0.0
    %1478 = vmatpush1.msra.mxu0 0.0
    %1479 = vmatprep.subr.mxu0 0.0
    %1480 = vmatpush1.msra.mxu0 0.0
    %1481 = vmatprep.subr.mxu0 0.0
    %1482 = vmatpush1.msra.mxu0 0.0
    %1483 = vmatprep.subr.mxu0 0.0
    %1484 = vmatpush1.msra.mxu0 0.0
    %1485 = vmatprep.subr.mxu0 0.0
    %1486 = vmatpush1.msra.mxu0 0.0
    %1487 = vmatprep.subr.mxu0 0.0
    %1488 = vmatpush1.msra.mxu0 0.0
    %1489 = vmatprep.subr.mxu0 0.0
    %1490 = vmatpush1.msra.mxu0 0.0
    %1491 = vmatprep.subr.mxu0 0.0
    %1492 = vmatpush1.msra.mxu0 0.0
    %1493 = vmatprep.subr.mxu0 0.0
    %1494 = vmatpush1.msra.mxu0 0.0
    %1495 = vmatprep.subr.mxu0 0.0
    %1496 = vmatpush1.msra.mxu0 0.0
    %1497 = vmatprep.subr.mxu0 0.0
    %1498 = vmatpush1.msra.mxu0 %v1440
    %1499 = vmatprep.subr.mxu0 0.0
    %1500 = vmatpush1.msra.mxu0 %v1439
    %1501 = vmatprep.subr.mxu0 0.0
    %1502 = vmatpush1.msra.mxu0 %v1438
    %1503 = vmatprep.subr.mxu0 0.0
    %1504 = vmatpush1.msra.mxu0 %v1437
    %1505 = vmatprep.subr.mxu0 0.0
    %1506 = vmatpush2.msra.mxu0 0.0
    %1507 = vmatprep.subr.mxu0 0.0
    %1508 = vmatpush2.msra.mxu0 0.0
    %1509 = vmatprep.subr.mxu0 0.0
    %1510 = vmatpush2.msra.mxu0 0.0
    %1511 = vmatprep.subr.mxu0 0.0
    %1512 = vmatpush2.msra.mxu0 0.0
    %1513 = vmatprep.subr.mxu0 0.0
    %1514 = vmatpush2.msra.mxu0 0.0
    %1515 = vmatprep.subr.mxu0 0.0
    %1516 = vmatpush2.msra.mxu0 0.0
    %1517 = vmatprep.subr.mxu0 0.0
    %1518 = vmatpush2.msra.mxu0 0.0
    %1519 = vmatprep.subr.mxu0 0.0
    %1520 = vmatpush2.msra.mxu0 0.0
    %1521 = vmatprep.subr.mxu0 0.0
    %1522 = vmatpush2.msra.mxu0 0.0
    %1523 = vmatprep.subr.mxu0 0.0
    %1524 = vmatpush2.msra.mxu0 0.0
    %1525 = vmatprep.subr.mxu0 0.0
    %1526 = vmatpush2.msra.mxu0 0.0
    %1527 = vmatprep.subr.mxu0 0.0
    %1528 = vmatpush2.msra.mxu0 0.0
    %1529 = vmatprep.subr.mxu0 0.0
    %1530 = vmatpush2.msra.mxu0 0.0
    %1531 = vmatprep.subr.mxu0 0.0
    %1532 = vmatpush2.msra.mxu0 0.0
    %1533 = vmatprep.subr.mxu0 0.0
    %1534 = vmatpush2.msra.mxu0 0.0
    %1535 = vmatprep.subr.mxu0 0.0
    %1536 = vmatpush2.msra.mxu0 0.0
    %1537 = vmatprep.mubr.f32.mxu0 0.0
    %1538 = vmatmul.mubr.f32.gmra.mxu0 %v1465
    %v1539 = vpop.f32.mrf.mxu0
    %v1540 = vadd.f32 %v1443, %v1539
    %v1541 = vpop.f32.mrf.mxu0
    %1542 = vmatprep.mubr.f32.mxu0 0.0
    %1543 = vmatmul.mubr.f32.gmra.mxu0 %v1467
    %v1544 = vpop.f32.mrf.mxu0
    %v1545 = vadd.f32 %v1447, %v1544
    %v1546 = vpop.f32.mrf.mxu0
    %1547 = vmatprep.mubr.f32.mxu0 0.0
    %1548 = vmatmul.mubr.f32.gmra.mxu0 %v1469
    %v1549 = vpop.f32.mrf.mxu0
    %v1550 = vadd.f32 %v1451, %v1549
    %v1551 = vpop.f32.mrf.mxu0
    %1552 = vmatprep.mubr.f32.mxu0 0.0
    %1553 = vmatmul.mubr.f32.gmra.mxu0 %v1471
    %v1554 = vpop.f32.mrf.mxu0
    %v1555 = vadd.f32 %v1455, %v1554
    %v1556 = vpop.f32.mrf.mxu0
    %1557 = vdwg.mxu0
    %v1558 = vld [vmem:[#allocation3 + $0x18] sm:$0xff]
    %v1559 = vld [vmem:[#allocation3 + $0x20] sm:$0xff]
    %v1560 = vld [vmem:[#allocation3 + $0x70] sm:$0xff]
    %v1561 = vld [vmem:[#allocation3 + $0x78] sm:$0xff]
    %v1562 = vld [vmem:[#allocation3 + $0xc8] sm:$0xff]
    %v1563 = vld [vmem:[#allocation3 + $0xd0] sm:$0xff]
    %v1564 = vld [vmem:[#allocation3 + $0x120] sm:$0xff]
    %v1565 = vld [vmem:[#allocation3 + $0x128] sm:$0xff]
    %v1566 = vld [vmem:[%s1] sm:$0xff]
    %v1567 = vld [vmem:[%s1 + $0x8] sm:$0xff]
    %v1568 = vld [vmem:[%s1 + $0x10] sm:$0xff]
    %v1569 = vld [vmem:[%s1 + $0x18] sm:$0xff]
    %1571 = vset.pattern.permute.xlu0 0
    %1572 = vperm.xlu0 %1571, %v1566
    %v1573 = vpop.permute.xlu0 %1572
    %1576 = vset.pattern.permute.xlu0 0
    %1577 = vperm.xlu0 %1576, %v1567
    %v1578 = vpop.permute.xlu0 %1577
    %1581 = vset.pattern.permute.xlu0 0
    %1582 = vperm.xlu0 %1581, %v1568
    %v1583 = vpop.permute.xlu0 %1582
    %1586 = vset.pattern.permute.xlu0 0
    %1587 = vperm.xlu0 %1586, %v1569
    %v1588 = vpop.permute.xlu0 %1587
    %1598 = vrot.lane.b32.xlu0 %v1558, 19
    %v1599 = vpop.permute.xlu0 %1598
    %1600 = vrot.lane.b32.xlu0 %v1559, 19
    %v1601 = vpop.permute.xlu0 %1600
    %1602 = vrot.lane.b32.xlu0 %v1560, 19
    %v1603 = vpop.permute.xlu0 %1602
    %1604 = vrot.lane.b32.xlu0 %v1561, 19
    %v1605 = vpop.permute.xlu0 %1604
    %1606 = vrot.lane.b32.xlu0 %v1562, 19
    %v1607 = vpop.permute.xlu0 %1606
    %1608 = vrot.lane.b32.xlu0 %v1563, 19
    %v1609 = vpop.permute.xlu0 %1608
    %1610 = vrot.lane.b32.xlu0 %v1564, 19
    %v1611 = vpop.permute.xlu0 %1610
    %1612 = vrot.lane.b32.xlu0 %v1565, 19
    %v1613 = vpop.permute.xlu0 %1612
    %vm1614 = vcmask 154624
    %v1615 = vsel %vm1614, %v1599, %v1601
    %v1616 = vsel %vm1614, %v1603, %v1605
    %v1617 = vsel %vm1614, %v1607, %v1609
    %v1618 = vsel %vm1614, %v1611, %v1613
    %v1619 = vsel %vm1068, %v1615, 0
    %v1621 = vsel %vm1068, %v1616, 0
    %v1623 = vsel %vm1068, %v1617, 0
    %v1625 = vsel %vm1068, %v1618, 0
    %1627 = vmatprep.subr.mxu0 0.0
    %1628 = vmatpush1.msra.mxu0 0.0
    %1629 = vmatprep.subr.mxu0 0.0
    %1630 = vmatpush1.msra.mxu0 0.0
    %1631 = vmatprep.subr.mxu0 0.0
    %1632 = vmatpush1.msra.mxu0 0.0
    %1633 = vmatprep.subr.mxu0 0.0
    %1634 = vmatpush1.msra.mxu0 0.0
    %1635 = vmatprep.subr.mxu0 0.0
    %1636 = vmatpush1.msra.mxu0 0.0
    %1637 = vmatprep.subr.mxu0 0.0
    %1638 = vmatpush1.msra.mxu0 0.0
    %1639 = vmatprep.subr.mxu0 0.0
    %1640 = vmatpush1.msra.mxu0 0.0
    %1641 = vmatprep.subr.mxu0 0.0
    %1642 = vmatpush1.msra.mxu0 0.0
    %1643 = vmatprep.subr.mxu0 0.0
    %1644 = vmatpush1.msra.mxu0 0.0
    %1645 = vmatprep.subr.mxu0 0.0
    %1646 = vmatpush1.msra.mxu0 0.0
    %1647 = vmatprep.subr.mxu0 0.0
    %1648 = vmatpush1.msra.mxu0 0.0
    %1649 = vmatprep.subr.mxu0 0.0
    %1650 = vmatpush1.msra.mxu0 0.0
    %1651 = vmatprep.subr.mxu0 0.0
    %1652 = vmatpush1.msra.mxu0 %v1555
    %1653 = vmatprep.subr.mxu0 0.0
    %1654 = vmatpush1.msra.mxu0 %v1550
    %1655 = vmatprep.subr.mxu0 0.0
    %1656 = vmatpush1.msra.mxu0 %v1545
    %1657 = vmatprep.subr.mxu0 0.0
    %1658 = vmatpush1.msra.mxu0 %v1540
    %1659 = vmatprep.subr.mxu0 0.0
    %1660 = vmatpush2.msra.mxu0 0.0
    %1661 = vmatprep.subr.mxu0 0.0
    %1662 = vmatpush2.msra.mxu0 0.0
    %1663 = vmatprep.subr.mxu0 0.0
    %1664 = vmatpush2.msra.mxu0 0.0
    %1665 = vmatprep.subr.mxu0 0.0
    %1666 = vmatpush2.msra.mxu0 0.0
    %1667 = vmatprep.subr.mxu0 0.0
    %1668 = vmatpush2.msra.mxu0 0.0
    %1669 = vmatprep.subr.mxu0 0.0
    %1670 = vmatpush2.msra.mxu0 0.0
    %1671 = vmatprep.subr.mxu0 0.0
    %1672 = vmatpush2.msra.mxu0 0.0
    %1673 = vmatprep.subr.mxu0 0.0
    %1674 = vmatpush2.msra.mxu0 0.0
    %1675 = vmatprep.subr.mxu0 0.0
    %1676 = vmatpush2.msra.mxu0 0.0
    %1677 = vmatprep.subr.mxu0 0.0
    %1678 = vmatpush2.msra.mxu0 0.0
    %1679 = vmatprep.subr.mxu0 0.0
    %1680 = vmatpush2.msra.mxu0 0.0
    %1681 = vmatprep.subr.mxu0 0.0
    %1682 = vmatpush2.msra.mxu0 0.0
    %1683 = vmatprep.subr.mxu0 0.0
    %1684 = vmatpush2.msra.mxu0 0.0
    %1685 = vmatprep.subr.mxu0 0.0
    %1686 = vmatpush2.msra.mxu0 0.0
    %1687 = vmatprep.subr.mxu0 0.0
    %1688 = vmatpush2.msra.mxu0 0.0
    %1689 = vmatprep.subr.mxu0 0.0
    %1690 = vmatpush2.msra.mxu0 0.0
    %1691 = vmatprep.mubr.f32.mxu0 0.0
    %1692 = vmatmul.mubr.f32.gmra.mxu0 %v1619
    %v1693 = vpop.f32.mrf.mxu0
    %v1694 = vadd.f32 %v1573, %v1693
    %v1695 = vpop.f32.mrf.mxu0
    %1696 = vmatprep.mubr.f32.mxu0 0.0
    %1697 = vmatmul.mubr.f32.gmra.mxu0 %v1621
    %v1698 = vpop.f32.mrf.mxu0
    %v1699 = vadd.f32 %v1578, %v1698
    %v1700 = vpop.f32.mrf.mxu0
    %1701 = vmatprep.mubr.f32.mxu0 0.0
    %1702 = vmatmul.mubr.f32.gmra.mxu0 %v1623
    %v1703 = vpop.f32.mrf.mxu0
    %v1704 = vadd.f32 %v1583, %v1703
    %v1705 = vpop.f32.mrf.mxu0
    %1706 = vmatprep.mubr.f32.mxu0 0.0
    %1707 = vmatmul.mubr.f32.gmra.mxu0 %v1625
    %v1708 = vpop.f32.mrf.mxu0
    %v1709 = vadd.f32 %v1588, %v1708
    %v1710 = vpop.f32.mrf.mxu0
    %1711 = vdwg.mxu0
    %vm1712 = vcmp.ge.f32.partialorder %v1694, 0.0
    %vm1713 = vcmp.ge.f32.partialorder %v1699, 0.0
    %vm1714 = vcmp.ge.f32.partialorder %v1704, 0.0
    %vm1715 = vcmp.ge.f32.partialorder %v1709, 0.0
    %v1716 = vmul.f32 %v1694, 0.2
    %v1717 = vmul.f32 %v1699, 0.2
    %v1718 = vmul.f32 %v1704, 0.2
    %v1719 = vmul.f32 %v1709, 0.2
    %v1720 = vsel %vm1712, %v1694, %v1716
    %v1721 = vsel %vm1713, %v1699, %v1717
    %v1722 = vsel %vm1714, %v1704, %v1718
    %v1723 = vsel %vm1715, %v1709, %v1719
    %1724 = vset.pattern.permute.xlu0 45
    %1725 = vperm.xlu0 %1724, %v1559
    %v1726 = vpop.permute.xlu0 %1725
    %1728 = vset.pattern.permute.xlu0 45
    %1729 = vperm.xlu0 %1728, %v1561
    %v1730 = vpop.permute.xlu0 %1729
    %1732 = vset.pattern.permute.xlu0 45
    %1733 = vperm.xlu0 %1732, %v1563
    %v1734 = vpop.permute.xlu0 %1733
    %1736 = vset.pattern.permute.xlu0 45
    %1737 = vperm.xlu0 %1736, %v1565
    %v1738 = vpop.permute.xlu0 %1737
    %1740 = vrot.lane.b32.xlu0 %v1559, 115
    %v1741 = vpop.permute.xlu0 %1740
    %1742 = vrot.lane.b32.xlu0 %v1561, 115
    %v1743 = vpop.permute.xlu0 %1742
    %1744 = vrot.lane.b32.xlu0 %v1563, 115
    %v1745 = vpop.permute.xlu0 %1744
    %1746 = vrot.lane.b32.xlu0 %v1565, 115
    %v1747 = vpop.permute.xlu0 %1746
    %v1748 = vsel %vm1068, %v1741, 0
    %v1750 = vsel %vm1068, %v1743, 0
    %v1752 = vsel %vm1068, %v1745, 0
    %v1754 = vsel %vm1068, %v1747, 0
    %1756 = vmatprep.subr.mxu0 0.0
    %1757 = vmatpush1.msra.mxu0 0.0
    %1758 = vmatprep.subr.mxu0 0.0
    %1759 = vmatpush1.msra.mxu0 0.0
    %1760 = vmatprep.subr.mxu0 0.0
    %1761 = vmatpush1.msra.mxu0 0.0
    %1762 = vmatprep.subr.mxu0 0.0
    %1763 = vmatpush1.msra.mxu0 0.0
    %1764 = vmatprep.subr.mxu0 0.0
    %1765 = vmatpush1.msra.mxu0 0.0
    %1766 = vmatprep.subr.mxu0 0.0
    %1767 = vmatpush1.msra.mxu0 0.0
    %1768 = vmatprep.subr.mxu0 0.0
    %1769 = vmatpush1.msra.mxu0 0.0
    %1770 = vmatprep.subr.mxu0 0.0
    %1771 = vmatpush1.msra.mxu0 0.0
    %1772 = vmatprep.subr.mxu0 0.0
    %1773 = vmatpush1.msra.mxu0 0.0
    %1774 = vmatprep.subr.mxu0 0.0
    %1775 = vmatpush1.msra.mxu0 0.0
    %1776 = vmatprep.subr.mxu0 0.0
    %1777 = vmatpush1.msra.mxu0 0.0
    %1778 = vmatprep.subr.mxu0 0.0
    %1779 = vmatpush1.msra.mxu0 0.0
    %1780 = vmatprep.subr.mxu0 0.0
    %1781 = vmatpush1.msra.mxu0 %v1723
    %1782 = vmatprep.subr.mxu0 0.0
    %1783 = vmatpush1.msra.mxu0 %v1722
    %1784 = vmatprep.subr.mxu0 0.0
    %1785 = vmatpush1.msra.mxu0 %v1721
    %1786 = vmatprep.subr.mxu0 0.0
    %1787 = vmatpush1.msra.mxu0 %v1720
    %1788 = vmatprep.subr.mxu0 0.0
    %1789 = vmatpush2.msra.mxu0 0.0
    %1790 = vmatprep.subr.mxu0 0.0
    %1791 = vmatpush2.msra.mxu0 0.0
    %1792 = vmatprep.subr.mxu0 0.0
    %1793 = vmatpush2.msra.mxu0 0.0
    %1794 = vmatprep.subr.mxu0 0.0
    %1795 = vmatpush2.msra.mxu0 0.0
    %1796 = vmatprep.subr.mxu0 0.0
    %1797 = vmatpush2.msra.mxu0 0.0
    %1798 = vmatprep.subr.mxu0 0.0
    %1799 = vmatpush2.msra.mxu0 0.0
    %1800 = vmatprep.subr.mxu0 0.0
    %1801 = vmatpush2.msra.mxu0 0.0
    %1802 = vmatprep.subr.mxu0 0.0
    %1803 = vmatpush2.msra.mxu0 0.0
    %1804 = vmatprep.subr.mxu0 0.0
    %1805 = vmatpush2.msra.mxu0 0.0
    %1806 = vmatprep.subr.mxu0 0.0
    %1807 = vmatpush2.msra.mxu0 0.0
    %1808 = vmatprep.subr.mxu0 0.0
    %1809 = vmatpush2.msra.mxu0 0.0
    %1810 = vmatprep.subr.mxu0 0.0
    %1811 = vmatpush2.msra.mxu0 0.0
    %1812 = vmatprep.subr.mxu0 0.0
    %1813 = vmatpush2.msra.mxu0 0.0
    %1814 = vmatprep.subr.mxu0 0.0
    %1815 = vmatpush2.msra.mxu0 0.0
    %1816 = vmatprep.subr.mxu0 0.0
    %1817 = vmatpush2.msra.mxu0 0.0
    %1818 = vmatprep.subr.mxu0 0.0
    %1819 = vmatpush2.msra.mxu0 0.0
    %1820 = vmatprep.mubr.f32.mxu0 0.0
    %1821 = vmatmul.mubr.f32.gmra.mxu0 %v1748
    %v1822 = vpop.f32.mrf.mxu0
    %v1823 = vadd.f32 %v1726, %v1822
    %v1824 = vpop.f32.mrf.mxu0
    %1825 = vmatprep.mubr.f32.mxu0 0.0
    %1826 = vmatmul.mubr.f32.gmra.mxu0 %v1750
    %v1827 = vpop.f32.mrf.mxu0
    %v1828 = vadd.f32 %v1730, %v1827
    %v1829 = vpop.f32.mrf.mxu0
    %1830 = vmatprep.mubr.f32.mxu0 0.0
    %1831 = vmatmul.mubr.f32.gmra.mxu0 %v1752
    %v1832 = vpop.f32.mrf.mxu0
    %v1833 = vadd.f32 %v1734, %v1832
    %v1834 = vpop.f32.mrf.mxu0
    %1835 = vmatprep.mubr.f32.mxu0 0.0
    %1836 = vmatmul.mubr.f32.gmra.mxu0 %v1754
    %v1837 = vpop.f32.mrf.mxu0
    %v1838 = vadd.f32 %v1738, %v1837
    %v1839 = vpop.f32.mrf.mxu0
    %1840 = vdwg.mxu0
    %vm1841 = vcmp.ge.f32.partialorder %v1823, 0.0
    %vm1842 = vcmp.ge.f32.partialorder %v1828, 0.0
    %vm1843 = vcmp.ge.f32.partialorder %v1833, 0.0
    %vm1844 = vcmp.ge.f32.partialorder %v1838, 0.0
    %v1845 = vmul.f32 %v1823, 0.2
    %v1846 = vmul.f32 %v1828, 0.2
    %v1847 = vmul.f32 %v1833, 0.2
    %v1848 = vmul.f32 %v1838, 0.2
    %v1849 = vsel %vm1841, %v1823, %v1845
    %v1850 = vsel %vm1842, %v1828, %v1846
    %v1851 = vsel %vm1843, %v1833, %v1847
    %v1852 = vsel %vm1844, %v1838, %v1848
    %1853 = vset.pattern.permute.xlu0 78
    %1854 = vperm.xlu0 %1853, %v1559
    %v1855 = vpop.permute.xlu0 %1854
    %1857 = vset.pattern.permute.xlu0 78
    %1858 = vperm.xlu0 %1857, %v1561
    %v1859 = vpop.permute.xlu0 %1858
    %1861 = vset.pattern.permute.xlu0 78
    %1862 = vperm.xlu0 %1861, %v1563
    %v1863 = vpop.permute.xlu0 %1862
    %1865 = vset.pattern.permute.xlu0 78
    %1866 = vperm.xlu0 %1865, %v1565
    %v1867 = vpop.permute.xlu0 %1866
    %1869 = vrot.lane.b32.xlu0 %v1559, 82
    %v1870 = vpop.permute.xlu0 %1869
    %1871 = vrot.lane.b32.xlu0 %v1561, 82
    %v1872 = vpop.permute.xlu0 %1871
    %1873 = vrot.lane.b32.xlu0 %v1563, 82
    %v1874 = vpop.permute.xlu0 %1873
    %1875 = vrot.lane.b32.xlu0 %v1565, 82
    %v1876 = vpop.permute.xlu0 %1875
    %v1877 = vsel %vm1068, %v1870, 0
    %v1879 = vsel %vm1068, %v1872, 0
    %v1881 = vsel %vm1068, %v1874, 0
    %v1883 = vsel %vm1068, %v1876, 0
    %1885 = vmatprep.subr.mxu0 0.0
    %1886 = vmatpush1.msra.mxu0 0.0
    %1887 = vmatprep.subr.mxu0 0.0
    %1888 = vmatpush1.msra.mxu0 0.0
    %1889 = vmatprep.subr.mxu0 0.0
    %1890 = vmatpush1.msra.mxu0 0.0
    %1891 = vmatprep.subr.mxu0 0.0
    %1892 = vmatpush1.msra.mxu0 0.0
    %1893 = vmatprep.subr.mxu0 0.0
    %1894 = vmatpush1.msra.mxu0 0.0
    %1895 = vmatprep.subr.mxu0 0.0
    %1896 = vmatpush1.msra.mxu0 0.0
    %1897 = vmatprep.subr.mxu0 0.0
    %1898 = vmatpush1.msra.mxu0 0.0
    %1899 = vmatprep.subr.mxu0 0.0
    %1900 = vmatpush1.msra.mxu0 0.0
    %1901 = vmatprep.subr.mxu0 0.0
    %1902 = vmatpush1.msra.mxu0 0.0
    %1903 = vmatprep.subr.mxu0 0.0
    %1904 = vmatpush1.msra.mxu0 0.0
    %1905 = vmatprep.subr.mxu0 0.0
    %1906 = vmatpush1.msra.mxu0 0.0
    %1907 = vmatprep.subr.mxu0 0.0
    %1908 = vmatpush1.msra.mxu0 0.0
    %1909 = vmatprep.subr.mxu0 0.0
    %1910 = vmatpush1.msra.mxu0 %v1852
    %1911 = vmatprep.subr.mxu0 0.0
    %1912 = vmatpush1.msra.mxu0 %v1851
    %1913 = vmatprep.subr.mxu0 0.0
    %1914 = vmatpush1.msra.mxu0 %v1850
    %1915 = vmatprep.subr.mxu0 0.0
    %1916 = vmatpush1.msra.mxu0 %v1849
    %1917 = vmatprep.subr.mxu0 0.0
    %1918 = vmatpush2.msra.mxu0 0.0
    %1919 = vmatprep.subr.mxu0 0.0
    %1920 = vmatpush2.msra.mxu0 0.0
    %1921 = vmatprep.subr.mxu0 0.0
    %1922 = vmatpush2.msra.mxu0 0.0
    %1923 = vmatprep.subr.mxu0 0.0
    %1924 = vmatpush2.msra.mxu0 0.0
    %1925 = vmatprep.subr.mxu0 0.0
    %1926 = vmatpush2.msra.mxu0 0.0
    %1927 = vmatprep.subr.mxu0 0.0
    %1928 = vmatpush2.msra.mxu0 0.0
    %1929 = vmatprep.subr.mxu0 0.0
    %1930 = vmatpush2.msra.mxu0 0.0
    %1931 = vmatprep.subr.mxu0 0.0
    %1932 = vmatpush2.msra.mxu0 0.0
    %1933 = vmatprep.subr.mxu0 0.0
    %1934 = vmatpush2.msra.mxu0 0.0
    %1935 = vmatprep.subr.mxu0 0.0
    %1936 = vmatpush2.msra.mxu0 0.0
    %1937 = vmatprep.subr.mxu0 0.0
    %1938 = vmatpush2.msra.mxu0 0.0
    %1939 = vmatprep.subr.mxu0 0.0
    %1940 = vmatpush2.msra.mxu0 0.0
    %1941 = vmatprep.subr.mxu0 0.0
    %1942 = vmatpush2.msra.mxu0 0.0
    %1943 = vmatprep.subr.mxu0 0.0
    %1944 = vmatpush2.msra.mxu0 0.0
    %1945 = vmatprep.subr.mxu0 0.0
    %1946 = vmatpush2.msra.mxu0 0.0
    %1947 = vmatprep.subr.mxu0 0.0
    %1948 = vmatpush2.msra.mxu0 0.0
    %1949 = vmatprep.mubr.f32.mxu0 0.0
    %1950 = vmatmul.mubr.f32.gmra.mxu0 %v1877
    %v1951 = vpop.f32.mrf.mxu0
    %v1952 = vadd.f32 %v1855, %v1951
    %v1953 = vpop.f32.mrf.mxu0
    %1954 = vmatprep.mubr.f32.mxu0 0.0
    %1955 = vmatmul.mubr.f32.gmra.mxu0 %v1879
    %v1956 = vpop.f32.mrf.mxu0
    %v1957 = vadd.f32 %v1859, %v1956
    %v1958 = vpop.f32.mrf.mxu0
    %1959 = vmatprep.mubr.f32.mxu0 0.0
    %1960 = vmatmul.mubr.f32.gmra.mxu0 %v1881
    %v1961 = vpop.f32.mrf.mxu0
    %v1962 = vadd.f32 %v1863, %v1961
    %v1963 = vpop.f32.mrf.mxu0
    %1964 = vmatprep.mubr.f32.mxu0 0.0
    %1965 = vmatmul.mubr.f32.gmra.mxu0 %v1883
    %v1966 = vpop.f32.mrf.mxu0
    %v1967 = vadd.f32 %v1867, %v1966
    %v1968 = vpop.f32.mrf.mxu0
    %1969 = vdwg.mxu0
    %1970 = vst.msk [vmem:[#allocation2] sm:$0xff] %vm350, 0.0
    %1971 = vst.msk [vmem:[#allocation2 + $0x8] sm:$0xff] %vm350, 0.0
    %1972 = vst.msk [vmem:[#allocation2 + $0x10] sm:$0xff] %vm350, 0.0
    %1973 = vst.msk [vmem:[#allocation2 + $0x18] sm:$0xff] %vm350, 0.0
    %1978 = vrot.lane.b32.xlu0 %v1952, 1
    %v1979 = vpop.permute.xlu0 %1978
    %1980 = vrot.lane.b32.xlu0 %v1957, 1
    %v1981 = vpop.permute.xlu0 %1980
    %1982 = vrot.lane.b32.xlu0 %v1962, 1
    %v1983 = vpop.permute.xlu0 %1982
    %1984 = vrot.lane.b32.xlu0 %v1967, 1
    %v1985 = vpop.permute.xlu0 %1984
    %1990 = vst.msk [vmem:[#allocation2] sm:$0xff] %vm359, %v1979
    %1991 = vst.msk [vmem:[#allocation2 + $0x8] sm:$0xff] %vm359, %v1981
    %1992 = vst.msk [vmem:[#allocation2 + $0x10] sm:$0xff] %vm359, %v1983
    %1993 = vst.msk [vmem:[#allocation2 + $0x18] sm:$0xff] %vm359, %v1985
    %1994 = vst.msk [vmem:[#allocation2] sm:$0xff] %vm362, 0.0
    %1995 = vst.msk [vmem:[#allocation2 + $0x8] sm:$0xff] %vm362, 0.0
    %1996 = vst.msk [vmem:[#allocation2 + $0x10] sm:$0xff] %vm362, 0.0
    %1997 = vst.msk [vmem:[#allocation2 + $0x18] sm:$0xff] %vm362, 0.0
    %1998 = vst.msk [vmem:[#allocation2] sm:$0xff] %vm365, %v1979
    %1999 = vst.msk [vmem:[#allocation2 + $0x8] sm:$0xff] %vm365, %v1981
    %2000 = vst.msk [vmem:[#allocation2 + $0x10] sm:$0xff] %vm365, %v1983
    %2001 = vst.msk [vmem:[#allocation2 + $0x18] sm:$0xff] %vm365, %v1985
    %2002 = vst.msk [vmem:[#allocation2 + $0x20] sm:$0xff] %vm368, %v1952
    %2003 = vst.msk [vmem:[#allocation2 + $0x28] sm:$0xff] %vm368, %v1957
    %2004 = vst.msk [vmem:[#allocation2 + $0x30] sm:$0xff] %vm368, %v1962
    %2005 = vst.msk [vmem:[#allocation2 + $0x38] sm:$0xff] %vm368, %v1967
    %2006 = vst.msk [vmem:[#allocation2 + $0x20] sm:$0xff] %vm371, %v1952
    %2007 = vst.msk [vmem:[#allocation2 + $0x28] sm:$0xff] %vm371, %v1957
    %2008 = vst.msk [vmem:[#allocation2 + $0x30] sm:$0xff] %vm371, %v1962
    %2009 = vst.msk [vmem:[#allocation2 + $0x38] sm:$0xff] %vm371, %v1967
    %2010 = vst.msk [vmem:[#allocation2 + $0x40] sm:$0xff] %vm374, 0.0
    %2011 = vst.msk [vmem:[#allocation2 + $0x48] sm:$0xff] %vm374, 0.0
    %2012 = vst.msk [vmem:[#allocation2 + $0x50] sm:$0xff] %vm374, 0.0
    %2013 = vst.msk [vmem:[#allocation2 + $0x58] sm:$0xff] %vm374, 0.0
    %2014 = vrot.lane.b32.xlu0 %v1952, 127
    %v2015 = vpop.permute.xlu0 %2014
    %2016 = vrot.lane.b32.xlu0 %v1957, 127
    %v2017 = vpop.permute.xlu0 %2016
    %2018 = vrot.lane.b32.xlu0 %v1962, 127
    %v2019 = vpop.permute.xlu0 %2018
    %2020 = vrot.lane.b32.xlu0 %v1967, 127
    %v2021 = vpop.permute.xlu0 %2020
    %2026 = vst.msk [vmem:[#allocation2 + $0x40] sm:$0xff] %vm222, %v2015
    %2027 = vst.msk [vmem:[#allocation2 + $0x48] sm:$0xff] %vm222, %v2017
    %2028 = vst.msk [vmem:[#allocation2 + $0x50] sm:$0xff] %vm222, %v2019
    %2029 = vst.msk [vmem:[#allocation2 + $0x58] sm:$0xff] %vm222, %v2021
    %2030 = vst.msk [vmem:[#allocation2 + $0x40] sm:$0xff] %vm385, 0.0
    %2031 = vst.msk [vmem:[#allocation2 + $0x48] sm:$0xff] %vm385, 0.0
    %2032 = vst.msk [vmem:[#allocation2 + $0x50] sm:$0xff] %vm385, 0.0
    %2033 = vst.msk [vmem:[#allocation2 + $0x58] sm:$0xff] %vm385, 0.0
    %2034 = vst.msk [vmem:[#allocation2 + $0x40] sm:$0xff] %vm388, %v2015
    %2035 = vst.msk [vmem:[#allocation2 + $0x48] sm:$0xff] %vm388, %v2017
    %2036 = vst.msk [vmem:[#allocation2 + $0x50] sm:$0xff] %vm388, %v2019
    %2037 = vst.msk [vmem:[#allocation2 + $0x58] sm:$0xff] %vm388, %v2021
    %v2038 = vld [vmem:[#allocation3 + $0x20] sm:$0xff]
    %v2039 = vld [vmem:[#allocation3 + $0x28] sm:$0xff]
    %v2040 = vld [vmem:[#allocation3 + $0x78] sm:$0xff]
    %v2041 = vld [vmem:[#allocation3 + $0x80] sm:$0xff]
    %v2042 = vld [vmem:[#allocation3 + $0xd0] sm:$0xff]
    %v2043 = vld [vmem:[#allocation3 + $0xd8] sm:$0xff]
    %v2044 = vld [vmem:[#allocation3 + $0x128] sm:$0xff]
    %v2045 = vld [vmem:[#allocation3 + $0x130] sm:$0xff]
    %v2046 = vld [vmem:[#allocation2] sm:$0xff]
    %v2047 = vld [vmem:[#allocation2 + $0x8] sm:$0xff]
    %v2048 = vld [vmem:[#allocation2 + $0x10] sm:$0xff]
    %v2049 = vld [vmem:[#allocation2 + $0x18] sm:$0xff]
    %v2050 = vld [vmem:[#allocation2 + $0x20] sm:$0xff]
    %v2051 = vld [vmem:[#allocation2 + $0x28] sm:$0xff]
    %v2052 = vld [vmem:[#allocation2 + $0x30] sm:$0xff]
    %v2053 = vld [vmem:[#allocation2 + $0x38] sm:$0xff]
    %v2054 = vld [vmem:[#allocation2 + $0x40] sm:$0xff]
    %v2055 = vld [vmem:[#allocation2 + $0x48] sm:$0xff]
    %v2056 = vld [vmem:[#allocation2 + $0x50] sm:$0xff]
    %v2057 = vld [vmem:[#allocation2 + $0x58] sm:$0xff]
    %2059 = vset.pattern.permute.xlu0 47
    %2060 = vperm.xlu0 %2059, %v2039
    %v2061 = vpop.permute.xlu0 %2060
    %2064 = vset.pattern.permute.xlu0 47
    %2065 = vperm.xlu0 %2064, %v2041
    %v2066 = vpop.permute.xlu0 %2065
    %2069 = vset.pattern.permute.xlu0 47
    %2070 = vperm.xlu0 %2069, %v2043
    %v2071 = vpop.permute.xlu0 %2070
    %2074 = vset.pattern.permute.xlu0 47
    %2075 = vperm.xlu0 %2074, %v2045
    %v2076 = vpop.permute.xlu0 %2075
    %2082 = vrot.lane.b32.xlu0 %v2038, 49
    %v2083 = vpop.permute.xlu0 %2082
    %2084 = vrot.lane.b32.xlu0 %v2039, 49
    %v2085 = vpop.permute.xlu0 %2084
    %2086 = vrot.lane.b32.xlu0 %v2040, 49
    %v2087 = vpop.permute.xlu0 %2086
    %2088 = vrot.lane.b32.xlu0 %v2041, 49
    %v2089 = vpop.permute.xlu0 %2088
    %2090 = vrot.lane.b32.xlu0 %v2042, 49
    %v2091 = vpop.permute.xlu0 %2090
    %2092 = vrot.lane.b32.xlu0 %v2043, 49
    %v2093 = vpop.permute.xlu0 %2092
    %2094 = vrot.lane.b32.xlu0 %v2044, 49
    %v2095 = vpop.permute.xlu0 %2094
    %2096 = vrot.lane.b32.xlu0 %v2045, 49
    %v2097 = vpop.permute.xlu0 %2096
    %vm2098 = vcmask 400384
    %v2099 = vsel %vm2098, %v2083, %v2085
    %v2100 = vsel %vm2098, %v2087, %v2089
    %v2101 = vsel %vm2098, %v2091, %v2093
    %v2102 = vsel %vm2098, %v2095, %v2097
    %v2103 = vsel %vm828, %v2099, 0
    %v2105 = vsel %vm828, %v2100, 0
    %v2107 = vsel %vm828, %v2101, 0
    %v2109 = vsel %vm828, %v2102, 0
    %2111 = vmatprep.subr.mxu0 0.0
    %2112 = vmatpush1.msra.mxu0 0.0
    %2113 = vmatprep.subr.mxu0 0.0
    %2114 = vmatpush1.msra.mxu0 0.0
    %2115 = vmatprep.subr.mxu0 0.0
    %2116 = vmatpush1.msra.mxu0 0.0
    %2117 = vmatprep.subr.mxu0 0.0
    %2118 = vmatpush1.msra.mxu0 0.0
    %2119 = vmatprep.subr.mxu0 0.0
    %2120 = vmatpush1.msra.mxu0 %v2057
    %2121 = vmatprep.subr.mxu0 0.0
    %2122 = vmatpush1.msra.mxu0 %v2056
    %2123 = vmatprep.subr.mxu0 0.0
    %2124 = vmatpush1.msra.mxu0 %v2055
    %2125 = vmatprep.subr.mxu0 0.0
    %2126 = vmatpush1.msra.mxu0 %v2054
    %2127 = vmatprep.subr.mxu0 0.0
    %2128 = vmatpush1.msra.mxu0 %v2053
    %2129 = vmatprep.subr.mxu0 0.0
    %2130 = vmatpush1.msra.mxu0 %v2052
    %2131 = vmatprep.subr.mxu0 0.0
    %2132 = vmatpush1.msra.mxu0 %v2051
    %2133 = vmatprep.subr.mxu0 0.0
    %2134 = vmatpush1.msra.mxu0 %v2050
    %2135 = vmatprep.subr.mxu0 0.0
    %2136 = vmatpush1.msra.mxu0 %v2049
    %2137 = vmatprep.subr.mxu0 0.0
    %2138 = vmatpush1.msra.mxu0 %v2048
    %2139 = vmatprep.subr.mxu0 0.0
    %2140 = vmatpush1.msra.mxu0 %v2047
    %2141 = vmatprep.subr.mxu0 0.0
    %2142 = vmatpush1.msra.mxu0 %v2046
    %2143 = vmatprep.subr.mxu0 0.0
    %2144 = vmatpush2.msra.mxu0 0.0
    %2145 = vmatprep.subr.mxu0 0.0
    %2146 = vmatpush2.msra.mxu0 0.0
    %2147 = vmatprep.subr.mxu0 0.0
    %2148 = vmatpush2.msra.mxu0 0.0
    %2149 = vmatprep.subr.mxu0 0.0
    %2150 = vmatpush2.msra.mxu0 0.0
    %2151 = vmatprep.subr.mxu0 0.0
    %2152 = vmatpush2.msra.mxu0 0.0
    %2153 = vmatprep.subr.mxu0 0.0
    %2154 = vmatpush2.msra.mxu0 0.0
    %2155 = vmatprep.subr.mxu0 0.0
    %2156 = vmatpush2.msra.mxu0 0.0
    %2157 = vmatprep.subr.mxu0 0.0
    %2158 = vmatpush2.msra.mxu0 0.0
    %2159 = vmatprep.subr.mxu0 0.0
    %2160 = vmatpush2.msra.mxu0 0.0
    %2161 = vmatprep.subr.mxu0 0.0
    %2162 = vmatpush2.msra.mxu0 0.0
    %2163 = vmatprep.subr.mxu0 0.0
    %2164 = vmatpush2.msra.mxu0 0.0
    %2165 = vmatprep.subr.mxu0 0.0
    %2166 = vmatpush2.msra.mxu0 0.0
    %2167 = vmatprep.subr.mxu0 0.0
    %2168 = vmatpush2.msra.mxu0 0.0
    %2169 = vmatprep.subr.mxu0 0.0
    %2170 = vmatpush2.msra.mxu0 0.0
    %2171 = vmatprep.subr.mxu0 0.0
    %2172 = vmatpush2.msra.mxu0 0.0
    %2173 = vmatprep.subr.mxu0 0.0
    %2174 = vmatpush2.msra.mxu0 0.0
    %2175 = vmatprep.mubr.f32.mxu0 0.0
    %2176 = vmatmul.mubr.f32.gmra.mxu0 %v2103
    %v2177 = vpop.f32.mrf.mxu0
    %v2178 = vadd.f32 %v2061, %v2177
    %v2179 = vpop.f32.mrf.mxu0
    %2180 = vmatprep.mubr.f32.mxu0 0.0
    %2181 = vmatmul.mubr.f32.gmra.mxu0 %v2105
    %v2182 = vpop.f32.mrf.mxu0
    %v2183 = vadd.f32 %v2066, %v2182
    %v2184 = vpop.f32.mrf.mxu0
    %2185 = vmatprep.mubr.f32.mxu0 0.0
    %2186 = vmatmul.mubr.f32.gmra.mxu0 %v2107
    %v2187 = vpop.f32.mrf.mxu0
    %v2188 = vadd.f32 %v2071, %v2187
    %v2189 = vpop.f32.mrf.mxu0
    %2190 = vmatprep.mubr.f32.mxu0 0.0
    %2191 = vmatmul.mubr.f32.gmra.mxu0 %v2109
    %v2192 = vpop.f32.mrf.mxu0
    %v2193 = vadd.f32 %v2076, %v2192
    %v2194 = vpop.f32.mrf.mxu0
    %2195 = vdwg.mxu0
    %v2196 = vadd.f32 %v2178, %v1952
    %v2197 = vadd.f32 %v2183, %v1957
    %v2198 = vadd.f32 %v2188, %v1962
    %v2199 = vadd.f32 %v2193, %v1967
    %vm2200 = vcmp.ge.f32.partialorder %v2196, 0.0
    %vm2201 = vcmp.ge.f32.partialorder %v2197, 0.0
    %vm2202 = vcmp.ge.f32.partialorder %v2198, 0.0
    %vm2203 = vcmp.ge.f32.partialorder %v2199, 0.0
    %v2204 = vmul.f32 %v2196, 0.2
    %v2205 = vmul.f32 %v2197, 0.2
    %v2206 = vmul.f32 %v2198, 0.2
    %v2207 = vmul.f32 %v2199, 0.2
    %v2208 = vsel %vm2200, %v2196, %v2204
    %v2209 = vsel %vm2201, %v2197, %v2205
    %v2210 = vsel %vm2202, %v2198, %v2206
    %v2211 = vsel %vm2203, %v2199, %v2207
    %2212 = vst.msk [vmem:[#allocation2] sm:$0xff] %vm312, 0.0
    %2213 = vst.msk [vmem:[#allocation2 + $0x8] sm:$0xff] %vm312, 0.0
    %2214 = vst.msk [vmem:[#allocation2 + $0x10] sm:$0xff] %vm312, 0.0
    %2215 = vst.msk [vmem:[#allocation2 + $0x18] sm:$0xff] %vm312, 0.0
    %2220 = vrot.lane.b32.xlu0 %v2208, 3
    %v2221 = vpop.permute.xlu0 %2220
    %2222 = vrot.lane.b32.xlu0 %v2209, 3
    %v2223 = vpop.permute.xlu0 %2222
    %2224 = vrot.lane.b32.xlu0 %v2210, 3
    %v2225 = vpop.permute.xlu0 %2224
    %2226 = vrot.lane.b32.xlu0 %v2211, 3
    %v2227 = vpop.permute.xlu0 %2226
    %2232 = vst.msk [vmem:[#allocation2] sm:$0xff] %vm323, %v2221
    %2233 = vst.msk [vmem:[#allocation2 + $0x8] sm:$0xff] %vm323, %v2223
    %2234 = vst.msk [vmem:[#allocation2 + $0x10] sm:$0xff] %vm323, %v2225
    %2235 = vst.msk [vmem:[#allocation2 + $0x18] sm:$0xff] %vm323, %v2227
    %2236 = vst.msk [vmem:[#allocation2] sm:$0xff] %vm326, 0.0
    %2237 = vst.msk [vmem:[#allocation2 + $0x8] sm:$0xff] %vm326, 0.0
    %2238 = vst.msk [vmem:[#allocation2 + $0x10] sm:$0xff] %vm326, 0.0
    %2239 = vst.msk [vmem:[#allocation2 + $0x18] sm:$0xff] %vm326, 0.0
    %2240 = vst.msk [vmem:[#allocation2] sm:$0xff] %vm329, %v2221
    %2241 = vst.msk [vmem:[#allocation2 + $0x8] sm:$0xff] %vm329, %v2223
    %2242 = vst.msk [vmem:[#allocation2 + $0x10] sm:$0xff] %vm329, %v2225
    %2243 = vst.msk [vmem:[#allocation2 + $0x18] sm:$0xff] %vm329, %v2227
    %2244 = vst.msk [vmem:[#allocation2 + $0x20] sm:$0xff] %vm368, %v2208
    %2245 = vst.msk [vmem:[#allocation2 + $0x28] sm:$0xff] %vm368, %v2209
    %2246 = vst.msk [vmem:[#allocation2 + $0x30] sm:$0xff] %vm368, %v2210
    %2247 = vst.msk [vmem:[#allocation2 + $0x38] sm:$0xff] %vm368, %v2211
    %2248 = vst.msk [vmem:[#allocation2 + $0x20] sm:$0xff] %vm371, %v2208
    %2249 = vst.msk [vmem:[#allocation2 + $0x28] sm:$0xff] %vm371, %v2209
    %2250 = vst.msk [vmem:[#allocation2 + $0x30] sm:$0xff] %vm371, %v2210
    %2251 = vst.msk [vmem:[#allocation2 + $0x38] sm:$0xff] %vm371, %v2211
    %2252 = vst.msk [vmem:[#allocation2 + $0x40] sm:$0xff] %vm409, 0.0
    %2253 = vst.msk [vmem:[#allocation2 + $0x48] sm:$0xff] %vm409, 0.0
    %2254 = vst.msk [vmem:[#allocation2 + $0x50] sm:$0xff] %vm409, 0.0
    %2255 = vst.msk [vmem:[#allocation2 + $0x58] sm:$0xff] %vm409, 0.0
    %2256 = vrot.lane.b32.xlu0 %v2208, 125
    %v2257 = vpop.permute.xlu0 %2256
    %2258 = vrot.lane.b32.xlu0 %v2209, 125
    %v2259 = vpop.permute.xlu0 %2258
    %2260 = vrot.lane.b32.xlu0 %v2210, 125
    %v2261 = vpop.permute.xlu0 %2260
    %2262 = vrot.lane.b32.xlu0 %v2211, 125
    %v2263 = vpop.permute.xlu0 %2262
    %2268 = vst.msk [vmem:[#allocation2 + $0x40] sm:$0xff] %vm418, %v2257
    %2269 = vst.msk [vmem:[#allocation2 + $0x48] sm:$0xff] %vm418, %v2259
    %2270 = vst.msk [vmem:[#allocation2 + $0x50] sm:$0xff] %vm418, %v2261
    %2271 = vst.msk [vmem:[#allocation2 + $0x58] sm:$0xff] %vm418, %v2263
    %2272 = vst.msk [vmem:[#allocation2 + $0x40] sm:$0xff] %vm421, 0.0
    %2273 = vst.msk [vmem:[#allocation2 + $0x48] sm:$0xff] %vm421, 0.0
    %2274 = vst.msk [vmem:[#allocation2 + $0x50] sm:$0xff] %vm421, 0.0
    %2275 = vst.msk [vmem:[#allocation2 + $0x58] sm:$0xff] %vm421, 0.0
    %2276 = vst.msk [vmem:[#allocation2 + $0x40] sm:$0xff] %vm424, %v2257
    %2277 = vst.msk [vmem:[#allocation2 + $0x48] sm:$0xff] %vm424, %v2259
    %2278 = vst.msk [vmem:[#allocation2 + $0x50] sm:$0xff] %vm424, %v2261
    %2279 = vst.msk [vmem:[#allocation2 + $0x58] sm:$0xff] %vm424, %v2263
    %v2280 = vld [vmem:[#allocation3 + $0x28] sm:$0xff]
    %v2281 = vld [vmem:[#allocation3 + $0x30] sm:$0xff]
    %v2282 = vld [vmem:[#allocation3 + $0x80] sm:$0xff]
    %v2283 = vld [vmem:[#allocation3 + $0x88] sm:$0xff]
    %v2284 = vld [vmem:[#allocation3 + $0xd8] sm:$0xff]
    %v2285 = vld [vmem:[#allocation3 + $0xe0] sm:$0xff]
    %v2286 = vld [vmem:[#allocation3 + $0x130] sm:$0xff]
    %v2287 = vld [vmem:[#allocation3 + $0x138] sm:$0xff]
    %v2288 = vld [vmem:[#allocation2] sm:$0xff]
    %v2289 = vld [vmem:[#allocation2 + $0x8] sm:$0xff]
    %v2290 = vld [vmem:[#allocation2 + $0x10] sm:$0xff]
    %v2291 = vld [vmem:[#allocation2 + $0x18] sm:$0xff]
    %v2292 = vld [vmem:[#allocation2 + $0x20] sm:$0xff]
    %v2293 = vld [vmem:[#allocation2 + $0x28] sm:$0xff]
    %v2294 = vld [vmem:[#allocation2 + $0x30] sm:$0xff]
    %v2295 = vld [vmem:[#allocation2 + $0x38] sm:$0xff]
    %v2296 = vld [vmem:[#allocation2 + $0x40] sm:$0xff]
    %v2297 = vld [vmem:[#allocation2 + $0x48] sm:$0xff]
    %v2298 = vld [vmem:[#allocation2 + $0x50] sm:$0xff]
    %v2299 = vld [vmem:[#allocation2 + $0x58] sm:$0xff]
    %2301 = vset.pattern.permute.xlu0 16
    %2302 = vperm.xlu0 %2301, %v2281
    %v2303 = vpop.permute.xlu0 %2302
    %2306 = vset.pattern.permute.xlu0 16
    %2307 = vperm.xlu0 %2306, %v2283
    %v2308 = vpop.permute.xlu0 %2307
    %2311 = vset.pattern.permute.xlu0 16
    %2312 = vperm.xlu0 %2311, %v2285
    %v2313 = vpop.permute.xlu0 %2312
    %2316 = vset.pattern.permute.xlu0 16
    %2317 = vperm.xlu0 %2316, %v2287
    %v2318 = vpop.permute.xlu0 %2317
    %2324 = vrot.lane.b32.xlu0 %v2280, 80
    %v2325 = vpop.permute.xlu0 %2324
    %2326 = vrot.lane.b32.xlu0 %v2281, 80
    %v2327 = vpop.permute.xlu0 %2326
    %2328 = vrot.lane.b32.xlu0 %v2282, 80
    %v2329 = vpop.permute.xlu0 %2328
    %2330 = vrot.lane.b32.xlu0 %v2283, 80
    %v2331 = vpop.permute.xlu0 %2330
    %2332 = vrot.lane.b32.xlu0 %v2284, 80
    %v2333 = vpop.permute.xlu0 %2332
    %2334 = vrot.lane.b32.xlu0 %v2285, 80
    %v2335 = vpop.permute.xlu0 %2334
    %2336 = vrot.lane.b32.xlu0 %v2286, 80
    %v2337 = vpop.permute.xlu0 %2336
    %2338 = vrot.lane.b32.xlu0 %v2287, 80
    %v2339 = vpop.permute.xlu0 %2338
    %vm2340 = vcmask 654336
    %v2341 = vsel %vm2340, %v2325, %v2327
    %v2342 = vsel %vm2340, %v2329, %v2331
    %v2343 = vsel %vm2340, %v2333, %v2335
    %v2344 = vsel %vm2340, %v2337, %v2339
    %v2345 = vsel %vm828, %v2341, 0
    %v2347 = vsel %vm828, %v2342, 0
    %v2349 = vsel %vm828, %v2343, 0
    %v2351 = vsel %vm828, %v2344, 0
    %2353 = vmatprep.subr.mxu0 0.0
    %2354 = vmatpush1.msra.mxu0 0.0
    %2355 = vmatprep.subr.mxu0 0.0
    %2356 = vmatpush1.msra.mxu0 0.0
    %2357 = vmatprep.subr.mxu0 0.0
    %2358 = vmatpush1.msra.mxu0 0.0
    %2359 = vmatprep.subr.mxu0 0.0
    %2360 = vmatpush1.msra.mxu0 0.0
    %2361 = vmatprep.subr.mxu0 0.0
    %2362 = vmatpush1.msra.mxu0 %v2299
    %2363 = vmatprep.subr.mxu0 0.0
    %2364 = vmatpush1.msra.mxu0 %v2298
    %2365 = vmatprep.subr.mxu0 0.0
    %2366 = vmatpush1.msra.mxu0 %v2297
    %2367 = vmatprep.subr.mxu0 0.0
    %2368 = vmatpush1.msra.mxu0 %v2296
    %2369 = vmatprep.subr.mxu0 0.0
    %2370 = vmatpush1.msra.mxu0 %v2295
    %2371 = vmatprep.subr.mxu0 0.0
    %2372 = vmatpush1.msra.mxu0 %v2294
    %2373 = vmatprep.subr.mxu0 0.0
    %2374 = vmatpush1.msra.mxu0 %v2293
    %2375 = vmatprep.subr.mxu0 0.0
    %2376 = vmatpush1.msra.mxu0 %v2292
    %2377 = vmatprep.subr.mxu0 0.0
    %2378 = vmatpush1.msra.mxu0 %v2291
    %2379 = vmatprep.subr.mxu0 0.0
    %2380 = vmatpush1.msra.mxu0 %v2290
    %2381 = vmatprep.subr.mxu0 0.0
    %2382 = vmatpush1.msra.mxu0 %v2289
    %2383 = vmatprep.subr.mxu0 0.0
    %2384 = vmatpush1.msra.mxu0 %v2288
    %2385 = vmatprep.subr.mxu0 0.0
    %2386 = vmatpush2.msra.mxu0 0.0
    %2387 = vmatprep.subr.mxu0 0.0
    %2388 = vmatpush2.msra.mxu0 0.0
    %2389 = vmatprep.subr.mxu0 0.0
    %2390 = vmatpush2.msra.mxu0 0.0
    %2391 = vmatprep.subr.mxu0 0.0
    %2392 = vmatpush2.msra.mxu0 0.0
    %2393 = vmatprep.subr.mxu0 0.0
    %2394 = vmatpush2.msra.mxu0 0.0
    %2395 = vmatprep.subr.mxu0 0.0
    %2396 = vmatpush2.msra.mxu0 0.0
    %2397 = vmatprep.subr.mxu0 0.0
    %2398 = vmatpush2.msra.mxu0 0.0
    %2399 = vmatprep.subr.mxu0 0.0
    %2400 = vmatpush2.msra.mxu0 0.0
    %2401 = vmatprep.subr.mxu0 0.0
    %2402 = vmatpush2.msra.mxu0 0.0
    %2403 = vmatprep.subr.mxu0 0.0
    %2404 = vmatpush2.msra.mxu0 0.0
    %2405 = vmatprep.subr.mxu0 0.0
    %2406 = vmatpush2.msra.mxu0 0.0
    %2407 = vmatprep.subr.mxu0 0.0
    %2408 = vmatpush2.msra.mxu0 0.0
    %2409 = vmatprep.subr.mxu0 0.0
    %2410 = vmatpush2.msra.mxu0 0.0
    %2411 = vmatprep.subr.mxu0 0.0
    %2412 = vmatpush2.msra.mxu0 0.0
    %2413 = vmatprep.subr.mxu0 0.0
    %2414 = vmatpush2.msra.mxu0 0.0
    %2415 = vmatprep.subr.mxu0 0.0
    %2416 = vmatpush2.msra.mxu0 0.0
    %2417 = vmatprep.mubr.f32.mxu0 0.0
    %2418 = vmatmul.mubr.f32.gmra.mxu0 %v2345
    %v2419 = vpop.f32.mrf.mxu0
    %v2420 = vadd.f32 %v2303, %v2419
    %v2421 = vpop.f32.mrf.mxu0
    %2422 = vmatprep.mubr.f32.mxu0 0.0
    %2423 = vmatmul.mubr.f32.gmra.mxu0 %v2347
    %v2424 = vpop.f32.mrf.mxu0
    %v2425 = vadd.f32 %v2308, %v2424
    %v2426 = vpop.f32.mrf.mxu0
    %2427 = vmatprep.mubr.f32.mxu0 0.0
    %2428 = vmatmul.mubr.f32.gmra.mxu0 %v2349
    %v2429 = vpop.f32.mrf.mxu0
    %v2430 = vadd.f32 %v2313, %v2429
    %v2431 = vpop.f32.mrf.mxu0
    %2432 = vmatprep.mubr.f32.mxu0 0.0
    %2433 = vmatmul.mubr.f32.gmra.mxu0 %v2351
    %v2434 = vpop.f32.mrf.mxu0
    %v2435 = vadd.f32 %v2318, %v2434
    %v2436 = vpop.f32.mrf.mxu0
    %2437 = vdwg.mxu0
    %v2438 = vadd.f32 %v2420, %v2208
    %v2439 = vadd.f32 %v2425, %v2209
    %v2440 = vadd.f32 %v2430, %v2210
    %v2441 = vadd.f32 %v2435, %v2211
    %vm2442 = vcmp.ge.f32.partialorder %v2438, 0.0
    %vm2443 = vcmp.ge.f32.partialorder %v2439, 0.0
    %vm2444 = vcmp.ge.f32.partialorder %v2440, 0.0
    %vm2445 = vcmp.ge.f32.partialorder %v2441, 0.0
    %v2446 = vmul.f32 %v2438, 0.2
    %v2447 = vmul.f32 %v2439, 0.2
    %v2448 = vmul.f32 %v2440, 0.2
    %v2449 = vmul.f32 %v2441, 0.2
    %v2450 = vsel %vm2442, %v2438, %v2446
    %v2451 = vsel %vm2443, %v2439, %v2447
    %v2452 = vsel %vm2444, %v2440, %v2448
    %v2453 = vsel %vm2445, %v2441, %v2449
    %2454 = vst.msk [vmem:[#allocation2] sm:$0xff] %vm368, 0.0
    %2455 = vst.msk [vmem:[#allocation2 + $0x8] sm:$0xff] %vm368, 0.0
    %2456 = vst.msk [vmem:[#allocation2 + $0x10] sm:$0xff] %vm368, 0.0
    %2457 = vst.msk [vmem:[#allocation2 + $0x18] sm:$0xff] %vm368, 0.0
    %2458 = vst.msk [vmem:[#allocation2] sm:$0xff] %vm371, 0.0
    %2459 = vst.msk [vmem:[#allocation2 + $0x8] sm:$0xff] %vm371, 0.0
    %2460 = vst.msk [vmem:[#allocation2 + $0x10] sm:$0xff] %vm371, 0.0
    %2461 = vst.msk [vmem:[#allocation2 + $0x18] sm:$0xff] %vm371, 0.0
    %2462 = vst.msk [vmem:[#allocation2 + $0x20] sm:$0xff] %vm368, %v2450
    %2463 = vst.msk [vmem:[#allocation2 + $0x28] sm:$0xff] %vm368, %v2451
    %2464 = vst.msk [vmem:[#allocation2 + $0x30] sm:$0xff] %vm368, %v2452
    %2465 = vst.msk [vmem:[#allocation2 + $0x38] sm:$0xff] %vm368, %v2453
    %2466 = vst.msk [vmem:[#allocation2 + $0x20] sm:$0xff] %vm371, %v2450
    %2467 = vst.msk [vmem:[#allocation2 + $0x28] sm:$0xff] %vm371, %v2451
    %2468 = vst.msk [vmem:[#allocation2 + $0x30] sm:$0xff] %vm371, %v2452
    %2469 = vst.msk [vmem:[#allocation2 + $0x38] sm:$0xff] %vm371, %v2453
    %2470 = vst.msk [vmem:[#allocation2 + $0x40] sm:$0xff] %vm368, 0.0
    %2471 = vst.msk [vmem:[#allocation2 + $0x48] sm:$0xff] %vm368, 0.0
    %2472 = vst.msk [vmem:[#allocation2 + $0x50] sm:$0xff] %vm368, 0.0
    %2473 = vst.msk [vmem:[#allocation2 + $0x58] sm:$0xff] %vm368, 0.0
    %2474 = vst.msk [vmem:[#allocation2 + $0x40] sm:$0xff] %vm371, 0.0
    %2475 = vst.msk [vmem:[#allocation2 + $0x48] sm:$0xff] %vm371, 0.0
    %2476 = vst.msk [vmem:[#allocation2 + $0x50] sm:$0xff] %vm371, 0.0
    %2477 = vst.msk [vmem:[#allocation2 + $0x58] sm:$0xff] %vm371, 0.0
    %v2478 = vld [vmem:[#allocation3 + $0x30] sm:$0xff]
    %v2479 = vld [vmem:[#allocation3 + $0x88] sm:$0xff]
    %v2480 = vld [vmem:[#allocation3 + $0xe0] sm:$0xff]
    %v2481 = vld [vmem:[#allocation3 + $0x138] sm:$0xff]
    %v2482 = vld [vmem:[#allocation2] sm:$0xff]
    %v2483 = vld [vmem:[#allocation2 + $0x8] sm:$0xff]
    %v2484 = vld [vmem:[#allocation2 + $0x10] sm:$0xff]
    %v2485 = vld [vmem:[#allocation2 + $0x18] sm:$0xff]
    %v2486 = vld [vmem:[#allocation2 + $0x20] sm:$0xff]
    %v2487 = vld [vmem:[#allocation2 + $0x28] sm:$0xff]
    %v2488 = vld [vmem:[#allocation2 + $0x30] sm:$0xff]
    %v2489 = vld [vmem:[#allocation2 + $0x38] sm:$0xff]
    %v2490 = vld [vmem:[#allocation2 + $0x40] sm:$0xff]
    %v2491 = vld [vmem:[#allocation2 + $0x48] sm:$0xff]
    %v2492 = vld [vmem:[#allocation2 + $0x50] sm:$0xff]
    %v2493 = vld [vmem:[#allocation2 + $0x58] sm:$0xff]
    %2495 = vset.pattern.permute.xlu0 113
    %2496 = vperm.xlu0 %2495, %v2478
    %v2497 = vpop.permute.xlu0 %2496
    %2500 = vset.pattern.permute.xlu0 113
    %2501 = vperm.xlu0 %2500, %v2479
    %v2502 = vpop.permute.xlu0 %2501
    %2505 = vset.pattern.permute.xlu0 113
    %2506 = vperm.xlu0 %2505, %v2480
    %v2507 = vpop.permute.xlu0 %2506
    %2510 = vset.pattern.permute.xlu0 113
    %2511 = vperm.xlu0 %2510, %v2481
    %v2512 = vpop.permute.xlu0 %2511
    %2514 = vrot.lane.b32.xlu0 %v2478, 111
    %v2515 = vpop.permute.xlu0 %2514
    %2516 = vrot.lane.b32.xlu0 %v2479, 111
    %v2517 = vpop.permute.xlu0 %2516
    %2518 = vrot.lane.b32.xlu0 %v2480, 111
    %v2519 = vpop.permute.xlu0 %2518
    %2520 = vrot.lane.b32.xlu0 %v2481, 111
    %v2521 = vpop.permute.xlu0 %2520
    %v2522 = vsel %vm828, %v2515, 0
    %v2524 = vsel %vm828, %v2517, 0
    %v2526 = vsel %vm828, %v2519, 0
    %v2528 = vsel %vm828, %v2521, 0
    %2530 = vmatprep.subr.mxu0 0.0
    %2531 = vmatpush1.msra.mxu0 0.0
    %2532 = vmatprep.subr.mxu0 0.0
    %2533 = vmatpush1.msra.mxu0 0.0
    %2534 = vmatprep.subr.mxu0 0.0
    %2535 = vmatpush1.msra.mxu0 0.0
    %2536 = vmatprep.subr.mxu0 0.0
    %2537 = vmatpush1.msra.mxu0 0.0
    %2538 = vmatprep.subr.mxu0 0.0
    %2539 = vmatpush1.msra.mxu0 %v2493
    %2540 = vmatprep.subr.mxu0 0.0
    %2541 = vmatpush1.msra.mxu0 %v2492
    %2542 = vmatprep.subr.mxu0 0.0
    %2543 = vmatpush1.msra.mxu0 %v2491
    %2544 = vmatprep.subr.mxu0 0.0
    %2545 = vmatpush1.msra.mxu0 %v2490
    %2546 = vmatprep.subr.mxu0 0.0
    %2547 = vmatpush1.msra.mxu0 %v2489
    %2548 = vmatprep.subr.mxu0 0.0
    %2549 = vmatpush1.msra.mxu0 %v2488
    %2550 = vmatprep.subr.mxu0 0.0
    %2551 = vmatpush1.msra.mxu0 %v2487
    %2552 = vmatprep.subr.mxu0 0.0
    %2553 = vmatpush1.msra.mxu0 %v2486
    %2554 = vmatprep.subr.mxu0 0.0
    %2555 = vmatpush1.msra.mxu0 %v2485
    %2556 = vmatprep.subr.mxu0 0.0
    %2557 = vmatpush1.msra.mxu0 %v2484
    %2558 = vmatprep.subr.mxu0 0.0
    %2559 = vmatpush1.msra.mxu0 %v2483
    %2560 = vmatprep.subr.mxu0 0.0
    %2561 = vmatpush1.msra.mxu0 %v2482
    %2562 = vmatprep.subr.mxu0 0.0
    %2563 = vmatpush2.msra.mxu0 0.0
    %2564 = vmatprep.subr.mxu0 0.0
    %2565 = vmatpush2.msra.mxu0 0.0
    %2566 = vmatprep.subr.mxu0 0.0
    %2567 = vmatpush2.msra.mxu0 0.0
    %2568 = vmatprep.subr.mxu0 0.0
    %2569 = vmatpush2.msra.mxu0 0.0
    %2570 = vmatprep.subr.mxu0 0.0
    %2571 = vmatpush2.msra.mxu0 0.0
    %2572 = vmatprep.subr.mxu0 0.0
    %2573 = vmatpush2.msra.mxu0 0.0
    %2574 = vmatprep.subr.mxu0 0.0
    %2575 = vmatpush2.msra.mxu0 0.0
    %2576 = vmatprep.subr.mxu0 0.0
    %2577 = vmatpush2.msra.mxu0 0.0
    %2578 = vmatprep.subr.mxu0 0.0
    %2579 = vmatpush2.msra.mxu0 0.0
    %2580 = vmatprep.subr.mxu0 0.0
    %2581 = vmatpush2.msra.mxu0 0.0
    %2582 = vmatprep.subr.mxu0 0.0
    %2583 = vmatpush2.msra.mxu0 0.0
    %2584 = vmatprep.subr.mxu0 0.0
    %2585 = vmatpush2.msra.mxu0 0.0
    %2586 = vmatprep.subr.mxu0 0.0
    %2587 = vmatpush2.msra.mxu0 0.0
    %2588 = vmatprep.subr.mxu0 0.0
    %2589 = vmatpush2.msra.mxu0 0.0
    %2590 = vmatprep.subr.mxu0 0.0
    %2591 = vmatpush2.msra.mxu0 0.0
    %2592 = vmatprep.subr.mxu0 0.0
    %2593 = vmatpush2.msra.mxu0 0.0
    %2594 = vmatprep.mubr.f32.mxu0 0.0
    %2595 = vmatmul.mubr.f32.gmra.mxu0 %v2522
    %v2596 = vpop.f32.mrf.mxu0
    %v2597 = vadd.f32 %v2497, %v2596
    %v2598 = vpop.f32.mrf.mxu0
    %2599 = vmatprep.mubr.f32.mxu0 0.0
    %2600 = vmatmul.mubr.f32.gmra.mxu0 %v2524
    %v2601 = vpop.f32.mrf.mxu0
    %v2602 = vadd.f32 %v2502, %v2601
    %v2603 = vpop.f32.mrf.mxu0
    %2604 = vmatprep.mubr.f32.mxu0 0.0
    %2605 = vmatmul.mubr.f32.gmra.mxu0 %v2526
    %v2606 = vpop.f32.mrf.mxu0
    %v2607 = vadd.f32 %v2507, %v2606
    %v2608 = vpop.f32.mrf.mxu0
    %2609 = vmatprep.mubr.f32.mxu0 0.0
    %2610 = vmatmul.mubr.f32.gmra.mxu0 %v2528
    %v2611 = vpop.f32.mrf.mxu0
    %v2612 = vadd.f32 %v2512, %v2611
    %v2613 = vpop.f32.mrf.mxu0
    %2614 = vdwg.mxu0
    %v2615 = vadd.f32 %v2597, %v2450
    %v2616 = vadd.f32 %v2602, %v2451
    %v2617 = vadd.f32 %v2607, %v2452
    %v2618 = vadd.f32 %v2612, %v2453
    %vm2619 = vcmp.ge.f32.partialorder %v2615, 0.0
    %vm2620 = vcmp.ge.f32.partialorder %v2616, 0.0
    %vm2621 = vcmp.ge.f32.partialorder %v2617, 0.0
    %vm2622 = vcmp.ge.f32.partialorder %v2618, 0.0
    %v2623 = vmul.f32 %v2615, 0.2
    %v2624 = vmul.f32 %v2616, 0.2
    %v2625 = vmul.f32 %v2617, 0.2
    %v2626 = vmul.f32 %v2618, 0.2
    %v2627 = vsel %vm2619, %v2615, %v2623
    %v2628 = vsel %vm2620, %v2616, %v2624
    %v2629 = vsel %vm2621, %v2617, %v2625
    %v2630 = vsel %vm2622, %v2618, %v2626
    %v2631 = vld [vmem:[#allocation3 + $0x30] sm:$0xff]
    %v2632 = vld [vmem:[#allocation3 + $0x38] sm:$0xff]
    %v2633 = vld [vmem:[#allocation3 + $0x88] sm:$0xff]
    %v2634 = vld [vmem:[#allocation3 + $0x90] sm:$0xff]
    %2639 = vrot.lane.b32.xlu0 %v2631, 14
    %v2640 = vpop.permute.xlu0 %2639
    %2641 = vrot.lane.b32.xlu0 %v2632, 14
    %v2642 = vpop.permute.xlu0 %2641
    %2643 = vrot.lane.b32.xlu0 %v2633, 14
    %v2644 = vpop.permute.xlu0 %2643
    %2645 = vrot.lane.b32.xlu0 %v2634, 14
    %v2646 = vpop.permute.xlu0 %2645
    %vm2647 = vcmask 113664
    %v2648 = vsel %vm2647, %v2640, %v2642
    %v2649 = vsel %vm2647, %v2644, %v2646
    %v2653 = vsel %vm53, %v2627, 0
    %v2656 = vsel %vm53, %v2628, 0
    %v2659 = vsel %vm53, %v2629, 0
    %v2662 = vsel %vm53, %v2630, 0
    %2664 = vmatprep.subr.mxu0 0.0
    %2665 = vmatpush1.msra.mxu0 0.0
    %2666 = vmatprep.subr.mxu0 0.0
    %2667 = vmatpush1.msra.mxu0 0.0
    %2668 = vmatprep.subr.mxu0 0.0
    %2669 = vmatpush1.msra.mxu0 0.0
    %2670 = vmatprep.subr.mxu0 0.0
    %2671 = vmatpush1.msra.mxu0 0.0
    %2672 = vmatprep.subr.mxu0 0.0
    %2673 = vmatpush1.msra.mxu0 0.0
    %2674 = vmatprep.subr.mxu0 0.0
    %2675 = vmatpush1.msra.mxu0 0.0
    %2676 = vmatprep.subr.mxu0 0.0
    %2677 = vmatpush1.msra.mxu0 0.0
    %2678 = vmatprep.subr.mxu0 0.0
    %2679 = vmatpush1.msra.mxu0 0.0
    %2680 = vmatprep.subr.mxu0 0.0
    %2681 = vmatpush1.msra.mxu0 0.0
    %2682 = vmatprep.subr.mxu0 0.0
    %2683 = vmatpush1.msra.mxu0 0.0
    %2684 = vmatprep.subr.mxu0 0.0
    %2685 = vmatpush1.msra.mxu0 0.0
    %2686 = vmatprep.subr.mxu0 0.0
    %2687 = vmatpush1.msra.mxu0 0.0
    %2688 = vmatprep.subr.mxu0 0.0
    %2689 = vmatpush1.msra.mxu0 0.0
    %2690 = vmatprep.subr.mxu0 0.0
    %2691 = vmatpush1.msra.mxu0 0.0
    %2692 = vmatprep.subr.mxu0 0.0
    %2693 = vmatpush1.msra.mxu0 %v2649
    %2694 = vmatprep.subr.mxu0 0.0
    %2695 = vmatpush1.msra.mxu0 %v2648
    %2696 = vmatprep.subr.mxu0 0.0
    %2697 = vmatpush2.msra.mxu0 0.0
    %2698 = vmatprep.subr.mxu0 0.0
    %2699 = vmatpush2.msra.mxu0 0.0
    %2700 = vmatprep.subr.mxu0 0.0
    %2701 = vmatpush2.msra.mxu0 0.0
    %2702 = vmatprep.subr.mxu0 0.0
    %2703 = vmatpush2.msra.mxu0 0.0
    %2704 = vmatprep.subr.mxu0 0.0
    %2705 = vmatpush2.msra.mxu0 0.0
    %2706 = vmatprep.subr.mxu0 0.0
    %2707 = vmatpush2.msra.mxu0 0.0
    %2708 = vmatprep.subr.mxu0 0.0
    %2709 = vmatpush2.msra.mxu0 0.0
    %2710 = vmatprep.subr.mxu0 0.0
    %2711 = vmatpush2.msra.mxu0 0.0
    %2712 = vmatprep.subr.mxu0 0.0
    %2713 = vmatpush2.msra.mxu0 0.0
    %2714 = vmatprep.subr.mxu0 0.0
    %2715 = vmatpush2.msra.mxu0 0.0
    %2716 = vmatprep.subr.mxu0 0.0
    %2717 = vmatpush2.msra.mxu0 0.0
    %2718 = vmatprep.subr.mxu0 0.0
    %2719 = vmatpush2.msra.mxu0 0.0
    %2720 = vmatprep.subr.mxu0 0.0
    %2721 = vmatpush2.msra.mxu0 0.0
    %2722 = vmatprep.subr.mxu0 0.0
    %2723 = vmatpush2.msra.mxu0 0.0
    %2724 = vmatprep.subr.mxu0 0.0
    %2725 = vmatpush2.msra.mxu0 0.0
    %2726 = vmatprep.subr.mxu0 0.0
    %2727 = vmatpush2.msra.mxu0 0.0
    %2728 = vmatprep.mubr.f32.mxu0 0.0
    %2729 = vmatmul.mubr.f32.gmra.mxu0 %v2653
    %v2730 = vpop.f32.mrf.mxu0
    %v2731 = vadd.f32 0.0, %v2730
    %v2732 = vpop.f32.mrf.mxu0
    %2733 = vmatprep.mubr.f32.mxu0 0.0
    %2734 = vmatmul.mubr.f32.gmra.mxu0 %v2656
    %v2735 = vpop.f32.mrf.mxu0
    %v2736 = vadd.f32 0.0, %v2735
    %v2737 = vpop.f32.mrf.mxu0
    %2738 = vmatprep.mubr.f32.mxu0 0.0
    %2739 = vmatmul.mubr.f32.gmra.mxu0 %v2659
    %v2740 = vpop.f32.mrf.mxu0
    %v2741 = vadd.f32 0.0, %v2740
    %v2742 = vpop.f32.mrf.mxu0
    %2743 = vmatprep.mubr.f32.mxu0 0.0
    %2744 = vmatmul.mubr.f32.gmra.mxu0 %v2662
    %v2745 = vpop.f32.mrf.mxu0
    %v2746 = vadd.f32 0.0, %v2745
    %v2747 = vpop.f32.mrf.mxu0
    %2748 = vdwg.mxu0
    %v2749 = vld [vmem:[%s4] sm:$0x1]
    %2750 = vst [vmem:[#allocation2] sm:$0xff] 0.0
    %2751 = vst [vmem:[#allocation2 + $0x8] sm:$0xff] 0.0
    %2752 = vst [vmem:[#allocation2 + $0x10] sm:$0xff] 0.0
    %2753 = vst [vmem:[#allocation2 + $0x18] sm:$0x1] 0.0
    %v2755 = vlaneseq
    %v2756 = vshrl.u32 %v2755, 7
    %v2757 = vsub.s32 0, %v2756
    %v2758 = vrot.slane %v2749, %v2757
    %2759 = vrot.lane.b32.xlu0 %v2758, 12
    %v2760 = vpop.permute.xlu0 %2759
    %vm2762 = vcmask 516192
    %2763 = vst.msk [vmem:[#allocation2] sm:$0x1] %vm2762, %v2760
    %vm2764 = vcmask 1040992
    %2765 = vst.msk [vmem:[#allocation2] sm:$0x1] %vm2764, %v2760
    %2766 = vrot.lane.b32.xlu0 %v2758, 11
    %v2767 = vpop.permute.xlu0 %2766
    %vm2769 = vcmask 516184
    %2770 = vst.msk [vmem:[#allocation2 + $0x1] sm:$0x1] %vm2769, %v2767
    %vm2771 = vcmask 1040984
    %2772 = vst.msk [vmem:[#allocation2 + $0x1] sm:$0x1] %vm2771, %v2767
    %2773 = vrot.lane.b32.xlu0 %v2758, 10
    %v2774 = vpop.permute.xlu0 %2773
    %vm2776 = vcmask 516176
    %2777 = vst.msk [vmem:[#allocation2 + $0x2] sm:$0x1] %vm2776, %v2774
    %vm2778 = vcmask 1040976
    %2779 = vst.msk [vmem:[#allocation2 + $0x2] sm:$0x1] %vm2778, %v2774
    %2780 = vrot.lane.b32.xlu0 %v2758, 9
    %v2781 = vpop.permute.xlu0 %2780
    %vm2783 = vcmask 516168
    %2784 = vst.msk [vmem:[#allocation2 + $0x3] sm:$0x1] %vm2783, %v2781
    %vm2785 = vcmask 1040968
    %2786 = vst.msk [vmem:[#allocation2 + $0x3] sm:$0x1] %vm2785, %v2781
    %2787 = vrot.lane.b32.xlu0 %v2758, 8
    %v2788 = vpop.permute.xlu0 %2787
    %vm2790 = vcmask 516160
    %2791 = vst.msk [vmem:[#allocation2 + $0x4] sm:$0x1] %vm2790, %v2788
    %vm2792 = vcmask 1040960
    %2793 = vst.msk [vmem:[#allocation2 + $0x4] sm:$0x1] %vm2792, %v2788
    %2794 = vrot.lane.b32.xlu0 %v2758, 7
    %v2795 = vpop.permute.xlu0 %2794
    %vm2797 = vcmask 516152
    %2798 = vst.msk [vmem:[#allocation2 + $0x5] sm:$0x1] %vm2797, %v2795
    %vm2799 = vcmask 1040952
    %2800 = vst.msk [vmem:[#allocation2 + $0x5] sm:$0x1] %vm2799, %v2795
    %2801 = vrot.lane.b32.xlu0 %v2758, 6
    %v2802 = vpop.permute.xlu0 %2801
    %vm2804 = vcmask 516144
    %2805 = vst.msk [vmem:[#allocation2 + $0x6] sm:$0x1] %vm2804, %v2802
    %vm2806 = vcmask 1040944
    %2807 = vst.msk [vmem:[#allocation2 + $0x6] sm:$0x1] %vm2806, %v2802
    %2808 = vrot.lane.b32.xlu0 %v2758, 5
    %v2809 = vpop.permute.xlu0 %2808
    %vm2811 = vcmask 516136
    %2812 = vst.msk [vmem:[#allocation2 + $0x7] sm:$0x1] %vm2811, %v2809
    %vm2813 = vcmask 1040936
    %2814 = vst.msk [vmem:[#allocation2 + $0x7] sm:$0x1] %vm2813, %v2809
    %2815 = vrot.lane.b32.xlu0 %v2758, 4
    %v2816 = vpop.permute.xlu0 %2815
    %vm2818 = vcmask 516128
    %2819 = vst.msk [vmem:[#allocation2 + $0x8] sm:$0x1] %vm2818, %v2816
    %vm2820 = vcmask 1040928
    %2821 = vst.msk [vmem:[#allocation2 + $0x8] sm:$0x1] %vm2820, %v2816
    %2822 = vrot.lane.b32.xlu0 %v2758, 3
    %v2823 = vpop.permute.xlu0 %2822
    %vm2825 = vcmask 516120
    %2826 = vst.msk [vmem:[#allocation2 + $0x9] sm:$0x1] %vm2825, %v2823
    %vm2827 = vcmask 1040920
    %2828 = vst.msk [vmem:[#allocation2 + $0x9] sm:$0x1] %vm2827, %v2823
    %2829 = vrot.lane.b32.xlu0 %v2758, 2
    %v2830 = vpop.permute.xlu0 %2829
    %vm2832 = vcmask 516112
    %2833 = vst.msk [vmem:[#allocation2 + $0xa] sm:$0x1] %vm2832, %v2830
    %vm2834 = vcmask 1040912
    %2835 = vst.msk [vmem:[#allocation2 + $0xa] sm:$0x1] %vm2834, %v2830
    %2836 = vrot.lane.b32.xlu0 %v2758, 1
    %v2837 = vpop.permute.xlu0 %2836
    %vm2839 = vcmask 516104
    %2840 = vst.msk [vmem:[#allocation2 + $0xb] sm:$0x1] %vm2839, %v2837
    %vm2841 = vcmask 1040904
    %2842 = vst.msk [vmem:[#allocation2 + $0xb] sm:$0x1] %vm2841, %v2837
    %vm2843 = vcmask 516096
    %2844 = vst.msk [vmem:[#allocation2 + $0xc] sm:$0x1] %vm2843, %v2749
    %vm2845 = vcmask 1040896
    %2846 = vst.msk [vmem:[#allocation2 + $0xc] sm:$0x1] %vm2845, %v2749
    %2847 = vrot.lane.b32.xlu0 %v2758, 127
    %v2848 = vpop.permute.xlu0 %2847
    %vm2850 = vcmask 507904
    %2851 = vst.msk [vmem:[#allocation2 + $0xd] sm:$0x1] %vm2850, %v2848
    %vm2852 = vcmask 1032704
    %2853 = vst.msk [vmem:[#allocation2 + $0xd] sm:$0x1] %vm2852, %v2848
    %2854 = vrot.lane.b32.xlu0 %v2758, 126
    %v2855 = vpop.permute.xlu0 %2854
    %vm2857 = vcmask 499712
    %2858 = vst.msk [vmem:[#allocation2 + $0xe] sm:$0x1] %vm2857, %v2855
    %vm2859 = vcmask 1024512
    %2860 = vst.msk [vmem:[#allocation2 + $0xe] sm:$0x1] %vm2859, %v2855
    %2861 = vrot.lane.b32.xlu0 %v2758, 125
    %v2862 = vpop.permute.xlu0 %2861
    %vm2864 = vcmask 491520
    %2865 = vst.msk [vmem:[#allocation2 + $0xf] sm:$0x1] %vm2864, %v2862
    %vm2866 = vcmask 1016320
    %2867 = vst.msk [vmem:[#allocation2 + $0xf] sm:$0x1] %vm2866, %v2862
    %2868 = vrot.lane.b32.xlu0 %v2758, 124
    %v2869 = vpop.permute.xlu0 %2868
    %vm2871 = vcmask 483328
    %2872 = vst.msk [vmem:[#allocation2 + $0x10] sm:$0x1] %vm2871, %v2869
    %vm2873 = vcmask 1008128
    %2874 = vst.msk [vmem:[#allocation2 + $0x10] sm:$0x1] %vm2873, %v2869
    %2875 = vrot.lane.b32.xlu0 %v2758, 123
    %v2876 = vpop.permute.xlu0 %2875
    %vm2878 = vcmask 475136
    %2879 = vst.msk [vmem:[#allocation2 + $0x11] sm:$0x1] %vm2878, %v2876
    %vm2880 = vcmask 999936
    %2881 = vst.msk [vmem:[#allocation2 + $0x11] sm:$0x1] %vm2880, %v2876
    %2882 = vrot.lane.b32.xlu0 %v2758, 122
    %v2883 = vpop.permute.xlu0 %2882
    %vm2885 = vcmask 466944
    %2886 = vst.msk [vmem:[#allocation2 + $0x12] sm:$0x1] %vm2885, %v2883
    %vm2887 = vcmask 991744
    %2888 = vst.msk [vmem:[#allocation2 + $0x12] sm:$0x1] %vm2887, %v2883
    %2889 = vrot.lane.b32.xlu0 %v2758, 121
    %v2890 = vpop.permute.xlu0 %2889
    %vm2892 = vcmask 458752
    %2893 = vst.msk [vmem:[#allocation2 + $0x13] sm:$0x1] %vm2892, %v2890
    %vm2894 = vcmask 983552
    %2895 = vst.msk [vmem:[#allocation2 + $0x13] sm:$0x1] %vm2894, %v2890
    %2896 = vrot.lane.b32.xlu0 %v2758, 120
    %v2897 = vpop.permute.xlu0 %2896
    %vm2899 = vcmask 450560
    %2900 = vst.msk [vmem:[#allocation2 + $0x14] sm:$0x1] %vm2899, %v2897
    %vm2901 = vcmask 975360
    %2902 = vst.msk [vmem:[#allocation2 + $0x14] sm:$0x1] %vm2901, %v2897
    %2903 = vrot.lane.b32.xlu0 %v2758, 119
    %v2904 = vpop.permute.xlu0 %2903
    %vm2906 = vcmask 442368
    %2907 = vst.msk [vmem:[#allocation2 + $0x15] sm:$0x1] %vm2906, %v2904
    %vm2908 = vcmask 967168
    %2909 = vst.msk [vmem:[#allocation2 + $0x15] sm:$0x1] %vm2908, %v2904
    %2910 = vrot.lane.b32.xlu0 %v2758, 118
    %v2911 = vpop.permute.xlu0 %2910
    %vm2913 = vcmask 434176
    %2914 = vst.msk [vmem:[#allocation2 + $0x16] sm:$0x1] %vm2913, %v2911
    %vm2915 = vcmask 958976
    %2916 = vst.msk [vmem:[#allocation2 + $0x16] sm:$0x1] %vm2915, %v2911
    %2917 = vrot.lane.b32.xlu0 %v2758, 117
    %v2918 = vpop.permute.xlu0 %2917
    %vm2920 = vcmask 425984
    %2921 = vst.msk [vmem:[#allocation2 + $0x17] sm:$0x1] %vm2920, %v2918
    %vm2922 = vcmask 950784
    %2923 = vst.msk [vmem:[#allocation2 + $0x17] sm:$0x1] %vm2922, %v2918
    %2924 = vrot.lane.b32.xlu0 %v2758, 116
    %v2925 = vpop.permute.xlu0 %2924
    %vm2927 = vcmask 417792
    %2928 = vst.msk [vmem:[#allocation2 + $0x18] sm:$0x1] %vm2927, %v2925
    %vm2929 = vcmask 942592
    %2930 = vst.msk [vmem:[#allocation2 + $0x18] sm:$0x1] %vm2929, %v2925
    %v2931 = vld [vmem:[#allocation3 + $0x38] sm:$0xff]
    %v2932 = vld [vmem:[#allocation3 + $0x40] sm:$0xff]
    %v2933 = vld [vmem:[#allocation3 + $0x90] sm:$0xff]
    %v2934 = vld [vmem:[#allocation3 + $0x98] sm:$0xff]
    %v2935 = vld [vmem:[#allocation3 + $0xe8] sm:$0xff]
    %v2936 = vld [vmem:[#allocation3 + $0xf0] sm:$0xff]
    %v2937 = vld [vmem:[#allocation3 + $0x140] sm:$0xff]
    %v2938 = vld [vmem:[#allocation3 + $0x148] sm:$0xff]
    %v2939 = vld [vmem:[#allocation2] sm:$0xff]
    %v2940 = vld [vmem:[#allocation2 + $0x8] sm:$0xff]
    %v2941 = vld [vmem:[#allocation2 + $0x10] sm:$0xff]
    %v2942 = vld [vmem:[#allocation2 + $0x18] sm:$0x1]
    %2944 = vset.pattern.permute.xlu0 11
    %2945 = vperm.xlu0 %2944, %v2932
    %v2946 = vpop.permute.xlu0 %2945
    %2949 = vset.pattern.permute.xlu0 11
    %2950 = vperm.xlu0 %2949, %v2934
    %v2951 = vpop.permute.xlu0 %2950
    %2954 = vset.pattern.permute.xlu0 11
    %2955 = vperm.xlu0 %2954, %v2936
    %v2956 = vpop.permute.xlu0 %2955
    %2959 = vset.pattern.permute.xlu0 11
    %2960 = vperm.xlu0 %2959, %v2938
    %v2961 = vpop.permute.xlu0 %2960
    %2967 = vrot.lane.b32.xlu0 %v2931, 14
    %v2968 = vpop.permute.xlu0 %2967
    %2969 = vrot.lane.b32.xlu0 %v2932, 14
    %v2970 = vpop.permute.xlu0 %2969
    %2971 = vrot.lane.b32.xlu0 %v2933, 14
    %v2972 = vpop.permute.xlu0 %2971
    %2973 = vrot.lane.b32.xlu0 %v2934, 14
    %v2974 = vpop.permute.xlu0 %2973
    %2975 = vrot.lane.b32.xlu0 %v2935, 14
    %v2976 = vpop.permute.xlu0 %2975
    %2977 = vrot.lane.b32.xlu0 %v2936, 14
    %v2978 = vpop.permute.xlu0 %2977
    %2979 = vrot.lane.b32.xlu0 %v2937, 14
    %v2980 = vpop.permute.xlu0 %2979
    %2981 = vrot.lane.b32.xlu0 %v2938, 14
    %v2982 = vpop.permute.xlu0 %2981
    %v2983 = vsel %vm2647, %v2968, %v2970
    %v2984 = vsel %vm2647, %v2972, %v2974
    %v2985 = vsel %vm2647, %v2976, %v2978
    %v2986 = vsel %vm2647, %v2980, %v2982
    %vm2987 = vcmask 203776
    %v2988 = vsel %vm2987, %v2983, 0
    %v2990 = vsel %vm2987, %v2984, 0
    %v2992 = vsel %vm2987, %v2985, 0
    %v2994 = vsel %vm2987, %v2986, 0
    %vm2996 = vcmask 1040384
    %v2998 = vsel %vm2996, %v2942, 0
    %3000 = vmatprep.subr.mxu0 0.0
    %3001 = vmatpush1.msra.mxu0 0.0
    %3002 = vmatprep.subr.mxu0 0.0
    %3003 = vmatpush1.msra.mxu0 0.0
    %3004 = vmatprep.subr.mxu0 0.0
    %3005 = vmatpush1.msra.mxu0 0.0
    %3006 = vmatprep.subr.mxu0 0.0
    %3007 = vmatpush1.msra.mxu0 0.0
    %3008 = vmatprep.subr.mxu0 0.0
    %3009 = vmatpush1.msra.mxu0 0.0
    %3010 = vmatprep.subr.mxu0 0.0
    %3011 = vmatpush1.msra.mxu0 0.0
    %3012 = vmatprep.subr.mxu0 0.0
    %3013 = vmatpush1.msra.mxu0 0.0
    %3014 = vmatprep.subr.mxu0 0.0
    %3015 = vmatpush1.msra.mxu0 0.0
    %3016 = vmatprep.subr.mxu0 0.0
    %3017 = vmatpush1.msra.mxu0 0.0
    %3018 = vmatprep.subr.mxu0 0.0
    %3019 = vmatpush1.msra.mxu0 0.0
    %3020 = vmatprep.subr.mxu0 0.0
    %3021 = vmatpush1.msra.mxu0 0.0
    %3022 = vmatprep.subr.mxu0 0.0
    %3023 = vmatpush1.msra.mxu0 0.0
    %3024 = vmatprep.subr.mxu0 0.0
    %3025 = vmatpush1.msra.mxu0 %v2998
    %3026 = vmatprep.subr.mxu0 0.0
    %3027 = vmatpush1.msra.mxu0 %v2941
    %3028 = vmatprep.subr.mxu0 0.0
    %3029 = vmatpush1.msra.mxu0 %v2940
    %3030 = vmatprep.subr.mxu0 0.0
    %3031 = vmatpush1.msra.mxu0 %v2939
    %3032 = vmatprep.subr.mxu0 0.0
    %3033 = vmatpush2.msra.mxu0 0.0
    %3034 = vmatprep.subr.mxu0 0.0
    %3035 = vmatpush2.msra.mxu0 0.0
    %3036 = vmatprep.subr.mxu0 0.0
    %3037 = vmatpush2.msra.mxu0 0.0
    %3038 = vmatprep.subr.mxu0 0.0
    %3039 = vmatpush2.msra.mxu0 0.0
    %3040 = vmatprep.subr.mxu0 0.0
    %3041 = vmatpush2.msra.mxu0 0.0
    %3042 = vmatprep.subr.mxu0 0.0
    %3043 = vmatpush2.msra.mxu0 0.0
    %3044 = vmatprep.subr.mxu0 0.0
    %3045 = vmatpush2.msra.mxu0 0.0
    %3046 = vmatprep.subr.mxu0 0.0
    %3047 = vmatpush2.msra.mxu0 0.0
    %3048 = vmatprep.subr.mxu0 0.0
    %3049 = vmatpush2.msra.mxu0 0.0
    %3050 = vmatprep.subr.mxu0 0.0
    %3051 = vmatpush2.msra.mxu0 0.0
    %3052 = vmatprep.subr.mxu0 0.0
    %3053 = vmatpush2.msra.mxu0 0.0
    %3054 = vmatprep.subr.mxu0 0.0
    %3055 = vmatpush2.msra.mxu0 0.0
    %3056 = vmatprep.subr.mxu0 0.0
    %3057 = vmatpush2.msra.mxu0 0.0
    %3058 = vmatprep.subr.mxu0 0.0
    %3059 = vmatpush2.msra.mxu0 0.0
    %3060 = vmatprep.subr.mxu0 0.0
    %3061 = vmatpush2.msra.mxu0 0.0
    %3062 = vmatprep.subr.mxu0 0.0
    %3063 = vmatpush2.msra.mxu0 0.0
    %3064 = vmatprep.mubr.f32.mxu0 0.0
    %3065 = vmatmul.mubr.f32.gmra.mxu0 %v2988
    %v3066 = vpop.f32.mrf.mxu0
    %v3067 = vadd.f32 %v2946, %v3066
    %v3068 = vpop.f32.mrf.mxu0
    %3069 = vmatprep.mubr.f32.mxu0 0.0
    %3070 = vmatmul.mubr.f32.gmra.mxu0 %v2990
    %v3071 = vpop.f32.mrf.mxu0
    %v3072 = vadd.f32 %v2951, %v3071
    %v3073 = vpop.f32.mrf.mxu0
    %3074 = vmatprep.mubr.f32.mxu0 0.0
    %3075 = vmatmul.mubr.f32.gmra.mxu0 %v2992
    %v3076 = vpop.f32.mrf.mxu0
    %v3077 = vadd.f32 %v2956, %v3076
    %v3078 = vpop.f32.mrf.mxu0
    %3079 = vmatprep.mubr.f32.mxu0 0.0
    %3080 = vmatmul.mubr.f32.gmra.mxu0 %v2994
    %v3081 = vpop.f32.mrf.mxu0
    %v3082 = vadd.f32 %v2961, %v3081
    %v3083 = vpop.f32.mrf.mxu0
    %3084 = vdwg.mxu0
    %3085 = vrot.lane.b32.xlu0 %v2932, 84
    %v3086 = vpop.permute.xlu0 %3085
    %3087 = vrot.lane.b32.xlu0 %v2934, 84
    %v3088 = vpop.permute.xlu0 %3087
    %3089 = vrot.lane.b32.xlu0 %v2936, 84
    %v3090 = vpop.permute.xlu0 %3089
    %3091 = vrot.lane.b32.xlu0 %v2938, 84
    %v3092 = vpop.permute.xlu0 %3091
    %v3093 = vsel %vm1068, %v3086, 0
    %v3095 = vsel %vm1068, %v3088, 0
    %v3097 = vsel %vm1068, %v3090, 0
    %v3099 = vsel %vm1068, %v3092, 0
    %3101 = vmatprep.subr.mxu0 0.0
    %3102 = vmatpush1.msra.mxu0 0.0
    %3103 = vmatprep.subr.mxu0 0.0
    %3104 = vmatpush1.msra.mxu0 0.0
    %3105 = vmatprep.subr.mxu0 0.0
    %3106 = vmatpush1.msra.mxu0 0.0
    %3107 = vmatprep.subr.mxu0 0.0
    %3108 = vmatpush1.msra.mxu0 0.0
    %3109 = vmatprep.subr.mxu0 0.0
    %3110 = vmatpush1.msra.mxu0 0.0
    %3111 = vmatprep.subr.mxu0 0.0
    %3112 = vmatpush1.msra.mxu0 0.0
    %3113 = vmatprep.subr.mxu0 0.0
    %3114 = vmatpush1.msra.mxu0 0.0
    %3115 = vmatprep.subr.mxu0 0.0
    %3116 = vmatpush1.msra.mxu0 0.0
    %3117 = vmatprep.subr.mxu0 0.0
    %3118 = vmatpush1.msra.mxu0 0.0
    %3119 = vmatprep.subr.mxu0 0.0
    %3120 = vmatpush1.msra.mxu0 0.0
    %3121 = vmatprep.subr.mxu0 0.0
    %3122 = vmatpush1.msra.mxu0 0.0
    %3123 = vmatprep.subr.mxu0 0.0
    %3124 = vmatpush1.msra.mxu0 0.0
    %3125 = vmatprep.subr.mxu0 0.0
    %3126 = vmatpush1.msra.mxu0 %v3082
    %3127 = vmatprep.subr.mxu0 0.0
    %3128 = vmatpush1.msra.mxu0 %v3077
    %3129 = vmatprep.subr.mxu0 0.0
    %3130 = vmatpush1.msra.mxu0 %v3072
    %3131 = vmatprep.subr.mxu0 0.0
    %3132 = vmatpush1.msra.mxu0 %v3067
    %3133 = vmatprep.subr.mxu0 0.0
    %3134 = vmatpush2.msra.mxu0 0.0
    %3135 = vmatprep.subr.mxu0 0.0
    %3136 = vmatpush2.msra.mxu0 0.0
    %3137 = vmatprep.subr.mxu0 0.0
    %3138 = vmatpush2.msra.mxu0 0.0
    %3139 = vmatprep.subr.mxu0 0.0
    %3140 = vmatpush2.msra.mxu0 0.0
    %3141 = vmatprep.subr.mxu0 0.0
    %3142 = vmatpush2.msra.mxu0 0.0
    %3143 = vmatprep.subr.mxu0 0.0
    %3144 = vmatpush2.msra.mxu0 0.0
    %3145 = vmatprep.subr.mxu0 0.0
    %3146 = vmatpush2.msra.mxu0 0.0
    %3147 = vmatprep.subr.mxu0 0.0
    %3148 = vmatpush2.msra.mxu0 0.0
    %3149 = vmatprep.subr.mxu0 0.0
    %3150 = vmatpush2.msra.mxu0 0.0
    %3151 = vmatprep.subr.mxu0 0.0
    %3152 = vmatpush2.msra.mxu0 0.0
    %3153 = vmatprep.subr.mxu0 0.0
    %3154 = vmatpush2.msra.mxu0 0.0
    %3155 = vmatprep.subr.mxu0 0.0
    %3156 = vmatpush2.msra.mxu0 0.0
    %3157 = vmatprep.subr.mxu0 0.0
    %3158 = vmatpush2.msra.mxu0 0.0
    %3159 = vmatprep.subr.mxu0 0.0
    %3160 = vmatpush2.msra.mxu0 0.0
    %3161 = vmatprep.subr.mxu0 0.0
    %3162 = vmatpush2.msra.mxu0 0.0
    %3163 = vmatprep.subr.mxu0 0.0
    %3164 = vmatpush2.msra.mxu0 0.0
    %3165 = vmatprep.mubr.f32.mxu0 0.0
    %3166 = vmatmul.mubr.f32.gmra.mxu0 %v3093
    %v3167 = vpop.f32.mrf.mxu0
    %v3168 = vadd.f32 0.0, %v3167
    %v3169 = vpop.f32.mrf.mxu0
    %3170 = vmatprep.mubr.f32.mxu0 0.0
    %3171 = vmatmul.mubr.f32.gmra.mxu0 %v3095
    %v3172 = vpop.f32.mrf.mxu0
    %v3173 = vadd.f32 0.0, %v3172
    %v3174 = vpop.f32.mrf.mxu0
    %3175 = vmatprep.mubr.f32.mxu0 0.0
    %3176 = vmatmul.mubr.f32.gmra.mxu0 %v3097
    %v3177 = vpop.f32.mrf.mxu0
    %v3178 = vadd.f32 0.0, %v3177
    %v3179 = vpop.f32.mrf.mxu0
    %3180 = vmatprep.mubr.f32.mxu0 0.0
    %3181 = vmatmul.mubr.f32.gmra.mxu0 %v3099
    %v3182 = vpop.f32.mrf.mxu0
    %v3183 = vadd.f32 0.0, %v3182
    %v3184 = vpop.f32.mrf.mxu0
    %3185 = vdwg.mxu0
    %3186 = vrot.lane.b32.xlu0 %v2932, 116
    %v3187 = vpop.permute.xlu0 %3186
    %3188 = vrot.lane.b32.xlu0 %v2934, 116
    %v3189 = vpop.permute.xlu0 %3188
    %3190 = vrot.lane.b32.xlu0 %v2936, 116
    %v3191 = vpop.permute.xlu0 %3190
    %3192 = vrot.lane.b32.xlu0 %v2938, 116
    %v3193 = vpop.permute.xlu0 %3192
    %v3194 = vsel %vm1068, %v3187, 0
    %v3196 = vsel %vm1068, %v3189, 0
    %v3198 = vsel %vm1068, %v3191, 0
    %v3200 = vsel %vm1068, %v3193, 0
    %3202 = vmatprep.subr.mxu0 0.0
    %3203 = vmatpush1.msra.mxu0 0.0
    %3204 = vmatprep.subr.mxu0 0.0
    %3205 = vmatpush1.msra.mxu0 0.0
    %3206 = vmatprep.subr.mxu0 0.0
    %3207 = vmatpush1.msra.mxu0 0.0
    %3208 = vmatprep.subr.mxu0 0.0
    %3209 = vmatpush1.msra.mxu0 0.0
    %3210 = vmatprep.subr.mxu0 0.0
    %3211 = vmatpush1.msra.mxu0 0.0
    %3212 = vmatprep.subr.mxu0 0.0
    %3213 = vmatpush1.msra.mxu0 0.0
    %3214 = vmatprep.subr.mxu0 0.0
    %3215 = vmatpush1.msra.mxu0 0.0
    %3216 = vmatprep.subr.mxu0 0.0
    %3217 = vmatpush1.msra.mxu0 0.0
    %3218 = vmatprep.subr.mxu0 0.0
    %3219 = vmatpush1.msra.mxu0 0.0
    %3220 = vmatprep.subr.mxu0 0.0
    %3221 = vmatpush1.msra.mxu0 0.0
    %3222 = vmatprep.subr.mxu0 0.0
    %3223 = vmatpush1.msra.mxu0 0.0
    %3224 = vmatprep.subr.mxu0 0.0
    %3225 = vmatpush1.msra.mxu0 0.0
    %3226 = vmatprep.subr.mxu0 0.0
    %3227 = vmatpush1.msra.mxu0 %v2746
    %3228 = vmatprep.subr.mxu0 0.0
    %3229 = vmatpush1.msra.mxu0 %v2741
    %3230 = vmatprep.subr.mxu0 0.0
    %3231 = vmatpush1.msra.mxu0 %v2736
    %3232 = vmatprep.subr.mxu0 0.0
    %3233 = vmatpush1.msra.mxu0 %v2731
    %3234 = vmatprep.subr.mxu0 0.0
    %3235 = vmatpush2.msra.mxu0 0.0
    %3236 = vmatprep.subr.mxu0 0.0
    %3237 = vmatpush2.msra.mxu0 0.0
    %3238 = vmatprep.subr.mxu0 0.0
    %3239 = vmatpush2.msra.mxu0 0.0
    %3240 = vmatprep.subr.mxu0 0.0
    %3241 = vmatpush2.msra.mxu0 0.0
    %3242 = vmatprep.subr.mxu0 0.0
    %3243 = vmatpush2.msra.mxu0 0.0
    %3244 = vmatprep.subr.mxu0 0.0
    %3245 = vmatpush2.msra.mxu0 0.0
    %3246 = vmatprep.subr.mxu0 0.0
    %3247 = vmatpush2.msra.mxu0 0.0
    %3248 = vmatprep.subr.mxu0 0.0
    %3249 = vmatpush2.msra.mxu0 0.0
    %3250 = vmatprep.subr.mxu0 0.0
    %3251 = vmatpush2.msra.mxu0 0.0
    %3252 = vmatprep.subr.mxu0 0.0
    %3253 = vmatpush2.msra.mxu0 0.0
    %3254 = vmatprep.subr.mxu0 0.0
    %3255 = vmatpush2.msra.mxu0 0.0
    %3256 = vmatprep.subr.mxu0 0.0
    %3257 = vmatpush2.msra.mxu0 0.0
    %3258 = vmatprep.subr.mxu0 0.0
    %3259 = vmatpush2.msra.mxu0 0.0
    %3260 = vmatprep.subr.mxu0 0.0
    %3261 = vmatpush2.msra.mxu0 0.0
    %3262 = vmatprep.subr.mxu0 0.0
    %3263 = vmatpush2.msra.mxu0 0.0
    %3264 = vmatprep.subr.mxu0 0.0
    %3265 = vmatpush2.msra.mxu0 0.0
    %3266 = vmatprep.mubr.f32.mxu0 0.0
    %3267 = vmatmul.mubr.f32.gmra.mxu0 %v3194
    %v3268 = vpop.f32.mrf.mxu0
    %v3269 = vadd.f32 %v3168, %v3268
    %v3270 = vpop.f32.mrf.mxu0
    %3271 = vmatprep.mubr.f32.mxu0 0.0
    %3272 = vmatmul.mubr.f32.gmra.mxu0 %v3196
    %v3273 = vpop.f32.mrf.mxu0
    %v3274 = vadd.f32 %v3173, %v3273
    %v3275 = vpop.f32.mrf.mxu0
    %3276 = vmatprep.mubr.f32.mxu0 0.0
    %3277 = vmatmul.mubr.f32.gmra.mxu0 %v3198
    %v3278 = vpop.f32.mrf.mxu0
    %v3279 = vadd.f32 %v3178, %v3278
    %v3280 = vpop.f32.mrf.mxu0
    %3281 = vmatprep.mubr.f32.mxu0 0.0
    %3282 = vmatmul.mubr.f32.gmra.mxu0 %v3200
    %v3283 = vpop.f32.mrf.mxu0
    %v3284 = vadd.f32 %v3183, %v3283
    %v3285 = vpop.f32.mrf.mxu0
    %3286 = vdwg.mxu0
    %3287 = vset.pattern.permute.xlu0 76
    %3288 = vperm.xlu0 %3287, %v2932
    %v3289 = vpop.permute.xlu0 %3288
    %3291 = vset.pattern.permute.xlu0 76
    %3292 = vperm.xlu0 %3291, %v2934
    %v3293 = vpop.permute.xlu0 %3292
    %3295 = vset.pattern.permute.xlu0 76
    %3296 = vperm.xlu0 %3295, %v2936
    %v3297 = vpop.permute.xlu0 %3296
    %3299 = vset.pattern.permute.xlu0 76
    %3300 = vperm.xlu0 %3299, %v2938
    %v3301 = vpop.permute.xlu0 %3300
    %v3303 = vadd.f32 %v3269, %v3289
    %v3304 = vadd.f32 %v3274, %v3293
    %v3305 = vadd.f32 %v3279, %v3297
    %v3306 = vadd.f32 %v3284, %v3301
    %3307 = vst.msk [vmem:[#allocation2] sm:$0xff] %vm350, 0.0
    %3308 = vst.msk [vmem:[#allocation2 + $0x8] sm:$0xff] %vm350, 0.0
    %3309 = vst.msk [vmem:[#allocation2 + $0x10] sm:$0xff] %vm350, 0.0
    %3310 = vst.msk [vmem:[#allocation2 + $0x18] sm:$0xff] %vm350, 0.0
    %3315 = vrot.lane.b32.xlu0 %v3303, 1
    %v3316 = vpop.permute.xlu0 %3315
    %3317 = vrot.lane.b32.xlu0 %v3304, 1
    %v3318 = vpop.permute.xlu0 %3317
    %3319 = vrot.lane.b32.xlu0 %v3305, 1
    %v3320 = vpop.permute.xlu0 %3319
    %3321 = vrot.lane.b32.xlu0 %v3306, 1
    %v3322 = vpop.permute.xlu0 %3321
    %vm3327 = vcmask 523272
    %3328 = vst.msk [vmem:[#allocation2] sm:$0xff] %vm3327, %v3316
    %3329 = vst.msk [vmem:[#allocation2 + $0x8] sm:$0xff] %vm3327, %v3318
    %3330 = vst.msk [vmem:[#allocation2 + $0x10] sm:$0xff] %vm3327, %v3320
    %3331 = vst.msk [vmem:[#allocation2 + $0x18] sm:$0xff] %vm3327, %v3322
    %vm3332 = vcmask 531968
    %3333 = vst.msk [vmem:[#allocation2] sm:$0xff] %vm3332, 0.0
    %3334 = vst.msk [vmem:[#allocation2 + $0x8] sm:$0xff] %vm3332, 0.0
    %3335 = vst.msk [vmem:[#allocation2 + $0x10] sm:$0xff] %vm3332, 0.0
    %3336 = vst.msk [vmem:[#allocation2 + $0x18] sm:$0xff] %vm3332, 0.0
    %vm3337 = vcmask 1048072
    %3338 = vst.msk [vmem:[#allocation2] sm:$0xff] %vm3337, %v3316
    %3339 = vst.msk [vmem:[#allocation2 + $0x8] sm:$0xff] %vm3337, %v3318
    %3340 = vst.msk [vmem:[#allocation2 + $0x10] sm:$0xff] %vm3337, %v3320
    %3341 = vst.msk [vmem:[#allocation2 + $0x18] sm:$0xff] %vm3337, %v3322
    %vm3342 = vcmask 523264
    %3343 = vst.msk [vmem:[#allocation2 + $0x20] sm:$0xff] %vm3342, %v3303
    %3344 = vst.msk [vmem:[#allocation2 + $0x28] sm:$0xff] %vm3342, %v3304
    %3345 = vst.msk [vmem:[#allocation2 + $0x30] sm:$0xff] %vm3342, %v3305
    %3346 = vst.msk [vmem:[#allocation2 + $0x38] sm:$0xff] %vm3342, %v3306
    %vm3347 = vcmask 1048064
    %3348 = vst.msk [vmem:[#allocation2 + $0x20] sm:$0xff] %vm3347, %v3303
    %3349 = vst.msk [vmem:[#allocation2 + $0x28] sm:$0xff] %vm3347, %v3304
    %3350 = vst.msk [vmem:[#allocation2 + $0x30] sm:$0xff] %vm3347, %v3305
    %3351 = vst.msk [vmem:[#allocation2 + $0x38] sm:$0xff] %vm3347, %v3306
    %vm3352 = vcmask 523768
    %3353 = vst.msk [vmem:[#allocation2 + $0x40] sm:$0xff] %vm3352, 0.0
    %3354 = vst.msk [vmem:[#allocation2 + $0x48] sm:$0xff] %vm3352, 0.0
    %3355 = vst.msk [vmem:[#allocation2 + $0x50] sm:$0xff] %vm3352, 0.0
    %3356 = vst.msk [vmem:[#allocation2 + $0x58] sm:$0xff] %vm3352, 0.0
    %3357 = vrot.lane.b32.xlu0 %v3303, 127
    %v3358 = vpop.permute.xlu0 %3357
    %3359 = vrot.lane.b32.xlu0 %v3304, 127
    %v3360 = vpop.permute.xlu0 %3359
    %3361 = vrot.lane.b32.xlu0 %v3305, 127
    %v3362 = vpop.permute.xlu0 %3361
    %3363 = vrot.lane.b32.xlu0 %v3306, 127
    %v3364 = vpop.permute.xlu0 %3363
    %vm3369 = vcmask 515072
    %3370 = vst.msk [vmem:[#allocation2 + $0x40] sm:$0xff] %vm3369, %v3358
    %3371 = vst.msk [vmem:[#allocation2 + $0x48] sm:$0xff] %vm3369, %v3360
    %3372 = vst.msk [vmem:[#allocation2 + $0x50] sm:$0xff] %vm3369, %v3362
    %3373 = vst.msk [vmem:[#allocation2 + $0x58] sm:$0xff] %vm3369, %v3364
    %vm3374 = vcmask 1048568
    %3375 = vst.msk [vmem:[#allocation2 + $0x40] sm:$0xff] %vm3374, 0.0
    %3376 = vst.msk [vmem:[#allocation2 + $0x48] sm:$0xff] %vm3374, 0.0
    %3377 = vst.msk [vmem:[#allocation2 + $0x50] sm:$0xff] %vm3374, 0.0
    %3378 = vst.msk [vmem:[#allocation2 + $0x58] sm:$0xff] %vm3374, 0.0
    %vm3379 = vcmask 1039872
    %3380 = vst.msk [vmem:[#allocation2 + $0x40] sm:$0xff] %vm3379, %v3358
    %3381 = vst.msk [vmem:[#allocation2 + $0x48] sm:$0xff] %vm3379, %v3360
    %3382 = vst.msk [vmem:[#allocation2 + $0x50] sm:$0xff] %vm3379, %v3362
    %3383 = vst.msk [vmem:[#allocation2 + $0x58] sm:$0xff] %vm3379, %v3364
    %v3384 = vld [vmem:[#allocation3 + $0x40] sm:$0xff]
    %v3385 = vld [vmem:[#allocation3 + $0x48] sm:$0xff]
    %v3386 = vld [vmem:[#allocation3 + $0x98] sm:$0xff]
    %v3387 = vld [vmem:[#allocation3 + $0xa0] sm:$0xff]
    %v3388 = vld [vmem:[#allocation3 + $0xf0] sm:$0xff]
    %v3389 = vld [vmem:[#allocation3 + $0xf8] sm:$0xff]
    %v3390 = vld [vmem:[#allocation3 + $0x148] sm:$0xff]
    %v3391 = vld [vmem:[#allocation3 + $0x150] sm:$0xff]
    %v3392 = vld [vmem:[#allocation2] sm:$0xff]
    %v3393 = vld [vmem:[#allocation2 + $0x8] sm:$0xff]
    %v3394 = vld [vmem:[#allocation2 + $0x10] sm:$0xff]
    %v3395 = vld [vmem:[#allocation2 + $0x18] sm:$0xff]
    %v3396 = vld [vmem:[#allocation2 + $0x20] sm:$0xff]
    %v3397 = vld [vmem:[#allocation2 + $0x28] sm:$0xff]
    %v3398 = vld [vmem:[#allocation2 + $0x30] sm:$0xff]
    %v3399 = vld [vmem:[#allocation2 + $0x38] sm:$0xff]
    %v3400 = vld [vmem:[#allocation2 + $0x40] sm:$0xff]
    %v3401 = vld [vmem:[#allocation2 + $0x48] sm:$0xff]
    %v3402 = vld [vmem:[#allocation2 + $0x50] sm:$0xff]
    %v3403 = vld [vmem:[#allocation2 + $0x58] sm:$0xff]
    %3405 = vset.pattern.permute.xlu0 45
    %3406 = vperm.xlu0 %3405, %v3385
    %v3407 = vpop.permute.xlu0 %3406
    %3410 = vset.pattern.permute.xlu0 45
    %3411 = vperm.xlu0 %3410, %v3387
    %v3412 = vpop.permute.xlu0 %3411
    %3415 = vset.pattern.permute.xlu0 45
    %3416 = vperm.xlu0 %3415, %v3389
    %v3417 = vpop.permute.xlu0 %3416
    %3420 = vset.pattern.permute.xlu0 45
    %3421 = vperm.xlu0 %3420, %v3391
    %v3422 = vpop.permute.xlu0 %3421
    %3428 = vrot.lane.b32.xlu0 %v3384, 51
    %v3429 = vpop.permute.xlu0 %3428
    %3430 = vrot.lane.b32.xlu0 %v3385, 51
    %v3431 = vpop.permute.xlu0 %3430
    %3432 = vrot.lane.b32.xlu0 %v3386, 51
    %v3433 = vpop.permute.xlu0 %3432
    %3434 = vrot.lane.b32.xlu0 %v3387, 51
    %v3435 = vpop.permute.xlu0 %3434
    %3436 = vrot.lane.b32.xlu0 %v3388, 51
    %v3437 = vpop.permute.xlu0 %3436
    %3438 = vrot.lane.b32.xlu0 %v3389, 51
    %v3439 = vpop.permute.xlu0 %3438
    %3440 = vrot.lane.b32.xlu0 %v3390, 51
    %v3441 = vpop.permute.xlu0 %3440
    %3442 = vrot.lane.b32.xlu0 %v3391, 51
    %v3443 = vpop.permute.xlu0 %3442
    %vm3444 = vcmask 416768
    %v3445 = vsel %vm3444, %v3429, %v3431
    %v3446 = vsel %vm3444, %v3433, %v3435
    %v3447 = vsel %vm3444, %v3437, %v3439
    %v3448 = vsel %vm3444, %v3441, %v3443
    %v3449 = vsel %vm828, %v3445, 0
    %v3451 = vsel %vm828, %v3446, 0
    %v3453 = vsel %vm828, %v3447, 0
    %v3455 = vsel %vm828, %v3448, 0
    %3457 = vmatprep.subr.mxu0 0.0
    %3458 = vmatpush1.msra.mxu0 0.0
    %3459 = vmatprep.subr.mxu0 0.0
    %3460 = vmatpush1.msra.mxu0 0.0
    %3461 = vmatprep.subr.mxu0 0.0
    %3462 = vmatpush1.msra.mxu0 0.0
    %3463 = vmatprep.subr.mxu0 0.0
    %3464 = vmatpush1.msra.mxu0 0.0
    %3465 = vmatprep.subr.mxu0 0.0
    %3466 = vmatpush1.msra.mxu0 %v3403
    %3467 = vmatprep.subr.mxu0 0.0
    %3468 = vmatpush1.msra.mxu0 %v3402
    %3469 = vmatprep.subr.mxu0 0.0
    %3470 = vmatpush1.msra.mxu0 %v3401
    %3471 = vmatprep.subr.mxu0 0.0
    %3472 = vmatpush1.msra.mxu0 %v3400
    %3473 = vmatprep.subr.mxu0 0.0
    %3474 = vmatpush1.msra.mxu0 %v3399
    %3475 = vmatprep.subr.mxu0 0.0
    %3476 = vmatpush1.msra.mxu0 %v3398
    %3477 = vmatprep.subr.mxu0 0.0
    %3478 = vmatpush1.msra.mxu0 %v3397
    %3479 = vmatprep.subr.mxu0 0.0
    %3480 = vmatpush1.msra.mxu0 %v3396
    %3481 = vmatprep.subr.mxu0 0.0
    %3482 = vmatpush1.msra.mxu0 %v3395
    %3483 = vmatprep.subr.mxu0 0.0
    %3484 = vmatpush1.msra.mxu0 %v3394
    %3485 = vmatprep.subr.mxu0 0.0
    %3486 = vmatpush1.msra.mxu0 %v3393
    %3487 = vmatprep.subr.mxu0 0.0
    %3488 = vmatpush1.msra.mxu0 %v3392
    %3489 = vmatprep.subr.mxu0 0.0
    %3490 = vmatpush2.msra.mxu0 0.0
    %3491 = vmatprep.subr.mxu0 0.0
    %3492 = vmatpush2.msra.mxu0 0.0
    %3493 = vmatprep.subr.mxu0 0.0
    %3494 = vmatpush2.msra.mxu0 0.0
    %3495 = vmatprep.subr.mxu0 0.0
    %3496 = vmatpush2.msra.mxu0 0.0
    %3497 = vmatprep.subr.mxu0 0.0
    %3498 = vmatpush2.msra.mxu0 0.0
    %3499 = vmatprep.subr.mxu0 0.0
    %3500 = vmatpush2.msra.mxu0 0.0
    %3501 = vmatprep.subr.mxu0 0.0
    %3502 = vmatpush2.msra.mxu0 0.0
    %3503 = vmatprep.subr.mxu0 0.0
    %3504 = vmatpush2.msra.mxu0 0.0
    %3505 = vmatprep.subr.mxu0 0.0
    %3506 = vmatpush2.msra.mxu0 0.0
    %3507 = vmatprep.subr.mxu0 0.0
    %3508 = vmatpush2.msra.mxu0 0.0
    %3509 = vmatprep.subr.mxu0 0.0
    %3510 = vmatpush2.msra.mxu0 0.0
    %3511 = vmatprep.subr.mxu0 0.0
    %3512 = vmatpush2.msra.mxu0 0.0
    %3513 = vmatprep.subr.mxu0 0.0
    %3514 = vmatpush2.msra.mxu0 0.0
    %3515 = vmatprep.subr.mxu0 0.0
    %3516 = vmatpush2.msra.mxu0 0.0
    %3517 = vmatprep.subr.mxu0 0.0
    %3518 = vmatpush2.msra.mxu0 0.0
    %3519 = vmatprep.subr.mxu0 0.0
    %3520 = vmatpush2.msra.mxu0 0.0
    %3521 = vmatprep.mubr.f32.mxu0 0.0
    %3522 = vmatmul.mubr.f32.gmra.mxu0 %v3449
    %v3523 = vpop.f32.mrf.mxu0
    %v3524 = vadd.f32 %v3407, %v3523
    %v3525 = vpop.f32.mrf.mxu0
    %3526 = vmatprep.mubr.f32.mxu0 0.0
    %3527 = vmatmul.mubr.f32.gmra.mxu0 %v3451
    %v3528 = vpop.f32.mrf.mxu0
    %v3529 = vadd.f32 %v3412, %v3528
    %v3530 = vpop.f32.mrf.mxu0
    %3531 = vmatprep.mubr.f32.mxu0 0.0
    %3532 = vmatmul.mubr.f32.gmra.mxu0 %v3453
    %v3533 = vpop.f32.mrf.mxu0
    %v3534 = vadd.f32 %v3417, %v3533
    %v3535 = vpop.f32.mrf.mxu0
    %3536 = vmatprep.mubr.f32.mxu0 0.0
    %3537 = vmatmul.mubr.f32.gmra.mxu0 %v3455
    %v3538 = vpop.f32.mrf.mxu0
    %v3539 = vadd.f32 %v3422, %v3538
    %v3540 = vpop.f32.mrf.mxu0
    %3541 = vdwg.mxu0
    %v3542 = vadd.f32 %v3524, %v3303
    %v3543 = vadd.f32 %v3529, %v3304
    %v3544 = vadd.f32 %v3534, %v3305
    %v3545 = vadd.f32 %v3539, %v3306
    %vm3546 = vcmp.ge.f32.partialorder %v3542, 0.0
    %vm3547 = vcmp.ge.f32.partialorder %v3543, 0.0
    %vm3548 = vcmp.ge.f32.partialorder %v3544, 0.0
    %vm3549 = vcmp.ge.f32.partialorder %v3545, 0.0
    %v3550 = vmul.f32 %v3542, 0.2
    %v3551 = vmul.f32 %v3543, 0.2
    %v3552 = vmul.f32 %v3544, 0.2
    %v3553 = vmul.f32 %v3545, 0.2
    %v3554 = vsel %vm3546, %v3542, %v3550
    %v3555 = vsel %vm3547, %v3543, %v3551
    %v3556 = vsel %vm3548, %v3544, %v3552
    %v3557 = vsel %vm3549, %v3545, %v3553
    %3558 = vst.msk [vmem:[#allocation2] sm:$0xff] %vm312, 0.0
    %3559 = vst.msk [vmem:[#allocation2 + $0x8] sm:$0xff] %vm312, 0.0
    %3560 = vst.msk [vmem:[#allocation2 + $0x10] sm:$0xff] %vm312, 0.0
    %3561 = vst.msk [vmem:[#allocation2 + $0x18] sm:$0xff] %vm312, 0.0
    %3566 = vrot.lane.b32.xlu0 %v3554, 3
    %v3567 = vpop.permute.xlu0 %3566
    %3568 = vrot.lane.b32.xlu0 %v3555, 3
    %v3569 = vpop.permute.xlu0 %3568
    %3570 = vrot.lane.b32.xlu0 %v3556, 3
    %v3571 = vpop.permute.xlu0 %3570
    %3572 = vrot.lane.b32.xlu0 %v3557, 3
    %v3573 = vpop.permute.xlu0 %3572
    %vm3578 = vcmask 523288
    %3579 = vst.msk [vmem:[#allocation2] sm:$0xff] %vm3578, %v3567
    %3580 = vst.msk [vmem:[#allocation2 + $0x8] sm:$0xff] %vm3578, %v3569
    %3581 = vst.msk [vmem:[#allocation2 + $0x10] sm:$0xff] %vm3578, %v3571
    %3582 = vst.msk [vmem:[#allocation2 + $0x18] sm:$0xff] %vm3578, %v3573
    %vm3583 = vcmask 548352
    %3584 = vst.msk [vmem:[#allocation2] sm:$0xff] %vm3583, 0.0
    %3585 = vst.msk [vmem:[#allocation2 + $0x8] sm:$0xff] %vm3583, 0.0
    %3586 = vst.msk [vmem:[#allocation2 + $0x10] sm:$0xff] %vm3583, 0.0
    %3587 = vst.msk [vmem:[#allocation2 + $0x18] sm:$0xff] %vm3583, 0.0
    %vm3588 = vcmask 1048088
    %3589 = vst.msk [vmem:[#allocation2] sm:$0xff] %vm3588, %v3567
    %3590 = vst.msk [vmem:[#allocation2 + $0x8] sm:$0xff] %vm3588, %v3569
    %3591 = vst.msk [vmem:[#allocation2 + $0x10] sm:$0xff] %vm3588, %v3571
    %3592 = vst.msk [vmem:[#allocation2 + $0x18] sm:$0xff] %vm3588, %v3573
    %3593 = vst.msk [vmem:[#allocation2 + $0x20] sm:$0xff] %vm3342, %v3554
    %3594 = vst.msk [vmem:[#allocation2 + $0x28] sm:$0xff] %vm3342, %v3555
    %3595 = vst.msk [vmem:[#allocation2 + $0x30] sm:$0xff] %vm3342, %v3556
    %3596 = vst.msk [vmem:[#allocation2 + $0x38] sm:$0xff] %vm3342, %v3557
    %3597 = vst.msk [vmem:[#allocation2 + $0x20] sm:$0xff] %vm3347, %v3554
    %3598 = vst.msk [vmem:[#allocation2 + $0x28] sm:$0xff] %vm3347, %v3555
    %3599 = vst.msk [vmem:[#allocation2 + $0x30] sm:$0xff] %vm3347, %v3556
    %3600 = vst.msk [vmem:[#allocation2 + $0x38] sm:$0xff] %vm3347, %v3557
    %vm3601 = vcmask 523752
    %3602 = vst.msk [vmem:[#allocation2 + $0x40] sm:$0xff] %vm3601, 0.0
    %3603 = vst.msk [vmem:[#allocation2 + $0x48] sm:$0xff] %vm3601, 0.0
    %3604 = vst.msk [vmem:[#allocation2 + $0x50] sm:$0xff] %vm3601, 0.0
    %3605 = vst.msk [vmem:[#allocation2 + $0x58] sm:$0xff] %vm3601, 0.0
    %3606 = vrot.lane.b32.xlu0 %v3554, 125
    %v3607 = vpop.permute.xlu0 %3606
    %3608 = vrot.lane.b32.xlu0 %v3555, 125
    %v3609 = vpop.permute.xlu0 %3608
    %3610 = vrot.lane.b32.xlu0 %v3556, 125
    %v3611 = vpop.permute.xlu0 %3610
    %3612 = vrot.lane.b32.xlu0 %v3557, 125
    %v3613 = vpop.permute.xlu0 %3612
    %vm3618 = vcmask 498688
    %3619 = vst.msk [vmem:[#allocation2 + $0x40] sm:$0xff] %vm3618, %v3607
    %3620 = vst.msk [vmem:[#allocation2 + $0x48] sm:$0xff] %vm3618, %v3609
    %3621 = vst.msk [vmem:[#allocation2 + $0x50] sm:$0xff] %vm3618, %v3611
    %3622 = vst.msk [vmem:[#allocation2 + $0x58] sm:$0xff] %vm3618, %v3613
    %vm3623 = vcmask 1048552
    %3624 = vst.msk [vmem:[#allocation2 + $0x40] sm:$0xff] %vm3623, 0.0
    %3625 = vst.msk [vmem:[#allocation2 + $0x48] sm:$0xff] %vm3623, 0.0
    %3626 = vst.msk [vmem:[#allocation2 + $0x50] sm:$0xff] %vm3623, 0.0
    %3627 = vst.msk [vmem:[#allocation2 + $0x58] sm:$0xff] %vm3623, 0.0
    %vm3628 = vcmask 1023488
    %3629 = vst.msk [vmem:[#allocation2 + $0x40] sm:$0xff] %vm3628, %v3607
    %3630 = vst.msk [vmem:[#allocation2 + $0x48] sm:$0xff] %vm3628, %v3609
    %3631 = vst.msk [vmem:[#allocation2 + $0x50] sm:$0xff] %vm3628, %v3611
    %3632 = vst.msk [vmem:[#allocation2 + $0x58] sm:$0xff] %vm3628, %v3613
    %v3633 = vld [vmem:[#allocation3 + $0x48] sm:$0xff]
    %v3634 = vld [vmem:[#allocation3 + $0x50] sm:$0xff]
    %v3635 = vld [vmem:[#allocation3 + $0xa0] sm:$0xff]
    %v3636 = vld [vmem:[#allocation3 + $0xa8] sm:$0xff]
    %v3637 = vld [vmem:[#allocation3 + $0xf8] sm:$0xff]
    %v3638 = vld [vmem:[#allocation3 + $0x100] sm:$0xff]
    %v3639 = vld [vmem:[#allocation3 + $0x150] sm:$0xff]
    %v3640 = vld [vmem:[#allocation3 + $0x158] sm:$0xff]
    %v3641 = vld [vmem:[#allocation2] sm:$0xff]
    %v3642 = vld [vmem:[#allocation2 + $0x8] sm:$0xff]
    %v3643 = vld [vmem:[#allocation2 + $0x10] sm:$0xff]
    %v3644 = vld [vmem:[#allocation2 + $0x18] sm:$0xff]
    %v3645 = vld [vmem:[#allocation2 + $0x20] sm:$0xff]
    %v3646 = vld [vmem:[#allocation2 + $0x28] sm:$0xff]
    %v3647 = vld [vmem:[#allocation2 + $0x30] sm:$0xff]
    %v3648 = vld [vmem:[#allocation2 + $0x38] sm:$0xff]
    %v3649 = vld [vmem:[#allocation2 + $0x40] sm:$0xff]
    %v3650 = vld [vmem:[#allocation2 + $0x48] sm:$0xff]
    %v3651 = vld [vmem:[#allocation2 + $0x50] sm:$0xff]
    %v3652 = vld [vmem:[#allocation2 + $0x58] sm:$0xff]
    %3654 = vset.pattern.permute.xlu0 14
    %3655 = vperm.xlu0 %3654, %v3634
    %v3656 = vpop.permute.xlu0 %3655
    %3659 = vset.pattern.permute.xlu0 14
    %3660 = vperm.xlu0 %3659, %v3636
    %v3661 = vpop.permute.xlu0 %3660
    %3664 = vset.pattern.permute.xlu0 14
    %3665 = vperm.xlu0 %3664, %v3638
    %v3666 = vpop.permute.xlu0 %3665
    %3669 = vset.pattern.permute.xlu0 14
    %3670 = vperm.xlu0 %3669, %v3640
    %v3671 = vpop.permute.xlu0 %3670
    %3677 = vrot.lane.b32.xlu0 %v3633, 82
    %v3678 = vpop.permute.xlu0 %3677
    %3679 = vrot.lane.b32.xlu0 %v3634, 82
    %v3680 = vpop.permute.xlu0 %3679
    %3681 = vrot.lane.b32.xlu0 %v3635, 82
    %v3682 = vpop.permute.xlu0 %3681
    %3683 = vrot.lane.b32.xlu0 %v3636, 82
    %v3684 = vpop.permute.xlu0 %3683
    %3685 = vrot.lane.b32.xlu0 %v3637, 82
    %v3686 = vpop.permute.xlu0 %3685
    %3687 = vrot.lane.b32.xlu0 %v3638, 82
    %v3688 = vpop.permute.xlu0 %3687
    %3689 = vrot.lane.b32.xlu0 %v3639, 82
    %v3690 = vpop.permute.xlu0 %3689
    %3691 = vrot.lane.b32.xlu0 %v3640, 82
    %v3692 = vpop.permute.xlu0 %3691
    %vm3693 = vcmask 670720
    %v3694 = vsel %vm3693, %v3678, %v3680
    %v3695 = vsel %vm3693, %v3682, %v3684
    %v3696 = vsel %vm3693, %v3686, %v3688
    %v3697 = vsel %vm3693, %v3690, %v3692
    %v3698 = vsel %vm828, %v3694, 0
    %v3700 = vsel %vm828, %v3695, 0
    %v3702 = vsel %vm828, %v3696, 0
    %v3704 = vsel %vm828, %v3697, 0
    %3706 = vmatprep.subr.mxu0 0.0
    %3707 = vmatpush1.msra.mxu0 0.0
    %3708 = vmatprep.subr.mxu0 0.0
    %3709 = vmatpush1.msra.mxu0 0.0
    %3710 = vmatprep.subr.mxu0 0.0
    %3711 = vmatpush1.msra.mxu0 0.0
    %3712 = vmatprep.subr.mxu0 0.0
    %3713 = vmatpush1.msra.mxu0 0.0
    %3714 = vmatprep.subr.mxu0 0.0
    %3715 = vmatpush1.msra.mxu0 %v3652
    %3716 = vmatprep.subr.mxu0 0.0
    %3717 = vmatpush1.msra.mxu0 %v3651
    %3718 = vmatprep.subr.mxu0 0.0
    %3719 = vmatpush1.msra.mxu0 %v3650
    %3720 = vmatprep.subr.mxu0 0.0
    %3721 = vmatpush1.msra.mxu0 %v3649
    %3722 = vmatprep.subr.mxu0 0.0
    %3723 = vmatpush1.msra.mxu0 %v3648
    %3724 = vmatprep.subr.mxu0 0.0
    %3725 = vmatpush1.msra.mxu0 %v3647
    %3726 = vmatprep.subr.mxu0 0.0
    %3727 = vmatpush1.msra.mxu0 %v3646
    %3728 = vmatprep.subr.mxu0 0.0
    %3729 = vmatpush1.msra.mxu0 %v3645
    %3730 = vmatprep.subr.mxu0 0.0
    %3731 = vmatpush1.msra.mxu0 %v3644
    %3732 = vmatprep.subr.mxu0 0.0
    %3733 = vmatpush1.msra.mxu0 %v3643
    %3734 = vmatprep.subr.mxu0 0.0
    %3735 = vmatpush1.msra.mxu0 %v3642
    %3736 = vmatprep.subr.mxu0 0.0
    %3737 = vmatpush1.msra.mxu0 %v3641
    %3738 = vmatprep.subr.mxu0 0.0
    %3739 = vmatpush2.msra.mxu0 0.0
    %3740 = vmatprep.subr.mxu0 0.0
    %3741 = vmatpush2.msra.mxu0 0.0
    %3742 = vmatprep.subr.mxu0 0.0
    %3743 = vmatpush2.msra.mxu0 0.0
    %3744 = vmatprep.subr.mxu0 0.0
    %3745 = vmatpush2.msra.mxu0 0.0
    %3746 = vmatprep.subr.mxu0 0.0
    %3747 = vmatpush2.msra.mxu0 0.0
    %3748 = vmatprep.subr.mxu0 0.0
    %3749 = vmatpush2.msra.mxu0 0.0
    %3750 = vmatprep.subr.mxu0 0.0
    %3751 = vmatpush2.msra.mxu0 0.0
    %3752 = vmatprep.subr.mxu0 0.0
    %3753 = vmatpush2.msra.mxu0 0.0
    %3754 = vmatprep.subr.mxu0 0.0
    %3755 = vmatpush2.msra.mxu0 0.0
    %3756 = vmatprep.subr.mxu0 0.0
    %3757 = vmatpush2.msra.mxu0 0.0
    %3758 = vmatprep.subr.mxu0 0.0
    %3759 = vmatpush2.msra.mxu0 0.0
    %3760 = vmatprep.subr.mxu0 0.0
    %3761 = vmatpush2.msra.mxu0 0.0
    %3762 = vmatprep.subr.mxu0 0.0
    %3763 = vmatpush2.msra.mxu0 0.0
    %3764 = vmatprep.subr.mxu0 0.0
    %3765 = vmatpush2.msra.mxu0 0.0
    %3766 = vmatprep.subr.mxu0 0.0
    %3767 = vmatpush2.msra.mxu0 0.0
    %3768 = vmatprep.subr.mxu0 0.0
    %3769 = vmatpush2.msra.mxu0 0.0
    %3770 = vmatprep.mubr.f32.mxu0 0.0
    %3771 = vmatmul.mubr.f32.gmra.mxu0 %v3698
    %v3772 = vpop.f32.mrf.mxu0
    %v3773 = vadd.f32 %v3656, %v3772
    %v3774 = vpop.f32.mrf.mxu0
    %3775 = vmatprep.mubr.f32.mxu0 0.0
    %3776 = vmatmul.mubr.f32.gmra.mxu0 %v3700
    %v3777 = vpop.f32.mrf.mxu0
    %v3778 = vadd.f32 %v3661, %v3777
    %v3779 = vpop.f32.mrf.mxu0
    %3780 = vmatprep.mubr.f32.mxu0 0.0
    %3781 = vmatmul.mubr.f32.gmra.mxu0 %v3702
    %v3782 = vpop.f32.mrf.mxu0
    %v3783 = vadd.f32 %v3666, %v3782
    %v3784 = vpop.f32.mrf.mxu0
    %3785 = vmatprep.mubr.f32.mxu0 0.0
    %3786 = vmatmul.mubr.f32.gmra.mxu0 %v3704
    %v3787 = vpop.f32.mrf.mxu0
    %v3788 = vadd.f32 %v3671, %v3787
    %v3789 = vpop.f32.mrf.mxu0
    %3790 = vdwg.mxu0
    %v3791 = vadd.f32 %v3773, %v3554
    %v3792 = vadd.f32 %v3778, %v3555
    %v3793 = vadd.f32 %v3783, %v3556
    %v3794 = vadd.f32 %v3788, %v3557
    %vm3795 = vcmp.ge.f32.partialorder %v3791, 0.0
    %vm3796 = vcmp.ge.f32.partialorder %v3792, 0.0
    %vm3797 = vcmp.ge.f32.partialorder %v3793, 0.0
    %vm3798 = vcmp.ge.f32.partialorder %v3794, 0.0
    %v3799 = vmul.f32 %v3791, 0.2
    %v3800 = vmul.f32 %v3792, 0.2
    %v3801 = vmul.f32 %v3793, 0.2
    %v3802 = vmul.f32 %v3794, 0.2
    %v3803 = vsel %vm3795, %v3791, %v3799
    %v3804 = vsel %vm3796, %v3792, %v3800
    %v3805 = vsel %vm3797, %v3793, %v3801
    %v3806 = vsel %vm3798, %v3794, %v3802
    %3807 = vst.msk [vmem:[#allocation6] sm:$0xff] %vm3342, %v3803
    %3808 = vst.msk [vmem:[#allocation6 + $0x8] sm:$0xff] %vm3342, %v3804
    %3809 = vst.msk [vmem:[#allocation6 + $0x10] sm:$0xff] %vm3342, %v3805
    %3810 = vst.msk [vmem:[#allocation6 + $0x18] sm:$0xff] %vm3342, %v3806
    %3815 = vrot.lane.b32.xlu0 %v3803, 64
    %v3816 = vpop.permute.xlu0 %3815
    %3817 = vrot.lane.b32.xlu0 %v3804, 64
    %v3818 = vpop.permute.xlu0 %3817
    %3819 = vrot.lane.b32.xlu0 %v3805, 64
    %v3820 = vpop.permute.xlu0 %3819
    %3821 = vrot.lane.b32.xlu0 %v3806, 64
    %v3822 = vpop.permute.xlu0 %3821
    %s3827 = scalar_lea.vmem [#allocation6], 32
    %3828 = vst.msk [vmem:[%s3827] sm:$0xff] %vm3342, %v3816
    %3829 = vst.msk [vmem:[%s3827 + $0x8] sm:$0xff] %vm3342, %v3818
    %3830 = vst.msk [vmem:[%s3827 + $0x10] sm:$0xff] %vm3342, %v3820
    %3831 = vst.msk [vmem:[%s3827 + $0x18] sm:$0xff] %vm3342, %v3822
    // Predicated region
    $region26: #{forward.1} parent=1 // pred_check
      _
    $region27: #{forward.1} parent=1 // pred_check_branch
      %3833 = sbr.rel (0) target = $region29
    $region28: #{forward.1} parent=1 // pred_region
      %s3835 = ssub.s32 1024, 1024
      %3836 = vsyncadd [#allocation5], %s3835
      %s3837 = sshll.u32 [#allocation6], 4
      %s3838 = int_to_ptr.vmem [resolvable:$true] %s3837
      %3843 = dma.vmem_to_hbm [thread:$0]  %s3838, 1024, %s5, [#allocation5], 128, 128, 8
    $region29: #{forward.1} parent=1 // pred_fallthru
      _
    // Predicated region
    $region30: #{forward.1} parent=1 // pred_check
      _
    $region31: #{forward.1} parent=1 // pred_check_branch
      %3845 = sbr.rel (0) target = $region33
    $region32: #{forward.1} parent=1 // pred_region
      %3846 = dma.done [#allocation5], 1024
    $region33: #{forward.1} parent=1 // pred_fallthru
      _
    %3847 = vsyncpa [#allocation4], 1
    %3848 = vsyncpa [#allocation5], 1

</llo_original>
